<compile_context>
chip_gen: v5e
topology: v5e:2x2
jax: 0.10.0
libtpu: 0.0.40
codegen_flags: <defaults>
</compile_context>

<pallas_src>
import functools
import jax
import jax.numpy as jnp
from jax.experimental import pallas as pl
from jax.experimental.pallas import tpu as pltpu  # noqa: F401  (TPU backend)

# ----------------------------- small synthetic config -----------------------------
B = 2                # batch size (1 image per sample)
C = 3                # vit_channels
IMG = 16             # vit_image_size
P = 4                # vit_patch_size
GP = IMG // P        # 4 patches per side
NP = GP * GP         # 16 patches
DV = 32              # vit_hidden_dim
HV = 2               # vit heads
HDV = DV // HV       # 16
VIT_MLP = 4 * DV     # 128
VIT_BLOCKS = 2

SF = 2                        # mp_pixel_shuffle_factor
MP_IN = DV * SF * SF          # 128
N_IMG_TOK = NP // (SF * SF)   # 4 image tokens per image after MP

VOCAB = 128
IMAGE_TOKEN_ID = 127
DL = 64              # lm_hidden_dim
HQ = 4               # lm query heads
HKV = 2              # lm kv heads (GQA)
HDL = DL // HQ       # 16
LM_INTER = 128
LM_BLOCKS = 2
T = 8                # text sequence length
ROPE_BASE = 10000.0
EPS = 1e-5

BF16 = jnp.bfloat16
F32 = jnp.float32

# ----------------------------- in-kernel math helpers -----------------------------


def _ln_f32(x, g, b):
    mu = jnp.mean(x, axis=-1, keepdims=True)
    var = jnp.mean(jnp.square(x - mu), axis=-1, keepdims=True)
    return (x - mu) * jax.lax.rsqrt(var + EPS) * g + b


def _rms_f32(x, w):
    ms = jnp.mean(jnp.square(x), axis=-1, keepdims=True)
    return x * jax.lax.rsqrt(ms + EPS) * w


def _softmax_rows(s):
    s = s - jnp.max(s, axis=-1, keepdims=True)
    p = jnp.exp(s)
    return p * pl.reciprocal(jnp.sum(p, axis=-1, keepdims=True), approx=True)


def _rope_f32(x, cos, sin):
    # x: (B, T, hd); cos/sin: (T, hd) — standard rotate_half RoPE
    hd = x.shape[-1]
    x1 = x[..., : hd // 2]
    x2 = x[..., hd // 2:]
    rot = jnp.concatenate([-x2, x1], axis=-1)
    return x * cos[None] + rot * sin[None]


# ----------------------------- fused Pallas kernels -----------------------------


def _patch_embed_kernel(p_ref, w_ref, b_ref, pos_ref, o_ref):
    Bi, S, K = p_ref.shape
    x = p_ref[...].reshape(Bi * S, K).astype(BF16)
    y = jnp.dot(x, w_ref[...], preferred_element_type=F32) + b_ref[...]
    o_ref[...] = (y.reshape(Bi, S, y.shape[-1]) + pos_ref[...]).astype(o_ref.dtype)


def _vit_block_kernel(x_ref, ln1g_ref, ln1b_ref, wq_ref, bq_ref, wk_ref, bk_ref,
                      wv_ref, bv_ref, wo_ref, bo_ref, ln2g_ref, ln2b_ref,
                      w1_ref, b1_ref, w2_ref, b2_ref, o_ref,
                      *, nheads, head_dim, scale):
    Bi, S, D = x_ref.shape
    x = x_ref[...].reshape(Bi * S, D)

    # ---- pre-LN + fused QKV ----
    h = _ln_f32(x, ln1g_ref[...], ln1b_ref[...]).astype(BF16)
    q = (jnp.dot(h, wq_ref[...], preferred_element_type=F32) + bq_ref[...]).reshape(Bi, S, D)
    k = (jnp.dot(h, wk_ref[...], preferred_element_type=F32) + bk_ref[...]).reshape(Bi, S, D)
    v = (jnp.dot(h, wv_ref[...], preferred_element_type=F32) + bv_ref[...]).reshape(Bi, S, D)

    # ---- multi-head attention, heads as lane slices (no mask: full bidirectional) ----
    heads = []
    for hh in range(nheads):
        lo, hi = hh * head_dim, (hh + 1) * head_dim
        qh = (q[:, :, lo:hi] * scale).astype(BF16)
        kh = k[:, :, lo:hi].astype(BF16)
        vh = v[:, :, lo:hi].astype(BF16)
        s = jnp.einsum("bqd,bkd->bqk", qh, kh, preferred_element_type=F32)
        p = _softmax_rows(s).astype(BF16)
        heads.append(jnp.einsum("bqk,bkd->bqd", p, vh, preferred_element_type=F32))
    attn = jnp.concatenate(heads, axis=-1).reshape(Bi * S, D).astype(BF16)

    x = x + jnp.dot(attn, wo_ref[...], preferred_element_type=F32) + bo_ref[...]

    # ---- pre-LN + GELU MLP ----
    h2 = _ln_f32(x, ln2g_ref[...], ln2b_ref[...]).astype(BF16)
    m = jnp.dot(h2, w1_ref[...], preferred_element_type=F32) + b1_ref[...]
    m = jax.nn.gelu(m, approximate=True).astype(BF16)
    x = x + jnp.dot(m, w2_ref[...], preferred_element_type=F32) + b2_ref[...]

    o_ref[...] = x.reshape(Bi, S, D).astype(o_ref.dtype)


def _mp_kernel(x_ref, g_ref, b_ref, w_ref, o_ref, *, chunks, chunk_dim):
    # Fused: ViT final LayerNorm (per original-token DV chunk of the already
    # pixel-shuffled rows) + ModalityProjector linear (bias-free).
    x = x_ref[...]
    g = g_ref[...]
    b = b_ref[...]
    pieces = []
    for c in range(chunks):
        pieces.append(_ln_f32(x[:, c * chunk_dim:(c + 1) * chunk_dim], g, b))
    y = jnp.concatenate(pieces, axis=-1).astype(BF16)
    o_ref[...] = jnp.dot(y, w_ref[...], preferred_element_type=F32).astype(o_ref.dtype)


def _lm_block_kernel(x_ref, mask_ref, cos_ref, sin_ref, rms1_ref,
                     wq_ref, wk_ref, wv_ref, wo_ref, rms2_ref,
                     wg_ref, wu_ref, wd_ref, rmsf_ref, o_ref,
                     *, n_q, n_kv, head_dim, scale, apply_final):
    Bt, S, D = x_ref.shape
    x = x_ref[...].reshape(Bt * S, D)
    cos = cos_ref[...]
    sin = sin_ref[...]
    mask = mask_ref[...]

    # ---- RMSNorm + fused QKV (bias-free) ----
    h = _rms_f32(x, rms1_ref[...]).astype(BF16)
    q = jnp.dot(h, wq_ref[...], preferred_element_type=F32).reshape(Bt, S, n_q * head_dim)
    k = jnp.dot(h, wk_ref[...], preferred_element_type=F32).reshape(Bt, S, n_kv * head_dim)
    v = jnp.dot(h, wv_ref[...], preferred_element_type=F32).reshape(Bt, S, n_kv * head_dim)

    # ---- GQA attention with in-kernel RoPE, heads as lane slices ----
    group = n_q // n_kv
    heads = []
    for hq in range(n_q):
        hk = hq // group
        qh = _rope_f32(q[:, :, hq * head_dim:(hq + 1) * head_dim], cos, sin) * scale
        kh = _rope_f32(k[:, :, hk * head_dim:(hk + 1) * head_dim], cos, sin)
        vh = v[:, :, hk * head_dim:(hk + 1) * head_dim].astype(BF16)
        s = jnp.einsum("bqd,bkd->bqk", qh.astype(BF16), kh.astype(BF16),
                       preferred_element_type=F32) + mask
        p = _softmax_rows(s).astype(BF16)
        heads.append(jnp.einsum("bqk,bkd->bqd", p, vh, preferred_element_type=F32))
    attn = jnp.concatenate(heads, axis=-1).reshape(Bt * S, n_q * head_dim).astype(BF16)

    x = x + jnp.dot(attn, wo_ref[...], preferred_element_type=F32)

    # ---- RMSNorm + gated (SiLU) MLP ----
    h2 = _rms_f32(x, rms2_ref[...]).astype(BF16)
    g = jnp.dot(h2, wg_ref[...], preferred_element_type=F32)
    u = jnp.dot(h2, wu_ref[...], preferred_element_type=F32)
    m = ((g * jax.nn.sigmoid(g)) * u).astype(BF16)
    x = x + jnp.dot(m, wd_ref[...], preferred_element_type=F32)

    if apply_final:  # final decoder RMSNorm folded into last block
        x = _rms_f32(x, rmsf_ref[...])

    o_ref[...] = x.reshape(Bt, S, D).astype(o_ref.dtype)


# ----------------------------- pallas_call wrappers -----------------------------


def _full_spec(shape):
    rank = len(shape)
    if rank == 2:
        return pl.BlockSpec(shape, lambda i: (0, 0))
    if rank == 3:
        return pl.BlockSpec(shape, lambda i: (0, 0, 0))
    raise ValueError(f"unsupported rank for {shape}")


def _call_fused(kernel, args, out_shape):
    return pl.pallas_call(
        kernel,
        out_shape=jax.ShapeDtypeStruct(tuple(out_shape), F32),
        grid=(1,),
        in_specs=[_full_spec(a.shape) for a in args],
        out_specs=_full_spec(tuple(out_shape)),
    )(*args)


def patch_embed(patches, w, b, pos):
    Bi = patches.shape[0]
    return _call_fused(_patch_embed_kernel, [patches, w, b, pos], (Bi, NP, DV))


def vit_block(x, blk):
    kernel = functools.partial(_vit_block_kernel, nheads=HV, head_dim=HDV,
                               scale=1.0 / (HDV ** 0.5))
    args = [x, blk["ln1_g"], blk["ln1_b"], blk["wq"], blk["bq"], blk["wk"], blk["bk"],
            blk["wv"], blk["bv"], blk["wo"], blk["bo"], blk["ln2_g"], blk["ln2_b"],
            blk["w1"], blk["b1"], blk["w2"], blk["b2"]]
    return _call_fused(kernel, args, x.shape)


def lm_block(x, mask, cos, sin, blk, rmsf, apply_final):
    kernel = functools.partial(_lm_block_kernel, n_q=HQ, n_kv=HKV, head_dim=HDL,
                               scale=1.0 / (HDL ** 0.5), apply_final=apply_final)
    args = [x, mask, cos, sin, blk["rms1"], blk["wq"], blk["wk"], blk["wv"], blk["wo"],
            blk["rms2"], blk["wg"], blk["wu"], blk["wd"], rmsf]
    return _call_fused(kernel, args, x.shape)


def project_image_features(vit_p, mp_p, x):
    # pixel shuffle (pure layout, in JAX) -> fused [ViT final LN + MP linear] kernel
    Bi, S, D = x.shape
    gr = int(S ** 0.5)
    ho = wo_ = gr // SF
    xs = x.reshape(Bi, gr, gr, D).reshape(Bi, ho, SF, wo_, SF, D)
    xs = xs.transpose(0, 1, 3, 2, 4, 5).reshape(Bi * ho * wo_, D * SF * SF)
    kernel = functools.partial(_mp_kernel, chunks=SF * SF, chunk_dim=D)
    y = _call_fused(kernel, [xs, vit_p["lnf_g"], vit_p["lnf_b"], mp_p["mp_w"]],
                    (Bi * ho * wo_, DL))
    return y.reshape(Bi, ho * wo_, DL)


# ----------------------------- model components -----------------------------


def vit_forward(p, images):
    Bi = images.shape[0]
    # conv(kernel=stride=P) as a patch matmul; patch features in (c, kh, kw) order
    x = images.reshape(Bi, C, GP, P, GP, P)
    x = x.transpose(0, 2, 4, 1, 3, 5).reshape(Bi, NP, C * P * P)
    x = patch_embed(x, p["patch_w"], p["patch_b"], p["pos_emb"])
    for blk in p["blocks"]:
        x = vit_block(x, blk)
    return x  # final LayerNorm is fused into the modality-projector kernel


def rope_cos_sin(t, hd, base=ROPE_BASE):
    inv = 1.0 / (base ** (jnp.arange(0, hd, 2, dtype=F32) / hd))
    ang = jnp.arange(t, dtype=F32)[:, None] * inv[None, :]
    cos = jnp.concatenate([jnp.cos(ang), jnp.cos(ang)], axis=-1)
    sin = jnp.concatenate([jnp.sin(ang), jnp.sin(ang)], axis=-1)
    return cos, sin  # (t, hd)


def decoder_forward(p, x, attn_mask):
    Bt, Tt, D = x.shape
    causal = jnp.tril(jnp.ones((Tt, Tt), F32))
    keep = causal[None, :, :] * attn_mask.astype(F32)[:, None, :]
    add_mask = jnp.where(keep > 0, 0.0, -1e9).astype(F32)       # (B, T, T)
    cos, sin = rope_cos_sin(Tt, HDL)
    nblk = len(p["blocks"])
    for li, blk in enumerate(p["blocks"]):
        x = lm_block(x, add_mask, cos, sin, blk, p["rmsf"], apply_final=(li == nblk - 1))
    return x


def vlm_forward(params, input_ids, images, attention_mask=None, targets=None):
    image_embd = vit_forward(params["vit"], images)
    image_embd = project_image_features(params["vit"], params["mp"], image_embd)
    token_embd = params["lm"]["tok_emb"][input_ids]
    # _replace_img_tokens_with_embd: row-major masked assign, exact torch semantics
    mask = (input_ids == IMAGE_TOKEN_ID)
    img_flat = image_embd.reshape(-1, DL)
    mask_flat = mask.reshape(-1)
    idx = jnp.clip(jnp.cumsum(mask_flat.astype(jnp.int32)) - 1, 0, img_flat.shape[0] - 1)
    gathered = img_flat[idx].reshape(token_embd.shape)
    updated = jnp.where(mask[..., None], gathered, token_embd)
    if attention_mask is None:
        attention_mask = jnp.ones(input_ids.shape, jnp.int32)
    logits = decoder_forward(params["lm"], updated, attention_mask)
    loss = None
    # TODO(synk): lm head + cross-entropy path only runs when targets is not None (not exercised here).
    return logits, loss


# ----------------------------- deterministic parameter init -----------------------------


def init_params(key):
    keys = iter(jax.random.split(key, 128))

    def nrm(shape, dtype=F32, scale=0.02):
        w = scale * jax.random.normal(next(keys), shape, dtype=F32)
        return w.astype(dtype)

    bf = BF16  # matmul weights stored in bf16 (f32 accumulation in-kernel)

    vit_blocks = []
    for _ in range(VIT_BLOCKS):
        vit_blocks.append(dict(
            ln1_g=jnp.ones((1, DV), F32), ln1_b=jnp.zeros((1, DV), F32),
            wq=nrm((DV, DV), bf), bq=nrm((1, DV)),
            wk=nrm((DV, DV), bf), bk=nrm((1, DV)),
            wv=nrm((DV, DV), bf), bv=nrm((1, DV)),
            wo=nrm((DV, DV), bf), bo=nrm((1, DV)),
            ln2_g=jnp.ones((1, DV), F32), ln2_b=jnp.zeros((1, DV), F32),
            w1=nrm((DV, VIT_MLP), bf), b1=nrm((1, VIT_MLP)),
            w2=nrm((VIT_MLP, DV), bf), b2=nrm((1, DV)),
        ))
    vit = dict(
        patch_w=nrm((C * P * P, DV), bf), patch_b=nrm((1, DV)),
        pos_emb=nrm((1, NP, DV)),
        blocks=vit_blocks,
        lnf_g=jnp.ones((1, DV), F32), lnf_b=jnp.zeros((1, DV), F32),
    )

    mp = dict(mp_w=nrm((MP_IN, DL), bf))

    lm_blocks = []
    for _ in range(LM_BLOCKS):
        lm_blocks.append(dict(
            rms1=jnp.ones((1, DL), F32),
            wq=nrm((DL, HQ * HDL), bf), wk=nrm((DL, HKV * HDL), bf), wv=nrm((DL, HKV * HDL), bf),
            wo=nrm((HQ * HDL, DL), bf),
            rms2=jnp.ones((1, DL), F32),
            wg=nrm((DL, LM_INTER), bf), wu=nrm((DL, LM_INTER), bf), wd=nrm((LM_INTER, DL), bf),
        ))
    lm = dict(
        tok_emb=nrm((VOCAB, DL)),
        blocks=lm_blocks,
        rmsf=jnp.ones((1, DL), F32),
    )
    return dict(vit=vit, mp=mp, lm=lm)


# ----------------------------- main -----------------------------

if __name__ == "__main__":
    key = jax.random.PRNGKey(0)
    pk, ik, tk = jax.random.split(key, 3)
    params = init_params(pk)

    images = jax.random.normal(ik, (B, C, IMG, IMG), dtype=F32)   # NCHW like torch
    text_ids = jax.random.randint(tk, (B, T - N_IMG_TOK), 0, 100, dtype=jnp.int32)
    img_ids = jnp.full((B, N_IMG_TOK), IMAGE_TOKEN_ID, dtype=jnp.int32)
    input_ids = jnp.concatenate([img_ids, text_ids], axis=1)       # (B, T)
    attention_mask = jnp.ones((B, T), jnp.int32)

    fwd = jax.jit(vlm_forward)
    logits, loss = fwd(params, input_ids, images, attention_mask)
    logits = jax.block_until_ready(logits)
    assert logits.shape == (B, T, DL), logits.shape
    assert loss is None
    print("KERNEL_OK")
</pallas_src>

<mosaic_0001>
module attributes {stable_mosaic.version = 11 : i64} {
  func.func @_patch_embed_kernel(%arg0: i32, %arg1: memref<2x16x48xf32, #tpu.memory_space<vmem>>, %arg2: memref<48x32xbf16, #tpu.memory_space<vmem>>, %arg3: memref<1x32xf32, #tpu.memory_space<vmem>>, %arg4: memref<1x16x32xf32, #tpu.memory_space<vmem>>, %arg5: memref<2x16x32xf32, #tpu.memory_space<vmem>>) attributes {dimension_semantics = [#tpu.dimension_semantics<arbitrary>], iteration_bounds = array<i64: 1>, scalar_prefetch = 0 : i64, scratch_operands = 0 : i64, tpu.core_type = #tpu.core_type<tc>, window_params = [{pipeline_mode = #tpu.pipeline_mode<synchronous>, transform_indices = @transform_0, window_bounds = array<i64: 2, 16, 48>}, {pipeline_mode = #tpu.pipeline_mode<synchronous>, transform_indices = @transform_1, window_bounds = array<i64: 48, 32>}, {pipeline_mode = #tpu.pipeline_mode<synchronous>, transform_indices = @transform_2, window_bounds = array<i64: 1, 32>}, {pipeline_mode = #tpu.pipeline_mode<synchronous>, transform_indices = @transform_3, window_bounds = array<i64: 1, 16, 32>}, {pipeline_mode = #tpu.pipeline_mode<synchronous>, transform_indices = @transform_4, window_bounds = array<i64: 2, 16, 32>}]} {
    %c0 = arith.constant 0 : index
    %c0_0 = arith.constant 0 : index
    %c0_1 = arith.constant 0 : index
    %0 = vector.load %arg1[%c0, %c0_0, %c0_1] : memref<2x16x48xf32, #tpu.memory_space<vmem>>, vector<2x16x48xf32>
    %1 = vector.shape_cast %0 : vector<2x16x48xf32> to vector<32x48xf32>
    %2 = arith.truncf %1 : vector<32x48xf32> to vector<32x48xbf16>
    %c0_2 = arith.constant 0 : index
    %c0_3 = arith.constant 0 : index
    %3 = vector.load %arg2[%c0_2, %c0_3] : memref<48x32xbf16, #tpu.memory_space<vmem>>, vector<48x32xbf16>
    %cst = arith.constant dense<0.000000e+00> : vector<32x32xf32>
    %4 = tpu.matmul %2, %3, %cst {dimension_numbers = #tpu.dot_dimension_numbers<[1], [0], [0], [1], [0, 0, 1, 1], [], []>} : vector<32x48xbf16>, vector<48x32xbf16>, vector<32x32xf32> -> vector<32x32xf32>
    %c0_4 = arith.constant 0 : index
    %c0_5 = arith.constant 0 : index
    %5 = vector.load %arg3[%c0_4, %c0_5] : memref<1x32xf32, #tpu.memory_space<vmem>>, vector<1x32xf32>
    %6 = vector.broadcast %5 : vector<1x32xf32> to vector<32x32xf32>
    %7 = arith.addf %4, %6 : vector<32x32xf32>
    %8 = vector.shape_cast %7 : vector<32x32xf32> to vector<2x16x32xf32>
    %c0_6 = arith.constant 0 : index
    %c0_7 = arith.constant 0 : index
    %c0_8 = arith.constant 0 : index
    %9 = vector.load %arg4[%c0_6, %c0_7, %c0_8] : memref<1x16x32xf32, #tpu.memory_space<vmem>>, vector<1x16x32xf32>
    %10 = vector.broadcast %9 : vector<1x16x32xf32> to vector<2x16x32xf32>
    %11 = arith.addf %8, %10 : vector<2x16x32xf32>
    %c0_9 = arith.constant 0 : index
    %c0_10 = arith.constant 0 : index
    %c0_11 = arith.constant 0 : index
    %12 = vector.load %arg5[%c0_9, %c0_10, %c0_11] : memref<2x16x32xf32, #tpu.memory_space<vmem>>, vector<2x16x32xf32>
    tpu.vector_store %arg5[%c0_9, %c0_10, %c0_11], %11 {strides = array<i32>} : memref<2x16x32xf32, #tpu.memory_space<vmem>>, vector<2x16x32xf32>,
    return
  }
  func.func @transform_0(%arg0: i32) -> (i32, i32, i32) {
    %c0_i32 = arith.constant 0 : i32
    %c0_i32_0 = arith.constant 0 : i32
    %c0_i32_1 = arith.constant 0 : i32
    %c0_i32_2 = arith.constant 0 : i32
    return %c0_i32, %c0_i32_0, %c0_i32_1 : i32, i32, i32
  }
  func.func @transform_1(%arg0: i32) -> (i32, i32) {
    %c0_i32 = arith.constant 0 : i32
    %c0_i32_0 = arith.constant 0 : i32
    %c0_i32_1 = arith.constant 0 : i32
    return %c0_i32, %c0_i32_0 : i32, i32
  }
  func.func @transform_2(%arg0: i32) -> (i32, i32) {
    %c0_i32 = arith.constant 0 : i32
    %c0_i32_0 = arith.constant 0 : i32
    %c0_i32_1 = arith.constant 0 : i32
    return %c0_i32, %c0_i32_0 : i32, i32
  }
  func.func @transform_3(%arg0: i32) -> (i32, i32, i32) {
    %c0_i32 = arith.constant 0 : i32
    %c0_i32_0 = arith.constant 0 : i32
    %c0_i32_1 = arith.constant 0 : i32
    %c0_i32_2 = arith.constant 0 : i32
    return %c0_i32, %c0_i32_0, %c0_i32_1 : i32, i32, i32
  }
  func.func @transform_4(%arg0: i32) -> (i32, i32, i32) {
    %c0_i32 = arith.constant 0 : i32
    %c0_i32_0 = arith.constant 0 : i32
    %c0_i32_1 = arith.constant 0 : i32
    %c0_i32_2 = arith.constant 0 : i32
    return %c0_i32, %c0_i32_0, %c0_i32_1 : i32, i32, i32
  }
}

module attributes {stable_mosaic.version = 11 : i64} {
  func.func @_mp_kernel(%arg0: i32, %arg1: memref<8x128xf32, #tpu.memory_space<vmem>>, %arg2: memref<1x32xf32, #tpu.memory_space<vmem>>, %arg3: memref<1x32xf32, #tpu.memory_space<vmem>>, %arg4: memref<128x64xbf16, #tpu.memory_space<vmem>>, %arg5: memref<8x64xf32, #tpu.memory_space<vmem>>) attributes {dimension_semantics = [#tpu.dimension_semantics<arbitrary>], iteration_bounds = array<i64: 1>, scalar_prefetch = 0 : i64, scratch_operands = 0 : i64, tpu.core_type = #tpu.core_type<tc>, window_params = [{pipeline_mode = #tpu.pipeline_mode<synchronous>, transform_indices = @transform_0, window_bounds = array<i64: 8, 128>}, {pipeline_mode = #tpu.pipeline_mode<synchronous>, transform_indices = @transform_1, window_bounds = array<i64: 1, 32>}, {pipeline_mode = #tpu.pipeline_mode<synchronous>, transform_indices = @transform_2, window_bounds = array<i64: 1, 32>}, {pipeline_mode = #tpu.pipeline_mode<synchronous>, transform_indices = @transform_3, window_bounds = array<i64: 128, 64>}, {pipeline_mode = #tpu.pipeline_mode<synchronous>, transform_indices = @transform_4, window_bounds = array<i64: 8, 64>}]} {
    %c0 = arith.constant 0 : index
    %c0_0 = arith.constant 0 : index
    %0 = vector.load %arg1[%c0, %c0_0] : memref<8x128xf32, #tpu.memory_space<vmem>>, vector<8x128xf32>
    %c0_1 = arith.constant 0 : index
    %c0_2 = arith.constant 0 : index
    %1 = vector.load %arg2[%c0_1, %c0_2] : memref<1x32xf32, #tpu.memory_space<vmem>>, vector<1x32xf32>
    %c0_3 = arith.constant 0 : index
    %c0_4 = arith.constant 0 : index
    %2 = vector.load %arg3[%c0_3, %c0_4] : memref<1x32xf32, #tpu.memory_space<vmem>>, vector<1x32xf32>
    %3 = vector.extract_strided_slice %0 {offsets = [0, 0], sizes = [8, 32], strides = [1, 1]} : vector<8x128xf32> to vector<8x32xf32>
    %cst = arith.constant dense<0.000000e+00> : vector<8xf32>
    %4 = vector.multi_reduction <add>, %3, %cst [1] : vector<8x32xf32> to vector<8xf32>
    %5 = vector.shape_cast %4 : vector<8xf32> to vector<8x1xf32>
    %cst_5 = arith.constant 3.200000e+01 : f32
    %6 = vector.broadcast %cst_5 : f32 to vector<8x1xf32>
    %7 = arith.divf %5, %6 : vector<8x1xf32>
    %8 = vector.broadcast %7 : vector<8x1xf32> to vector<8x32xf32>
    %9 = arith.subf %3, %8 : vector<8x32xf32>
    %10 = arith.mulf %9, %9 : vector<8x32xf32>
    %cst_6 = arith.constant dense<0.000000e+00> : vector<8xf32>
    %11 = vector.multi_reduction <add>, %10, %cst_6 [1] : vector<8x32xf32> to vector<8xf32>
    %12 = vector.shape_cast %11 : vector<8xf32> to vector<8x1xf32>
    %cst_7 = arith.constant 3.200000e+01 : f32
    %13 = vector.broadcast %cst_7 : f32 to vector<8x1xf32>
    %14 = arith.divf %12, %13 : vector<8x1xf32>
    %15 = vector.broadcast %7 : vector<8x1xf32> to vector<8x32xf32>
    %16 = arith.subf %3, %15 : vector<8x32xf32>
    %cst_8 = arith.constant 9.99999974E-6 : f32
    %17 = vector.broadcast %cst_8 : f32 to vector<8x1xf32>
    %18 = arith.addf %14, %17 : vector<8x1xf32>
    %19 = math.rsqrt %18 : vector<8x1xf32>
    %20 = vector.broadcast %19 : vector<8x1xf32> to vector<8x32xf32>
    %21 = arith.mulf %16, %20 : vector<8x32xf32>
    %22 = vector.broadcast %1 : vector<1x32xf32> to vector<8x32xf32>
    %23 = arith.mulf %21, %22 : vector<8x32xf32>
    %24 = vector.broadcast %2 : vector<1x32xf32> to vector<8x32xf32>
    %25 = arith.addf %23, %24 : vector<8x32xf32>
    %26 = vector.extract_strided_slice %0 {offsets = [0, 32], sizes = [8, 32], strides = [1, 1]} : vector<8x128xf32> to vector<8x32xf32>
    %cst_9 = arith.constant dense<0.000000e+00> : vector<8xf32>
    %27 = vector.multi_reduction <add>, %26, %cst_9 [1] : vector<8x32xf32> to vector<8xf32>
    %28 = vector.shape_cast %27 : vector<8xf32> to vector<8x1xf32>
    %cst_10 = arith.constant 3.200000e+01 : f32
    %29 = vector.broadcast %cst_10 : f32 to vector<8x1xf32>
    %30 = arith.divf %28, %29 : vector<8x1xf32>
    %31 = vector.broadcast %30 : vector<8x1xf32> to vector<8x32xf32>
    %32 = arith.subf %26, %31 : vector<8x32xf32>
    %33 = arith.mulf %32, %32 : vector<8x32xf32>
    %cst_11 = arith.constant dense<0.000000e+00> : vector<8xf32>
    %34 = vector.multi_reduction <add>, %33, %cst_11 [1] : vector<8x32xf32> to vector<8xf32>
    %35 = vector.shape_cast %34 : vector<8xf32> to vector<8x1xf32>
    %cst_12 = arith.constant 3.200000e+01 : f32
    %36 = vector.broadcast %cst_12 : f32 to vector<8x1xf32>
    %37 = arith.divf %35, %36 : vector<8x1xf32>
    %38 = vector.broadcast %30 : vector<8x1xf32> to vector<8x32xf32>
    %39 = arith.subf %26, %38 : vector<8x32xf32>
    %cst_13 = arith.constant 9.99999974E-6 : f32
    %40 = vector.broadcast %cst_13 : f32 to vector<8x1xf32>
    %41 = arith.addf %37, %40 : vector<8x1xf32>
    %42 = math.rsqrt %41 : vector<8x1xf32>
    %43 = vector.broadcast %42 : vector<8x1xf32> to vector<8x32xf32>
    %44 = arith.mulf %39, %43 : vector<8x32xf32>
    %45 = vector.broadcast %1 : vector<1x32xf32> to vector<8x32xf32>
    %46 = arith.mulf %44, %45 : vector<8x32xf32>
    %47 = vector.broadcast %2 : vector<1x32xf32> to vector<8x32xf32>
    %48 = arith.addf %46, %47 : vector<8x32xf32>
    %49 = vector.extract_strided_slice %0 {offsets = [0, 64], sizes = [8, 32], strides = [1, 1]} : vector<8x128xf32> to vector<8x32xf32>
    %cst_14 = arith.constant dense<0.000000e+00> : vector<8xf32>
    %50 = vector.multi_reduction <add>, %49, %cst_14 [1] : vector<8x32xf32> to vector<8xf32>
    %51 = vector.shape_cast %50 : vector<8xf32> to vector<8x1xf32>
    %cst_15 = arith.constant 3.200000e+01 : f32
    %52 = vector.broadcast %cst_15 : f32 to vector<8x1xf32>
    %53 = arith.divf %51, %52 : vector<8x1xf32>
    %54 = vector.broadcast %53 : vector<8x1xf32> to vector<8x32xf32>
    %55 = arith.subf %49, %54 : vector<8x32xf32>
    %56 = arith.mulf %55, %55 : vector<8x32xf32>
    %cst_16 = arith.constant dense<0.000000e+00> : vector<8xf32>
    %57 = vector.multi_reduction <add>, %56, %cst_16 [1] : vector<8x32xf32> to vector<8xf32>
    %58 = vector.shape_cast %57 : vector<8xf32> to vector<8x1xf32>
    %cst_17 = arith.constant 3.200000e+01 : f32
    %59 = vector.broadcast %cst_17 : f32 to vector<8x1xf32>
    %60 = arith.divf %58, %59 : vector<8x1xf32>
    %61 = vector.broadcast %53 : vector<8x1xf32> to vector<8x32xf32>
    %62 = arith.subf %49, %61 : vector<8x32xf32>
    %cst_18 = arith.constant 9.99999974E-6 : f32
    %63 = vector.broadcast %cst_18 : f32 to vector<8x1xf32>
    %64 = arith.addf %60, %63 : vector<8x1xf32>
    %65 = math.rsqrt %64 : vector<8x1xf32>
    %66 = vector.broadcast %65 : vector<8x1xf32> to vector<8x32xf32>
    %67 = arith.mulf %62, %66 : vector<8x32xf32>
    %68 = vector.broadcast %1 : vector<1x32xf32> to vector<8x32xf32>
    %69 = arith.mulf %67, %68 : vector<8x32xf32>
    %70 = vector.broadcast %2 : vector<1x32xf32> to vector<8x32xf32>
    %71 = arith.addf %69, %70 : vector<8x32xf32>
    %72 = vector.extract_strided_slice %0 {offsets = [0, 96], sizes = [8, 32], strides = [1, 1]} : vector<8x128xf32> to vector<8x32xf32>
    %cst_19 = arith.constant dense<0.000000e+00> : vector<8xf32>
    %73 = vector.multi_reduction <add>, %72, %cst_19 [1] : vector<8x32xf32> to vector<8xf32>
    %74 = vector.shape_cast %73 : vector<8xf32> to vector<8x1xf32>
    %cst_20 = arith.constant 3.200000e+01 : f32
    %75 = vector.broadcast %cst_20 : f32 to vector<8x1xf32>
    %76 = arith.divf %74, %75 : vector<8x1xf32>
    %77 = vector.broadcast %76 : vector<8x1xf32> to vector<8x32xf32>
    %78 = arith.subf %72, %77 : vector<8x32xf32>
    %79 = arith.mulf %78, %78 : vector<8x32xf32>
    %cst_21 = arith.constant dense<0.000000e+00> : vector<8xf32>
    %80 = vector.multi_reduction <add>, %79, %cst_21 [1] : vector<8x32xf32> to vector<8xf32>
    %81 = vector.shape_cast %80 : vector<8xf32> to vector<8x1xf32>
    %cst_22 = arith.constant 3.200000e+01 : f32
    %82 = vector.broadcast %cst_22 : f32 to vector<8x1xf32>
    %83 = arith.divf %81, %82 : vector<8x1xf32>
    %84 = vector.broadcast %76 : vector<8x1xf32> to vector<8x32xf32>
    %85 = arith.subf %72, %84 : vector<8x32xf32>
    %cst_23 = arith.constant 9.99999974E-6 : f32
    %86 = vector.broadcast %cst_23 : f32 to vector<8x1xf32>
    %87 = arith.addf %83, %86 : vector<8x1xf32>
    %88 = math.rsqrt %87 : vector<8x1xf32>
    %89 = vector.broadcast %88 : vector<8x1xf32> to vector<8x32xf32>
    %90 = arith.mulf %85, %89 : vector<8x32xf32>
    %91 = vector.broadcast %1 : vector<1x32xf32> to vector<8x32xf32>
    %92 = arith.mulf %90, %91 : vector<8x32xf32>
    %93 = vector.broadcast %2 : vector<1x32xf32> to vector<8x32xf32>
    %94 = arith.addf %92, %93 : vector<8x32xf32>
    %95 = tpu.concatenate %25, %48, %71, %94 in 1 : vector<8x32xf32>, vector<8x32xf32>, vector<8x32xf32>, vector<8x32xf32> -> vector<8x128xf32>
    %96 = arith.truncf %95 : vector<8x128xf32> to vector<8x128xbf16>
    %c0_24 = arith.constant 0 : index
    %c0_25 = arith.constant 0 : index
    %97 = vector.load %arg4[%c0_24, %c0_25] : memref<128x64xbf16, #tpu.memory_space<vmem>>, vector<128x64xbf16>
    %cst_26 = arith.constant dense<0.000000e+00> : vector<8x64xf32>
    %98 = tpu.matmul %96, %97, %cst_26 {dimension_numbers = #tpu.dot_dimension_numbers<[1], [0], [0], [1], [0, 0, 1, 1], [], []>} : vector<8x128xbf16>, vector<128x64xbf16>, vector<8x64xf32> -> vector<8x64xf32>
    %c0_27 = arith.constant 0 : index
    %c0_28 = arith.constant 0 : index
    %99 = vector.load %arg5[%c0_27, %c0_28] : memref<8x64xf32, #tpu.memory_space<vmem>>, vector<8x64xf32>
    tpu.vector_store %arg5[%c0_27, %c0_28], %98 {strides = array<i32>} : memref<8x64xf32, #tpu.memory_space<vmem>>, vector<8x64xf32>,
    return
  }
  func.func @transform_0(%arg0: i32) -> (i32, i32) {
    %c0_i32 = arith.constant 0 : i32
    %c0_i32_0 = arith.constant 0 : i32
    %c0_i32_1 = arith.constant 0 : i32
    return %c0_i32, %c0_i32_0 : i32, i32
  }
  func.func @transform_1(%arg0: i32) -> (i32, i32) {
    %c0_i32 = arith.constant 0 : i32
    %c0_i32_0 = arith.constant 0 : i32
    %c0_i32_1 = arith.constant 0 : i32
    return %c0_i32, %c0_i32_0 : i32, i32
  }
  func.func @transform_2(%arg0: i32) -> (i32, i32) {
    %c0_i32 = arith.constant 0 : i32
    %c0_i32_0 = arith.constant 0 : i32
    %c0_i32_1 = arith.constant 0 : i32
    return %c0_i32, %c0_i32_0 : i32, i32
  }
  func.func @transform_3(%arg0: i32) -> (i32, i32) {
    %c0_i32 = arith.constant 0 : i32
    %c0_i32_0 = arith.constant 0 : i32
    %c0_i32_1 = arith.constant 0 : i32
    return %c0_i32, %c0_i32_0 : i32, i32
  }
  func.func @transform_4(%arg0: i32) -> (i32, i32) {
    %c0_i32 = arith.constant 0 : i32
    %c0_i32_0 = arith.constant 0 : i32
    %c0_i32_1 = arith.constant 0 : i32
    return %c0_i32, %c0_i32_0 : i32, i32
  }
}

module attributes {stable_mosaic.version = 11 : i64} {
  func.func @_vit_block_kernel(%arg0: i32, %arg1: memref<2x16x32xf32, #tpu.memory_space<vmem>>, %arg2: memref<1x32xf32, #tpu.memory_space<vmem>>, %arg3: memref<1x32xf32, #tpu.memory_space<vmem>>, %arg4: memref<32x32xbf16, #tpu.memory_space<vmem>>, %arg5: memref<1x32xf32, #tpu.memory_space<vmem>>, %arg6: memref<32x32xbf16, #tpu.memory_space<vmem>>, %arg7: memref<1x32xf32, #tpu.memory_space<vmem>>, %arg8: memref<32x32xbf16, #tpu.memory_space<vmem>>, %arg9: memref<1x32xf32, #tpu.memory_space<vmem>>, %arg10: memref<32x32xbf16, #tpu.memory_space<vmem>>, %arg11: memref<1x32xf32, #tpu.memory_space<vmem>>, %arg12: memref<1x32xf32, #tpu.memory_space<vmem>>, %arg13: memref<1x32xf32, #tpu.memory_space<vmem>>, %arg14: memref<32x128xbf16, #tpu.memory_space<vmem>>, %arg15: memref<1x128xf32, #tpu.memory_space<vmem>>, %arg16: memref<128x32xbf16, #tpu.memory_space<vmem>>, %arg17: memref<1x32xf32, #tpu.memory_space<vmem>>, %arg18: memref<2x16x32xf32, #tpu.memory_space<vmem>>) attributes {dimension_semantics = [#tpu.dimension_semantics<arbitrary>], iteration_bounds = array<i64: 1>, scalar_prefetch = 0 : i64, scratch_operands = 0 : i64, tpu.core_type = #tpu.core_type<tc>, window_params = [{pipeline_mode = #tpu.pipeline_mode<synchronous>, transform_indices = @transform_0, window_bounds = array<i64: 2, 16, 32>}, {pipeline_mode = #tpu.pipeline_mode<synchronous>, transform_indices = @transform_1, window_bounds = array<i64: 1, 32>}, {pipeline_mode = #tpu.pipeline_mode<synchronous>, transform_indices = @transform_2, window_bounds = array<i64: 1, 32>}, {pipeline_mode = #tpu.pipeline_mode<synchronous>, transform_indices = @transform_3, window_bounds = array<i64: 32, 32>}, {pipeline_mode = #tpu.pipeline_mode<synchronous>, transform_indices = @transform_4, window_bounds = array<i64: 1, 32>}, {pipeline_mode = #tpu.pipeline_mode<synchronous>, transform_indices = @transform_5, window_bounds = array<i64: 32, 32>}, {pipeline_mode = #tpu.pipeline_mode<synchronous>, transform_indices = @transform_6, window_bounds = array<i64: 1, 32>}, {pipeline_mode = #tpu.pipeline_mode<synchronous>, transform_indices = @transform_7, window_bounds = array<i64: 32, 32>}, {pipeline_mode = #tpu.pipeline_mode<synchronous>, transform_indices = @transform_8, window_bounds = array<i64: 1, 32>}, {pipeline_mode = #tpu.pipeline_mode<synchronous>, transform_indices = @transform_9, window_bounds = array<i64: 32, 32>}, {pipeline_mode = #tpu.pipeline_mode<synchronous>, transform_indices = @transform_10, window_bounds = array<i64: 1, 32>}, {pipeline_mode = #tpu.pipeline_mode<synchronous>, transform_indices = @transform_11, window_bounds = array<i64: 1, 32>}, {pipeline_mode = #tpu.pipeline_mode<synchronous>, transform_indices = @transform_12, window_bounds = array<i64: 1, 32>}, {pipeline_mode = #tpu.pipeline_mode<synchronous>, transform_indices = @transform_13, window_bounds = array<i64: 32, 128>}, {pipeline_mode = #tpu.pipeline_mode<synchronous>, transform_indices = @transform_14, window_bounds = array<i64: 1, 128>}, {pipeline_mode = #tpu.pipeline_mode<synchronous>, transform_indices = @transform_15, window_bounds = array<i64: 128, 32>}, {pipeline_mode = #tpu.pipeline_mode<synchronous>, transform_indices = @transform_16, window_bounds = array<i64: 1, 32>}, {pipeline_mode = #tpu.pipeline_mode<synchronous>, transform_indices = @transform_17, window_bounds = array<i64: 2, 16, 32>}]} {
    %c0 = arith.constant 0 : index
    %c0_0 = arith.constant 0 : index
    %c0_1 = arith.constant 0 : index
    %0 = vector.load %arg1[%c0, %c0_0, %c0_1] : memref<2x16x32xf32, #tpu.memory_space<vmem>>, vector<2x16x32xf32>
    %1 = vector.shape_cast %0 : vector<2x16x32xf32> to vector<32x32xf32>
    %c0_2 = arith.constant 0 : index
    %c0_3 = arith.constant 0 : index
    %2 = vector.load %arg2[%c0_2, %c0_3] : memref<1x32xf32, #tpu.memory_space<vmem>>, vector<1x32xf32>
    %c0_4 = arith.constant 0 : index
    %c0_5 = arith.constant 0 : index
    %3 = vector.load %arg3[%c0_4, %c0_5] : memref<1x32xf32, #tpu.memory_space<vmem>>, vector<1x32xf32>
    %cst = arith.constant dense<0.000000e+00> : vector<32xf32>
    %4 = vector.multi_reduction <add>, %1, %cst [1] : vector<32x32xf32> to vector<32xf32>
    %5 = vector.shape_cast %4 : vector<32xf32> to vector<32x1xf32>
    %cst_6 = arith.constant 3.200000e+01 : f32
    %6 = vector.broadcast %cst_6 : f32 to vector<32x1xf32>
    %7 = arith.divf %5, %6 : vector<32x1xf32>
    %8 = vector.broadcast %7 : vector<32x1xf32> to vector<32x32xf32>
    %9 = arith.subf %1, %8 : vector<32x32xf32>
    %10 = arith.mulf %9, %9 : vector<32x32xf32>
    %cst_7 = arith.constant dense<0.000000e+00> : vector<32xf32>
    %11 = vector.multi_reduction <add>, %10, %cst_7 [1] : vector<32x32xf32> to vector<32xf32>
    %12 = vector.shape_cast %11 : vector<32xf32> to vector<32x1xf32>
    %cst_8 = arith.constant 3.200000e+01 : f32
    %13 = vector.broadcast %cst_8 : f32 to vector<32x1xf32>
    %14 = arith.divf %12, %13 : vector<32x1xf32>
    %15 = vector.broadcast %7 : vector<32x1xf32> to vector<32x32xf32>
    %16 = arith.subf %1, %15 : vector<32x32xf32>
    %cst_9 = arith.constant 9.99999974E-6 : f32
    %17 = vector.broadcast %cst_9 : f32 to vector<32x1xf32>
    %18 = arith.addf %14, %17 : vector<32x1xf32>
    %19 = math.rsqrt %18 : vector<32x1xf32>
    %20 = vector.broadcast %19 : vector<32x1xf32> to vector<32x32xf32>
    %21 = arith.mulf %16, %20 : vector<32x32xf32>
    %22 = vector.broadcast %2 : vector<1x32xf32> to vector<32x32xf32>
    %23 = arith.mulf %21, %22 : vector<32x32xf32>
    %24 = vector.broadcast %3 : vector<1x32xf32> to vector<32x32xf32>
    %25 = arith.addf %23, %24 : vector<32x32xf32>
    %26 = arith.truncf %25 : vector<32x32xf32> to vector<32x32xbf16>
    %c0_10 = arith.constant 0 : index
    %c0_11 = arith.constant 0 : index
    %27 = vector.load %arg4[%c0_10, %c0_11] : memref<32x32xbf16, #tpu.memory_space<vmem>>, vector<32x32xbf16>
    %cst_12 = arith.constant dense<0.000000e+00> : vector<32x32xf32>
    %28 = tpu.matmul %26, %27, %cst_12 {dimension_numbers = #tpu.dot_dimension_numbers<[1], [0], [0], [1], [0, 0, 1, 1], [], []>} : vector<32x32xbf16>, vector<32x32xbf16>, vector<32x32xf32> -> vector<32x32xf32>
    %c0_13 = arith.constant 0 : index
    %c0_14 = arith.constant 0 : index
    %29 = vector.load %arg5[%c0_13, %c0_14] : memref<1x32xf32, #tpu.memory_space<vmem>>, vector<1x32xf32>
    %30 = vector.broadcast %29 : vector<1x32xf32> to vector<32x32xf32>
    %31 = arith.addf %28, %30 : vector<32x32xf32>
    %32 = vector.shape_cast %31 : vector<32x32xf32> to vector<2x16x32xf32>
    %c0_15 = arith.constant 0 : index
    %c0_16 = arith.constant 0 : index
    %33 = vector.load %arg6[%c0_15, %c0_16] : memref<32x32xbf16, #tpu.memory_space<vmem>>, vector<32x32xbf16>
    %cst_17 = arith.constant dense<0.000000e+00> : vector<32x32xf32>
    %34 = tpu.matmul %26, %33, %cst_17 {dimension_numbers = #tpu.dot_dimension_numbers<[1], [0], [0], [1], [0, 0, 1, 1], [], []>} : vector<32x32xbf16>, vector<32x32xbf16>, vector<32x32xf32> -> vector<32x32xf32>
    %c0_18 = arith.constant 0 : index
    %c0_19 = arith.constant 0 : index
    %35 = vector.load %arg7[%c0_18, %c0_19] : memref<1x32xf32, #tpu.memory_space<vmem>>, vector<1x32xf32>
    %36 = vector.broadcast %35 : vector<1x32xf32> to vector<32x32xf32>
    %37 = arith.addf %34, %36 : vector<32x32xf32>
    %38 = vector.shape_cast %37 : vector<32x32xf32> to vector<2x16x32xf32>
    %c0_20 = arith.constant 0 : index
    %c0_21 = arith.constant 0 : index
    %39 = vector.load %arg8[%c0_20, %c0_21] : memref<32x32xbf16, #tpu.memory_space<vmem>>, vector<32x32xbf16>
    %cst_22 = arith.constant dense<0.000000e+00> : vector<32x32xf32>
    %40 = tpu.matmul %26, %39, %cst_22 {dimension_numbers = #tpu.dot_dimension_numbers<[1], [0], [0], [1], [0, 0, 1, 1], [], []>} : vector<32x32xbf16>, vector<32x32xbf16>, vector<32x32xf32> -> vector<32x32xf32>
    %c0_23 = arith.constant 0 : index
    %c0_24 = arith.constant 0 : index
    %41 = vector.load %arg9[%c0_23, %c0_24] : memref<1x32xf32, #tpu.memory_space<vmem>>, vector<1x32xf32>
    %42 = vector.broadcast %41 : vector<1x32xf32> to vector<32x32xf32>
    %43 = arith.addf %40, %42 : vector<32x32xf32>
    %44 = vector.shape_cast %43 : vector<32x32xf32> to vector<2x16x32xf32>
    %45 = vector.extract_strided_slice %32 {offsets = [0, 0, 0], sizes = [2, 16, 16], strides = [1, 1, 1]} : vector<2x16x32xf32> to vector<2x16x16xf32>
    %cst_25 = arith.constant 2.500000e-01 : f32
    %46 = vector.broadcast %cst_25 : f32 to vector<2x16x16xf32>
    %47 = arith.mulf %45, %46 : vector<2x16x16xf32>
    %48 = arith.truncf %47 : vector<2x16x16xf32> to vector<2x16x16xbf16>
    %49 = vector.extract_strided_slice %38 {offsets = [0, 0, 0], sizes = [2, 16, 16], strides = [1, 1, 1]} : vector<2x16x32xf32> to vector<2x16x16xf32>
    %50 = arith.truncf %49 : vector<2x16x16xf32> to vector<2x16x16xbf16>
    %51 = vector.extract_strided_slice %44 {offsets = [0, 0, 0], sizes = [2, 16, 16], strides = [1, 1, 1]} : vector<2x16x32xf32> to vector<2x16x16xf32>
    %52 = arith.truncf %51 : vector<2x16x16xf32> to vector<2x16x16xbf16>
    "tpu.trace_start"() <{level = 10 : i32, message = "bqd,bkd->bqk"}> : () -> ()
    %cst_26 = arith.constant dense<0.000000e+00> : vector<2x16x16xf32>
    %53 = tpu.matmul %48, %50, %cst_26 {dimension_numbers = #tpu.dot_dimension_numbers<[2], [2], [1], [1], [0, 0, 0, 1, 1, 1], [0], [0]>} : vector<2x16x16xbf16>, vector<2x16x16xbf16>, vector<2x16x16xf32> -> vector<2x16x16xf32>
    "tpu.trace_stop"() : () -> ()
    %cst_27 = arith.constant dense<0xFF800000> : vector<2x16xf32>
    %54 = vector.multi_reduction <maximumf>, %53, %cst_27 [2] : vector<2x16x16xf32> to vector<2x16xf32>
    %55 = vector.shape_cast %54 : vector<2x16xf32> to vector<2x16x1xf32>
    %56 = vector.broadcast %55 : vector<2x16x1xf32> to vector<2x16x16xf32>
    %57 = arith.subf %53, %56 : vector<2x16x16xf32>
    %58 = math.exp %57 : vector<2x16x16xf32>
    %cst_28 = arith.constant dense<0.000000e+00> : vector<2x16xf32>
    %59 = vector.multi_reduction <add>, %58, %cst_28 [2] : vector<2x16x16xf32> to vector<2x16xf32>
    %60 = vector.shape_cast %59 : vector<2x16xf32> to vector<2x16x1xf32>
    %61 = tpu.reciprocal %60 {approx = true} : vector<2x16x1xf32> -> vector<2x16x1xf32>
    %62 = vector.broadcast %61 : vector<2x16x1xf32> to vector<2x16x16xf32>
    %63 = arith.mulf %58, %62 : vector<2x16x16xf32>
    %64 = arith.truncf %63 : vector<2x16x16xf32> to vector<2x16x16xbf16>
    "tpu.trace_start"() <{level = 10 : i32, message = "bqk,bkd->bqd"}> : () -> ()
    %cst_29 = arith.constant dense<0.000000e+00> : vector<2x16x16xf32>
    %65 = tpu.matmul %64, %52, %cst_29 {dimension_numbers = #tpu.dot_dimension_numbers<[2], [1], [1], [2], [0, 0, 0, 1, 1, 2], [0], [0]>} : vector<2x16x16xbf16>, vector<2x16x16xbf16>, vector<2x16x16xf32> -> vector<2x16x16xf32>
    "tpu.trace_stop"() : () -> ()
    %66 = vector.extract_strided_slice %32 {offsets = [0, 0, 16], sizes = [2, 16, 16], strides = [1, 1, 1]} : vector<2x16x32xf32> to vector<2x16x16xf32>
    %cst_30 = arith.constant 2.500000e-01 : f32
    %67 = vector.broadcast %cst_30 : f32 to vector<2x16x16xf32>
    %68 = arith.mulf %66, %67 : vector<2x16x16xf32>
    %69 = arith.truncf %68 : vector<2x16x16xf32> to vector<2x16x16xbf16>
    %70 = vector.extract_strided_slice %38 {offsets = [0, 0, 16], sizes = [2, 16, 16], strides = [1, 1, 1]} : vector<2x16x32xf32> to vector<2x16x16xf32>
    %71 = arith.truncf %70 : vector<2x16x16xf32> to vector<2x16x16xbf16>
    %72 = vector.extract_strided_slice %44 {offsets = [0, 0, 16], sizes = [2, 16, 16], strides = [1, 1, 1]} : vector<2x16x32xf32> to vector<2x16x16xf32>
    %73 = arith.truncf %72 : vector<2x16x16xf32> to vector<2x16x16xbf16>
    "tpu.trace_start"() <{level = 10 : i32, message = "bqd,bkd->bqk"}> : () -> ()
    %cst_31 = arith.constant dense<0.000000e+00> : vector<2x16x16xf32>
    %74 = tpu.matmul %69, %71, %cst_31 {dimension_numbers = #tpu.dot_dimension_numbers<[2], [2], [1], [1], [0, 0, 0, 1, 1, 1], [0], [0]>} : vector<2x16x16xbf16>, vector<2x16x16xbf16>, vector<2x16x16xf32> -> vector<2x16x16xf32>
    "tpu.trace_stop"() : () -> ()
    %cst_32 = arith.constant dense<0xFF800000> : vector<2x16xf32>
    %75 = vector.multi_reduction <maximumf>, %74, %cst_32 [2] : vector<2x16x16xf32> to vector<2x16xf32>
    %76 = vector.shape_cast %75 : vector<2x16xf32> to vector<2x16x1xf32>
    %77 = vector.broadcast %76 : vector<2x16x1xf32> to vector<2x16x16xf32>
    %78 = arith.subf %74, %77 : vector<2x16x16xf32>
    %79 = math.exp %78 : vector<2x16x16xf32>
    %cst_33 = arith.constant dense<0.000000e+00> : vector<2x16xf32>
    %80 = vector.multi_reduction <add>, %79, %cst_33 [2] : vector<2x16x16xf32> to vector<2x16xf32>
    %81 = vector.shape_cast %80 : vector<2x16xf32> to vector<2x16x1xf32>
    %82 = tpu.reciprocal %81 {approx = true} : vector<2x16x1xf32> -> vector<2x16x1xf32>
    %83 = vector.broadcast %82 : vector<2x16x1xf32> to vector<2x16x16xf32>
    %84 = arith.mulf %79, %83 : vector<2x16x16xf32>
    %85 = arith.truncf %84 : vector<2x16x16xf32> to vector<2x16x16xbf16>
    "tpu.trace_start"() <{level = 10 : i32, message = "bqk,bkd->bqd"}> : () -> ()
    %cst_34 = arith.constant dense<0.000000e+00> : vector<2x16x16xf32>
    %86 = tpu.matmul %85, %73, %cst_34 {dimension_numbers = #tpu.dot_dimension_numbers<[2], [1], [1], [2], [0, 0, 0, 1, 1, 2], [0], [0]>} : vector<2x16x16xbf16>, vector<2x16x16xbf16>, vector<2x16x16xf32> -> vector<2x16x16xf32>
    "tpu.trace_stop"() : () -> ()
    %87 = tpu.concatenate %65, %86 in 2 : vector<2x16x16xf32>, vector<2x16x16xf32> -> vector<2x16x32xf32>
    %88 = vector.shape_cast %87 : vector<2x16x32xf32> to vector<32x32xf32>
    %89 = arith.truncf %88 : vector<32x32xf32> to vector<32x32xbf16>
    %c0_35 = arith.constant 0 : index
    %c0_36 = arith.constant 0 : index
    %90 = vector.load %arg10[%c0_35, %c0_36] : memref<32x32xbf16, #tpu.memory_space<vmem>>, vector<32x32xbf16>
    %cst_37 = arith.constant dense<0.000000e+00> : vector<32x32xf32>
    %91 = tpu.matmul %89, %90, %cst_37 {dimension_numbers = #tpu.dot_dimension_numbers<[1], [0], [0], [1], [0, 0, 1, 1], [], []>} : vector<32x32xbf16>, vector<32x32xbf16>, vector<32x32xf32> -> vector<32x32xf32>
    %92 = arith.addf %1, %91 : vector<32x32xf32>
    %c0_38 = arith.constant 0 : index
    %c0_39 = arith.constant 0 : index
    %93 = vector.load %arg11[%c0_38, %c0_39] : memref<1x32xf32, #tpu.memory_space<vmem>>, vector<1x32xf32>
    %94 = vector.broadcast %93 : vector<1x32xf32> to vector<32x32xf32>
    %95 = arith.addf %92, %94 : vector<32x32xf32>
    %c0_40 = arith.constant 0 : index
    %c0_41 = arith.constant 0 : index
    %96 = vector.load %arg12[%c0_40, %c0_41] : memref<1x32xf32, #tpu.memory_space<vmem>>, vector<1x32xf32>
    %c0_42 = arith.constant 0 : index
    %c0_43 = arith.constant 0 : index
    %97 = vector.load %arg13[%c0_42, %c0_43] : memref<1x32xf32, #tpu.memory_space<vmem>>, vector<1x32xf32>
    %cst_44 = arith.constant dense<0.000000e+00> : vector<32xf32>
    %98 = vector.multi_reduction <add>, %95, %cst_44 [1] : vector<32x32xf32> to vector<32xf32>
    %99 = vector.shape_cast %98 : vector<32xf32> to vector<32x1xf32>
    %cst_45 = arith.constant 3.200000e+01 : f32
    %100 = vector.broadcast %cst_45 : f32 to vector<32x1xf32>
    %101 = arith.divf %99, %100 : vector<32x1xf32>
    %102 = vector.broadcast %101 : vector<32x1xf32> to vector<32x32xf32>
    %103 = arith.subf %95, %102 : vector<32x32xf32>
    %104 = arith.mulf %103, %103 : vector<32x32xf32>
    %cst_46 = arith.constant dense<0.000000e+00> : vector<32xf32>
    %105 = vector.multi_reduction <add>, %104, %cst_46 [1] : vector<32x32xf32> to vector<32xf32>
    %106 = vector.shape_cast %105 : vector<32xf32> to vector<32x1xf32>
    %cst_47 = arith.constant 3.200000e+01 : f32
    %107 = vector.broadcast %cst_47 : f32 to vector<32x1xf32>
    %108 = arith.divf %106, %107 : vector<32x1xf32>
    %109 = vector.broadcast %101 : vector<32x1xf32> to vector<32x32xf32>
    %110 = arith.subf %95, %109 : vector<32x32xf32>
    %cst_48 = arith.constant 9.99999974E-6 : f32
    %111 = vector.broadcast %cst_48 : f32 to vector<32x1xf32>
    %112 = arith.addf %108, %111 : vector<32x1xf32>
    %113 = math.rsqrt %112 : vector<32x1xf32>
    %114 = vector.broadcast %113 : vector<32x1xf32> to vector<32x32xf32>
    %115 = arith.mulf %110, %114 : vector<32x32xf32>
    %116 = vector.broadcast %96 : vector<1x32xf32> to vector<32x32xf32>
    %117 = arith.mulf %115, %116 : vector<32x32xf32>
    %118 = vector.broadcast %97 : vector<1x32xf32> to vector<32x32xf32>
    %119 = arith.addf %117, %118 : vector<32x32xf32>
    %120 = arith.truncf %119 : vector<32x32xf32> to vector<32x32xbf16>
    %c0_49 = arith.constant 0 : index
    %c0_50 = arith.constant 0 : index
    %121 = vector.load %arg14[%c0_49, %c0_50] : memref<32x128xbf16, #tpu.memory_space<vmem>>, vector<32x128xbf16>
    %cst_51 = arith.constant dense<0.000000e+00> : vector<32x128xf32>
    %122 = tpu.matmul %120, %121, %cst_51 {dimension_numbers = #tpu.dot_dimension_numbers<[1], [0], [0], [1], [0, 0, 1, 1], [], []>} : vector<32x32xbf16>, vector<32x128xbf16>, vector<32x128xf32> -> vector<32x128xf32>
    %c0_52 = arith.constant 0 : index
    %c0_53 = arith.constant 0 : index
    %123 = vector.load %arg15[%c0_52, %c0_53] : memref<1x128xf32, #tpu.memory_space<vmem>>, vector<1x128xf32>
    %124 = vector.broadcast %123 : vector<1x128xf32> to vector<32x128xf32>
    %125 = arith.addf %122, %124 : vector<32x128xf32>
    %126 = arith.mulf %125, %125 : vector<32x128xf32>
    %127 = arith.mulf %125, %126 : vector<32x128xf32>
    %cst_54 = arith.constant 4.471500e-02 : f32
    %128 = vector.broadcast %cst_54 : f32 to vector<32x128xf32>
    %129 = arith.mulf %128, %127 : vector<32x128xf32>
    %130 = arith.addf %125, %129 : vector<32x128xf32>
    %cst_55 = arith.constant 0.797884583 : f32
    %131 = vector.broadcast %cst_55 : f32 to vector<32x128xf32>
    %132 = arith.mulf %131, %130 : vector<32x128xf32>
    %133 = math.tanh %132 : vector<32x128xf32>
    %cst_56 = arith.constant 1.000000e+00 : f32
    %134 = vector.broadcast %cst_56 : f32 to vector<32x128xf32>
    %135 = arith.addf %134, %133 : vector<32x128xf32>
    %cst_57 = arith.constant 5.000000e-01 : f32
    %136 = vector.broadcast %cst_57 : f32 to vector<32x128xf32>
    %137 = arith.mulf %136, %135 : vector<32x128xf32>
    %138 = arith.mulf %125, %137 : vector<32x128xf32>
    %139 = arith.truncf %138 : vector<32x128xf32> to vector<32x128xbf16>
    %c0_58 = arith.constant 0 : index
    %c0_59 = arith.constant 0 : index
    %140 = vector.load %arg16[%c0_58, %c0_59] : memref<128x32xbf16, #tpu.memory_space<vmem>>, vector<128x32xbf16>
    %cst_60 = arith.constant dense<0.000000e+00> : vector<32x32xf32>
    %141 = tpu.matmul %139, %140, %cst_60 {dimension_numbers = #tpu.dot_dimension_numbers<[1], [0], [0], [1], [0, 0, 1, 1], [], []>} : vector<32x128xbf16>, vector<128x32xbf16>, vector<32x32xf32> -> vector<32x32xf32>
    %142 = arith.addf %95, %141 : vector<32x32xf32>
    %c0_61 = arith.constant 0 : index
    %c0_62 = arith.constant 0 : index
    %143 = vector.load %arg17[%c0_61, %c0_62] : memref<1x32xf32, #tpu.memory_space<vmem>>, vector<1x32xf32>
    %144 = vector.broadcast %143 : vector<1x32xf32> to vector<32x32xf32>
    %145 = arith.addf %142, %144 : vector<32x32xf32>
    %146 = vector.shape_cast %145 : vector<32x32xf32> to vector<2x16x32xf32>
    %c0_63 = arith.constant 0 : index
    %c0_64 = arith.constant 0 : index
    %c0_65 = arith.constant 0 : index
    %147 = vector.load %arg18[%c0_63, %c0_64, %c0_65] : memref<2x16x32xf32, #tpu.memory_space<vmem>>, vector<2x16x32xf32>
    tpu.vector_store %arg18[%c0_63, %c0_64, %c0_65], %146 {strides = array<i32>} : memref<2x16x32xf32, #tpu.memory_space<vmem>>, vector<2x16x32xf32>,
    return
  }
  func.func @transform_0(%arg0: i32) -> (i32, i32, i32) {
    %c0_i32 = arith.constant 0 : i32
    %c0_i32_0 = arith.constant 0 : i32
    %c0_i32_1 = arith.constant 0 : i32
    %c0_i32_2 = arith.constant 0 : i32
    return %c0_i32, %c0_i32_0, %c0_i32_1 : i32, i32, i32
  }
  func.func @transform_1(%arg0: i32) -> (i32, i32) {
    %c0_i32 = arith.constant 0 : i32
    %c0_i32_0 = arith.constant 0 : i32
    %c0_i32_1 = arith.constant 0 : i32
    return %c0_i32, %c0_i32_0 : i32, i32
  }
  func.func @transform_2(%arg0: i32) -> (i32, i32) {
    %c0_i32 = arith.constant 0 : i32
    %c0_i32_0 = arith.constant 0 : i32
    %c0_i32_1 = arith.constant 0 : i32
    return %c0_i32, %c0_i32_0 : i32, i32
  }
  func.func @transform_3(%arg0: i32) -> (i32, i32) {
    %c0_i32 = arith.constant 0 : i32
    %c0_i32_0 = arith.constant 0 : i32
    %c0_i32_1 = arith.constant 0 : i32
    return %c0_i32, %c0_i32_0 : i32, i32
  }
  func.func @transform_4(%arg0: i32) -> (i32, i32) {
    %c0_i32 = arith.constant 0 : i32
    %c0_i32_0 = arith.constant 0 : i32
    %c0_i32_1 = arith.constant 0 : i32
    return %c0_i32, %c0_i32_0 : i32, i32
  }
  func.func @transform_5(%arg0: i32) -> (i32, i32) {
    %c0_i32 = arith.constant 0 : i32
    %c0_i32_0 = arith.constant 0 : i32
    %c0_i32_1 = arith.constant 0 : i32
    return %c0_i32, %c0_i32_0 : i32, i32
  }
  func.func @transform_6(%arg0: i32) -> (i32, i32) {
    %c0_i32 = arith.constant 0 : i32
    %c0_i32_0 = arith.constant 0 : i32
    %c0_i32_1 = arith.constant 0 : i32
    return %c0_i32, %c0_i32_0 : i32, i32
  }
  func.func @transform_7(%arg0: i32) -> (i32, i32) {
    %c0_i32 = arith.constant 0 : i32
    %c0_i32_0 = arith.constant 0 : i32
    %c0_i32_1 = arith.constant 0 : i32
    return %c0_i32, %c0_i32_0 : i32, i32
  }
  func.func @transform_8(%arg0: i32) -> (i32, i32) {
    %c0_i32 = arith.constant 0 : i32
    %c0_i32_0 = arith.constant 0 : i32
    %c0_i32_1 = arith.constant 0 : i32
    return %c0_i32, %c0_i32_0 : i32, i32
  }
  func.func @transform_9(%arg0: i32) -> (i32, i32) {
    %c0_i32 = arith.constant 0 : i32
    %c0_i32_0 = arith.constant 0 : i32
    %c0_i32_1 = arith.constant 0 : i32
    return %c0_i32, %c0_i32_0 : i32, i32
  }
  func.func @transform_10(%arg0: i32) -> (i32, i32) {
    %c0_i32 = arith.constant 0 : i32
    %c0_i32_0 = arith.constant 0 : i32
    %c0_i32_1 = arith.constant 0 : i32
    return %c0_i32, %c0_i32_0 : i32, i32
  }
  func.func @transform_11(%arg0: i32) -> (i32, i32) {
    %c0_i32 = arith.constant 0 : i32
    %c0_i32_0 = arith.constant 0 : i32
    %c0_i32_1 = arith.constant 0 : i32
    return %c0_i32, %c0_i32_0 : i32, i32
  }
  func.func @transform_12(%arg0: i32) -> (i32, i32) {
    %c0_i32 = arith.constant 0 : i32
    %c0_i32_0 = arith.constant 0 : i32
    %c0_i32_1 = arith.constant 0 : i32
    return %c0_i32, %c0_i32_0 : i32, i32
  }
  func.func @transform_13(%arg0: i32) -> (i32, i32) {
    %c0_i32 = arith.constant 0 : i32
    %c0_i32_0 = arith.constant 0 : i32
    %c0_i32_1 = arith.constant 0 : i32
    return %c0_i32, %c0_i32_0 : i32, i32
  }
  func.func @transform_14(%arg0: i32) -> (i32, i32) {
    %c0_i32 = arith.constant 0 : i32
    %c0_i32_0 = arith.constant 0 : i32
    %c0_i32_1 = arith.constant 0 : i32
    return %c0_i32, %c0_i32_0 : i32, i32
  }
  func.func @transform_15(%arg0: i32) -> (i32, i32) {
    %c0_i32 = arith.constant 0 : i32
    %c0_i32_0 = arith.constant 0 : i32
    %c0_i32_1 = arith.constant 0 : i32
    return %c0_i32, %c0_i32_0 : i32, i32
  }
  func.func @transform_16(%arg0: i32) -> (i32, i32) {
    %c0_i32 = arith.constant 0 : i32
    %c0_i32_0 = arith.constant 0 : i32
    %c0_i32_1 = arith.constant 0 : i32
    return %c0_i32, %c0_i32_0 : i32, i32
  }
  func.func @transform_17(%arg0: i32) -> (i32, i32, i32) {
    %c0_i32 = arith.constant 0 : i32
    %c0_i32_0 = arith.constant 0 : i32
    %c0_i32_1 = arith.constant 0 : i32
    %c0_i32_2 = arith.constant 0 : i32
    return %c0_i32, %c0_i32_0, %c0_i32_1 : i32, i32, i32
  }
}

module attributes {stable_mosaic.version = 11 : i64} {
  func.func @_lm_block_kernel(%arg0: i32, %arg1: memref<2x8x64xf32, #tpu.memory_space<vmem>>, %arg2: memref<2x8x8xf32, #tpu.memory_space<vmem>>, %arg3: memref<8x16xf32, #tpu.memory_space<vmem>>, %arg4: memref<8x16xf32, #tpu.memory_space<vmem>>, %arg5: memref<1x64xf32, #tpu.memory_space<vmem>>, %arg6: memref<64x64xbf16, #tpu.memory_space<vmem>>, %arg7: memref<64x32xbf16, #tpu.memory_space<vmem>>, %arg8: memref<64x32xbf16, #tpu.memory_space<vmem>>, %arg9: memref<64x64xbf16, #tpu.memory_space<vmem>>, %arg10: memref<1x64xf32, #tpu.memory_space<vmem>>, %arg11: memref<64x128xbf16, #tpu.memory_space<vmem>>, %arg12: memref<64x128xbf16, #tpu.memory_space<vmem>>, %arg13: memref<128x64xbf16, #tpu.memory_space<vmem>>, %arg14: memref<1x64xf32, #tpu.memory_space<vmem>>, %arg15: memref<2x8x64xf32, #tpu.memory_space<vmem>>) attributes {dimension_semantics = [#tpu.dimension_semantics<arbitrary>], iteration_bounds = array<i64: 1>, scalar_prefetch = 0 : i64, scratch_operands = 0 : i64, tpu.core_type = #tpu.core_type<tc>, window_params = [{pipeline_mode = #tpu.pipeline_mode<synchronous>, transform_indices = @transform_0, window_bounds = array<i64: 2, 8, 64>}, {pipeline_mode = #tpu.pipeline_mode<synchronous>, transform_indices = @transform_1, window_bounds = array<i64: 2, 8, 8>}, {pipeline_mode = #tpu.pipeline_mode<synchronous>, transform_indices = @transform_2, window_bounds = array<i64: 8, 16>}, {pipeline_mode = #tpu.pipeline_mode<synchronous>, transform_indices = @transform_3, window_bounds = array<i64: 8, 16>}, {pipeline_mode = #tpu.pipeline_mode<synchronous>, transform_indices = @transform_4, window_bounds = array<i64: 1, 64>}, {pipeline_mode = #tpu.pipeline_mode<synchronous>, transform_indices = @transform_5, window_bounds = array<i64: 64, 64>}, {pipeline_mode = #tpu.pipeline_mode<synchronous>, transform_indices = @transform_6, window_bounds = array<i64: 64, 32>}, {pipeline_mode = #tpu.pipeline_mode<synchronous>, transform_indices = @transform_7, window_bounds = array<i64: 64, 32>}, {pipeline_mode = #tpu.pipeline_mode<synchronous>, transform_indices = @transform_8, window_bounds = array<i64: 64, 64>}, {pipeline_mode = #tpu.pipeline_mode<synchronous>, transform_indices = @transform_9, window_bounds = array<i64: 1, 64>}, {pipeline_mode = #tpu.pipeline_mode<synchronous>, transform_indices = @transform_10, window_bounds = array<i64: 64, 128>}, {pipeline_mode = #tpu.pipeline_mode<synchronous>, transform_indices = @transform_11, window_bounds = array<i64: 64, 128>}, {pipeline_mode = #tpu.pipeline_mode<synchronous>, transform_indices = @transform_12, window_bounds = array<i64: 128, 64>}, {pipeline_mode = #tpu.pipeline_mode<synchronous>, transform_indices = @transform_13, window_bounds = array<i64: 1, 64>}, {pipeline_mode = #tpu.pipeline_mode<synchronous>, transform_indices = @transform_14, window_bounds = array<i64: 2, 8, 64>}]} {
    %c0 = arith.constant 0 : index
    %c0_0 = arith.constant 0 : index
    %c0_1 = arith.constant 0 : index
    %0 = vector.load %arg1[%c0, %c0_0, %c0_1] : memref<2x8x64xf32, #tpu.memory_space<vmem>>, vector<2x8x64xf32>
    %1 = vector.shape_cast %0 : vector<2x8x64xf32> to vector<16x64xf32>
    %c0_2 = arith.constant 0 : index
    %c0_3 = arith.constant 0 : index
    %2 = vector.load %arg3[%c0_2, %c0_3] : memref<8x16xf32, #tpu.memory_space<vmem>>, vector<8x16xf32>
    %c0_4 = arith.constant 0 : index
    %c0_5 = arith.constant 0 : index
    %3 = vector.load %arg4[%c0_4, %c0_5] : memref<8x16xf32, #tpu.memory_space<vmem>>, vector<8x16xf32>
    %c0_6 = arith.constant 0 : index
    %c0_7 = arith.constant 0 : index
    %c0_8 = arith.constant 0 : index
    %4 = vector.load %arg2[%c0_6, %c0_7, %c0_8] : memref<2x8x8xf32, #tpu.memory_space<vmem>>, vector<2x8x8xf32>
    %c0_9 = arith.constant 0 : index
    %c0_10 = arith.constant 0 : index
    %5 = vector.load %arg5[%c0_9, %c0_10] : memref<1x64xf32, #tpu.memory_space<vmem>>, vector<1x64xf32>
    %6 = arith.mulf %1, %1 : vector<16x64xf32>
    %cst = arith.constant dense<0.000000e+00> : vector<16xf32>
    %7 = vector.multi_reduction <add>, %6, %cst [1] : vector<16x64xf32> to vector<16xf32>
    %8 = vector.shape_cast %7 : vector<16xf32> to vector<16x1xf32>
    %cst_11 = arith.constant 6.400000e+01 : f32
    %9 = vector.broadcast %cst_11 : f32 to vector<16x1xf32>
    %10 = arith.divf %8, %9 : vector<16x1xf32>
    %cst_12 = arith.constant 9.99999974E-6 : f32
    %11 = vector.broadcast %cst_12 : f32 to vector<16x1xf32>
    %12 = arith.addf %10, %11 : vector<16x1xf32>
    %13 = math.rsqrt %12 : vector<16x1xf32>
    %14 = vector.broadcast %13 : vector<16x1xf32> to vector<16x64xf32>
    %15 = arith.mulf %1, %14 : vector<16x64xf32>
    %16 = vector.broadcast %5 : vector<1x64xf32> to vector<16x64xf32>
    %17 = arith.mulf %15, %16 : vector<16x64xf32>
    %18 = arith.truncf %17 : vector<16x64xf32> to vector<16x64xbf16>
    %c0_13 = arith.constant 0 : index
    %c0_14 = arith.constant 0 : index
    %19 = vector.load %arg6[%c0_13, %c0_14] : memref<64x64xbf16, #tpu.memory_space<vmem>>, vector<64x64xbf16>
    %cst_15 = arith.constant dense<0.000000e+00> : vector<16x64xf32>
    %20 = tpu.matmul %18, %19, %cst_15 {dimension_numbers = #tpu.dot_dimension_numbers<[1], [0], [0], [1], [0, 0, 1, 1], [], []>} : vector<16x64xbf16>, vector<64x64xbf16>, vector<16x64xf32> -> vector<16x64xf32>
    %21 = vector.shape_cast %20 : vector<16x64xf32> to vector<2x8x64xf32>
    %c0_16 = arith.constant 0 : index
    %c0_17 = arith.constant 0 : index
    %22 = vector.load %arg7[%c0_16, %c0_17] : memref<64x32xbf16, #tpu.memory_space<vmem>>, vector<64x32xbf16>
    %cst_18 = arith.constant dense<0.000000e+00> : vector<16x32xf32>
    %23 = tpu.matmul %18, %22, %cst_18 {dimension_numbers = #tpu.dot_dimension_numbers<[1], [0], [0], [1], [0, 0, 1, 1], [], []>} : vector<16x64xbf16>, vector<64x32xbf16>, vector<16x32xf32> -> vector<16x32xf32>
    %24 = vector.shape_cast %23 : vector<16x32xf32> to vector<2x8x32xf32>
    %c0_19 = arith.constant 0 : index
    %c0_20 = arith.constant 0 : index
    %25 = vector.load %arg8[%c0_19, %c0_20] : memref<64x32xbf16, #tpu.memory_space<vmem>>, vector<64x32xbf16>
    %cst_21 = arith.constant dense<0.000000e+00> : vector<16x32xf32>
    %26 = tpu.matmul %18, %25, %cst_21 {dimension_numbers = #tpu.dot_dimension_numbers<[1], [0], [0], [1], [0, 0, 1, 1], [], []>} : vector<16x64xbf16>, vector<64x32xbf16>, vector<16x32xf32> -> vector<16x32xf32>
    %27 = vector.shape_cast %26 : vector<16x32xf32> to vector<2x8x32xf32>
    %28 = vector.extract_strided_slice %21 {offsets = [0, 0, 0], sizes = [2, 8, 16], strides = [1, 1, 1]} : vector<2x8x64xf32> to vector<2x8x16xf32>
    %29 = vector.extract_strided_slice %28 {offsets = [0, 0, 0], sizes = [2, 8, 8], strides = [1, 1, 1]} : vector<2x8x16xf32> to vector<2x8x8xf32>
    %30 = vector.extract_strided_slice %28 {offsets = [0, 0, 8], sizes = [2, 8, 8], strides = [1, 1, 1]} : vector<2x8x16xf32> to vector<2x8x8xf32>
    %cst_22 = arith.constant 0.000000e+00 : f32
    %31 = vector.broadcast %cst_22 : f32 to vector<2x8x8xf32>
    %32 = arith.subf %31, %30 : vector<2x8x8xf32>
    %33 = tpu.concatenate %32, %29 in 2 : vector<2x8x8xf32>, vector<2x8x8xf32> -> vector<2x8x16xf32>
    %34 = vector.shape_cast %2 : vector<8x16xf32> to vector<1x8x16xf32>
    %35 = vector.broadcast %34 : vector<1x8x16xf32> to vector<2x8x16xf32>
    %36 = arith.mulf %28, %35 : vector<2x8x16xf32>
    %37 = vector.shape_cast %3 : vector<8x16xf32> to vector<1x8x16xf32>
    %38 = vector.broadcast %37 : vector<1x8x16xf32> to vector<2x8x16xf32>
    %39 = arith.mulf %33, %38 : vector<2x8x16xf32>
    %40 = arith.addf %36, %39 : vector<2x8x16xf32>
    %cst_23 = arith.constant 2.500000e-01 : f32
    %41 = vector.broadcast %cst_23 : f32 to vector<2x8x16xf32>
    %42 = arith.mulf %40, %41 : vector<2x8x16xf32>
    %43 = vector.extract_strided_slice %24 {offsets = [0, 0, 0], sizes = [2, 8, 16], strides = [1, 1, 1]} : vector<2x8x32xf32> to vector<2x8x16xf32>
    %44 = vector.extract_strided_slice %43 {offsets = [0, 0, 0], sizes = [2, 8, 8], strides = [1, 1, 1]} : vector<2x8x16xf32> to vector<2x8x8xf32>
    %45 = vector.extract_strided_slice %43 {offsets = [0, 0, 8], sizes = [2, 8, 8], strides = [1, 1, 1]} : vector<2x8x16xf32> to vector<2x8x8xf32>
    %cst_24 = arith.constant 0.000000e+00 : f32
    %46 = vector.broadcast %cst_24 : f32 to vector<2x8x8xf32>
    %47 = arith.subf %46, %45 : vector<2x8x8xf32>
    %48 = tpu.concatenate %47, %44 in 2 : vector<2x8x8xf32>, vector<2x8x8xf32> -> vector<2x8x16xf32>
    %49 = vector.shape_cast %2 : vector<8x16xf32> to vector<1x8x16xf32>
    %50 = vector.broadcast %49 : vector<1x8x16xf32> to vector<2x8x16xf32>
    %51 = arith.mulf %43, %50 : vector<2x8x16xf32>
    %52 = vector.shape_cast %3 : vector<8x16xf32> to vector<1x8x16xf32>
    %53 = vector.broadcast %52 : vector<1x8x16xf32> to vector<2x8x16xf32>
    %54 = arith.mulf %48, %53 : vector<2x8x16xf32>
    %55 = arith.addf %51, %54 : vector<2x8x16xf32>
    %56 = vector.extract_strided_slice %27 {offsets = [0, 0, 0], sizes = [2, 8, 16], strides = [1, 1, 1]} : vector<2x8x32xf32> to vector<2x8x16xf32>
    %57 = arith.truncf %56 : vector<2x8x16xf32> to vector<2x8x16xbf16>
    %58 = arith.truncf %42 : vector<2x8x16xf32> to vector<2x8x16xbf16>
    %59 = arith.truncf %55 : vector<2x8x16xf32> to vector<2x8x16xbf16>
    "tpu.trace_start"() <{level = 10 : i32, message = "bqd,bkd->bqk"}> : () -> ()
    %cst_25 = arith.constant dense<0.000000e+00> : vector<2x8x8xf32>
    %60 = tpu.matmul %58, %59, %cst_25 {dimension_numbers = #tpu.dot_dimension_numbers<[2], [2], [1], [1], [0, 0, 0, 1, 1, 1], [0], [0]>} : vector<2x8x16xbf16>, vector<2x8x16xbf16>, vector<2x8x8xf32> -> vector<2x8x8xf32>
    "tpu.trace_stop"() : () -> ()
    %61 = arith.addf %60, %4 : vector<2x8x8xf32>
    %cst_26 = arith.constant dense<0xFF800000> : vector<2x8xf32>
    %62 = vector.multi_reduction <maximumf>, %61, %cst_26 [2] : vector<2x8x8xf32> to vector<2x8xf32>
    %63 = vector.shape_cast %62 : vector<2x8xf32> to vector<2x8x1xf32>
    %64 = vector.broadcast %63 : vector<2x8x1xf32> to vector<2x8x8xf32>
    %65 = arith.subf %61, %64 : vector<2x8x8xf32>
    %66 = math.exp %65 : vector<2x8x8xf32>
    %cst_27 = arith.constant dense<0.000000e+00> : vector<2x8xf32>
    %67 = vector.multi_reduction <add>, %66, %cst_27 [2] : vector<2x8x8xf32> to vector<2x8xf32>
    %68 = vector.shape_cast %67 : vector<2x8xf32> to vector<2x8x1xf32>
    %69 = tpu.reciprocal %68 {approx = true} : vector<2x8x1xf32> -> vector<2x8x1xf32>
    %70 = vector.broadcast %69 : vector<2x8x1xf32> to vector<2x8x8xf32>
    %71 = arith.mulf %66, %70 : vector<2x8x8xf32>
    %72 = arith.truncf %71 : vector<2x8x8xf32> to vector<2x8x8xbf16>
    "tpu.trace_start"() <{level = 10 : i32, message = "bqk,bkd->bqd"}> : () -> ()
    %cst_28 = arith.constant dense<0.000000e+00> : vector<2x8x16xf32>
    %73 = tpu.matmul %72, %57, %cst_28 {dimension_numbers = #tpu.dot_dimension_numbers<[2], [1], [1], [2], [0, 0, 0, 1, 1, 2], [0], [0]>} : vector<2x8x8xbf16>, vector<2x8x16xbf16>, vector<2x8x16xf32> -> vector<2x8x16xf32>
    "tpu.trace_stop"() : () -> ()
    %74 = vector.extract_strided_slice %21 {offsets = [0, 0, 16], sizes = [2, 8, 16], strides = [1, 1, 1]} : vector<2x8x64xf32> to vector<2x8x16xf32>
    %75 = vector.extract_strided_slice %74 {offsets = [0, 0, 0], sizes = [2, 8, 8], strides = [1, 1, 1]} : vector<2x8x16xf32> to vector<2x8x8xf32>
    %76 = vector.extract_strided_slice %74 {offsets = [0, 0, 8], sizes = [2, 8, 8], strides = [1, 1, 1]} : vector<2x8x16xf32> to vector<2x8x8xf32>
    %cst_29 = arith.constant 0.000000e+00 : f32
    %77 = vector.broadcast %cst_29 : f32 to vector<2x8x8xf32>
    %78 = arith.subf %77, %76 : vector<2x8x8xf32>
    %79 = tpu.concatenate %78, %75 in 2 : vector<2x8x8xf32>, vector<2x8x8xf32> -> vector<2x8x16xf32>
    %80 = vector.shape_cast %2 : vector<8x16xf32> to vector<1x8x16xf32>
    %81 = vector.broadcast %80 : vector<1x8x16xf32> to vector<2x8x16xf32>
    %82 = arith.mulf %74, %81 : vector<2x8x16xf32>
    %83 = vector.shape_cast %3 : vector<8x16xf32> to vector<1x8x16xf32>
    %84 = vector.broadcast %83 : vector<1x8x16xf32> to vector<2x8x16xf32>
    %85 = arith.mulf %79, %84 : vector<2x8x16xf32>
    %86 = arith.addf %82, %85 : vector<2x8x16xf32>
    %cst_30 = arith.constant 2.500000e-01 : f32
    %87 = vector.broadcast %cst_30 : f32 to vector<2x8x16xf32>
    %88 = arith.mulf %86, %87 : vector<2x8x16xf32>
    %89 = vector.extract_strided_slice %24 {offsets = [0, 0, 0], sizes = [2, 8, 16], strides = [1, 1, 1]} : vector<2x8x32xf32> to vector<2x8x16xf32>
    %90 = vector.extract_strided_slice %89 {offsets = [0, 0, 0], sizes = [2, 8, 8], strides = [1, 1, 1]} : vector<2x8x16xf32> to vector<2x8x8xf32>
    %91 = vector.extract_strided_slice %89 {offsets = [0, 0, 8], sizes = [2, 8, 8], strides = [1, 1, 1]} : vector<2x8x16xf32> to vector<2x8x8xf32>
    %cst_31 = arith.constant 0.000000e+00 : f32
    %92 = vector.broadcast %cst_31 : f32 to vector<2x8x8xf32>
    %93 = arith.subf %92, %91 : vector<2x8x8xf32>
    %94 = tpu.concatenate %93, %90 in 2 : vector<2x8x8xf32>, vector<2x8x8xf32> -> vector<2x8x16xf32>
    %95 = vector.shape_cast %2 : vector<8x16xf32> to vector<1x8x16xf32>
    %96 = vector.broadcast %95 : vector<1x8x16xf32> to vector<2x8x16xf32>
    %97 = arith.mulf %89, %96 : vector<2x8x16xf32>
    %98 = vector.shape_cast %3 : vector<8x16xf32> to vector<1x8x16xf32>
    %99 = vector.broadcast %98 : vector<1x8x16xf32> to vector<2x8x16xf32>
    %100 = arith.mulf %94, %99 : vector<2x8x16xf32>
    %101 = arith.addf %97, %100 : vector<2x8x16xf32>
    %102 = vector.extract_strided_slice %27 {offsets = [0, 0, 0], sizes = [2, 8, 16], strides = [1, 1, 1]} : vector<2x8x32xf32> to vector<2x8x16xf32>
    %103 = arith.truncf %102 : vector<2x8x16xf32> to vector<2x8x16xbf16>
    %104 = arith.truncf %88 : vector<2x8x16xf32> to vector<2x8x16xbf16>
    %105 = arith.truncf %101 : vector<2x8x16xf32> to vector<2x8x16xbf16>
    "tpu.trace_start"() <{level = 10 : i32, message = "bqd,bkd->bqk"}> : () -> ()
    %cst_32 = arith.constant dense<0.000000e+00> : vector<2x8x8xf32>
    %106 = tpu.matmul %104, %105, %cst_32 {dimension_numbers = #tpu.dot_dimension_numbers<[2], [2], [1], [1], [0, 0, 0, 1, 1, 1], [0], [0]>} : vector<2x8x16xbf16>, vector<2x8x16xbf16>, vector<2x8x8xf32> -> vector<2x8x8xf32>
    "tpu.trace_stop"() : () -> ()
    %107 = arith.addf %106, %4 : vector<2x8x8xf32>
    %cst_33 = arith.constant dense<0xFF800000> : vector<2x8xf32>
    %108 = vector.multi_reduction <maximumf>, %107, %cst_33 [2] : vector<2x8x8xf32> to vector<2x8xf32>
    %109 = vector.shape_cast %108 : vector<2x8xf32> to vector<2x8x1xf32>
    %110 = vector.broadcast %109 : vector<2x8x1xf32> to vector<2x8x8xf32>
    %111 = arith.subf %107, %110 : vector<2x8x8xf32>
    %112 = math.exp %111 : vector<2x8x8xf32>
    %cst_34 = arith.constant dense<0.000000e+00> : vector<2x8xf32>
    %113 = vector.multi_reduction <add>, %112, %cst_34 [2] : vector<2x8x8xf32> to vector<2x8xf32>
    %114 = vector.shape_cast %113 : vector<2x8xf32> to vector<2x8x1xf32>
    %115 = tpu.reciprocal %114 {approx = true} : vector<2x8x1xf32> -> vector<2x8x1xf32>
    %116 = vector.broadcast %115 : vector<2x8x1xf32> to vector<2x8x8xf32>
    %117 = arith.mulf %112, %116 : vector<2x8x8xf32>
    %118 = arith.truncf %117 : vector<2x8x8xf32> to vector<2x8x8xbf16>
    "tpu.trace_start"() <{level = 10 : i32, message = "bqk,bkd->bqd"}> : () -> ()
    %cst_35 = arith.constant dense<0.000000e+00> : vector<2x8x16xf32>
    %119 = tpu.matmul %118, %103, %cst_35 {dimension_numbers = #tpu.dot_dimension_numbers<[2], [1], [1], [2], [0, 0, 0, 1, 1, 2], [0], [0]>} : vector<2x8x8xbf16>, vector<2x8x16xbf16>, vector<2x8x16xf32> -> vector<2x8x16xf32>
    "tpu.trace_stop"() : () -> ()
    %120 = vector.extract_strided_slice %21 {offsets = [0, 0, 32], sizes = [2, 8, 16], strides = [1, 1, 1]} : vector<2x8x64xf32> to vector<2x8x16xf32>
    %121 = vector.extract_strided_slice %120 {offsets = [0, 0, 0], sizes = [2, 8, 8], strides = [1, 1, 1]} : vector<2x8x16xf32> to vector<2x8x8xf32>
    %122 = vector.extract_strided_slice %120 {offsets = [0, 0, 8], sizes = [2, 8, 8], strides = [1, 1, 1]} : vector<2x8x16xf32> to vector<2x8x8xf32>
    %cst_36 = arith.constant 0.000000e+00 : f32
    %123 = vector.broadcast %cst_36 : f32 to vector<2x8x8xf32>
    %124 = arith.subf %123, %122 : vector<2x8x8xf32>
    %125 = tpu.concatenate %124, %121 in 2 : vector<2x8x8xf32>, vector<2x8x8xf32> -> vector<2x8x16xf32>
    %126 = vector.shape_cast %2 : vector<8x16xf32> to vector<1x8x16xf32>
    %127 = vector.broadcast %126 : vector<1x8x16xf32> to vector<2x8x16xf32>
    %128 = arith.mulf %120, %127 : vector<2x8x16xf32>
    %129 = vector.shape_cast %3 : vector<8x16xf32> to vector<1x8x16xf32>
    %130 = vector.broadcast %129 : vector<1x8x16xf32> to vector<2x8x16xf32>
    %131 = arith.mulf %125, %130 : vector<2x8x16xf32>
    %132 = arith.addf %128, %131 : vector<2x8x16xf32>
    %cst_37 = arith.constant 2.500000e-01 : f32
    %133 = vector.broadcast %cst_37 : f32 to vector<2x8x16xf32>
    %134 = arith.mulf %132, %133 : vector<2x8x16xf32>
    %135 = vector.extract_strided_slice %24 {offsets = [0, 0, 16], sizes = [2, 8, 16], strides = [1, 1, 1]} : vector<2x8x32xf32> to vector<2x8x16xf32>
    %136 = vector.extract_strided_slice %135 {offsets = [0, 0, 0], sizes = [2, 8, 8], strides = [1, 1, 1]} : vector<2x8x16xf32> to vector<2x8x8xf32>
    %137 = vector.extract_strided_slice %135 {offsets = [0, 0, 8], sizes = [2, 8, 8], strides = [1, 1, 1]} : vector<2x8x16xf32> to vector<2x8x8xf32>
    %cst_38 = arith.constant 0.000000e+00 : f32
    %138 = vector.broadcast %cst_38 : f32 to vector<2x8x8xf32>
    %139 = arith.subf %138, %137 : vector<2x8x8xf32>
    %140 = tpu.concatenate %139, %136 in 2 : vector<2x8x8xf32>, vector<2x8x8xf32> -> vector<2x8x16xf32>
    %141 = vector.shape_cast %2 : vector<8x16xf32> to vector<1x8x16xf32>
    %142 = vector.broadcast %141 : vector<1x8x16xf32> to vector<2x8x16xf32>
    %143 = arith.mulf %135, %142 : vector<2x8x16xf32>
    %144 = vector.shape_cast %3 : vector<8x16xf32> to vector<1x8x16xf32>
    %145 = vector.broadcast %144 : vector<1x8x16xf32> to vector<2x8x16xf32>
    %146 = arith.mulf %140, %145 : vector<2x8x16xf32>
    %147 = arith.addf %143, %146 : vector<2x8x16xf32>
    %148 = vector.extract_strided_slice %27 {offsets = [0, 0, 16], sizes = [2, 8, 16], strides = [1, 1, 1]} : vector<2x8x32xf32> to vector<2x8x16xf32>
    %149 = arith.truncf %148 : vector<2x8x16xf32> to vector<2x8x16xbf16>
    %150 = arith.truncf %134 : vector<2x8x16xf32> to vector<2x8x16xbf16>
    %151 = arith.truncf %147 : vector<2x8x16xf32> to vector<2x8x16xbf16>
    "tpu.trace_start"() <{level = 10 : i32, message = "bqd,bkd->bqk"}> : () -> ()
    %cst_39 = arith.constant dense<0.000000e+00> : vector<2x8x8xf32>
    %152 = tpu.matmul %150, %151, %cst_39 {dimension_numbers = #tpu.dot_dimension_numbers<[2], [2], [1], [1], [0, 0, 0, 1, 1, 1], [0], [0]>} : vector<2x8x16xbf16>, vector<2x8x16xbf16>, vector<2x8x8xf32> -> vector<2x8x8xf32>
    "tpu.trace_stop"() : () -> ()
    %153 = arith.addf %152, %4 : vector<2x8x8xf32>
    %cst_40 = arith.constant dense<0xFF800000> : vector<2x8xf32>
    %154 = vector.multi_reduction <maximumf>, %153, %cst_40 [2] : vector<2x8x8xf32> to vector<2x8xf32>
    %155 = vector.shape_cast %154 : vector<2x8xf32> to vector<2x8x1xf32>
    %156 = vector.broadcast %155 : vector<2x8x1xf32> to vector<2x8x8xf32>
    %157 = arith.subf %153, %156 : vector<2x8x8xf32>
    %158 = math.exp %157 : vector<2x8x8xf32>
    %cst_41 = arith.constant dense<0.000000e+00> : vector<2x8xf32>
    %159 = vector.multi_reduction <add>, %158, %cst_41 [2] : vector<2x8x8xf32> to vector<2x8xf32>
    %160 = vector.shape_cast %159 : vector<2x8xf32> to vector<2x8x1xf32>
    %161 = tpu.reciprocal %160 {approx = true} : vector<2x8x1xf32> -> vector<2x8x1xf32>
    %162 = vector.broadcast %161 : vector<2x8x1xf32> to vector<2x8x8xf32>
    %163 = arith.mulf %158, %162 : vector<2x8x8xf32>
    %164 = arith.truncf %163 : vector<2x8x8xf32> to vector<2x8x8xbf16>
    "tpu.trace_start"() <{level = 10 : i32, message = "bqk,bkd->bqd"}> : () -> ()
    %cst_42 = arith.constant dense<0.000000e+00> : vector<2x8x16xf32>
    %165 = tpu.matmul %164, %149, %cst_42 {dimension_numbers = #tpu.dot_dimension_numbers<[2], [1], [1], [2], [0, 0, 0, 1, 1, 2], [0], [0]>} : vector<2x8x8xbf16>, vector<2x8x16xbf16>, vector<2x8x16xf32> -> vector<2x8x16xf32>
    "tpu.trace_stop"() : () -> ()
    %166 = vector.extract_strided_slice %21 {offsets = [0, 0, 48], sizes = [2, 8, 16], strides = [1, 1, 1]} : vector<2x8x64xf32> to vector<2x8x16xf32>
    %167 = vector.extract_strided_slice %166 {offsets = [0, 0, 0], sizes = [2, 8, 8], strides = [1, 1, 1]} : vector<2x8x16xf32> to vector<2x8x8xf32>
    %168 = vector.extract_strided_slice %166 {offsets = [0, 0, 8], sizes = [2, 8, 8], strides = [1, 1, 1]} : vector<2x8x16xf32> to vector<2x8x8xf32>
    %cst_43 = arith.constant 0.000000e+00 : f32
    %169 = vector.broadcast %cst_43 : f32 to vector<2x8x8xf32>
    %170 = arith.subf %169, %168 : vector<2x8x8xf32>
    %171 = tpu.concatenate %170, %167 in 2 : vector<2x8x8xf32>, vector<2x8x8xf32> -> vector<2x8x16xf32>
    %172 = vector.shape_cast %2 : vector<8x16xf32> to vector<1x8x16xf32>
    %173 = vector.broadcast %172 : vector<1x8x16xf32> to vector<2x8x16xf32>
    %174 = arith.mulf %166, %173 : vector<2x8x16xf32>
    %175 = vector.shape_cast %3 : vector<8x16xf32> to vector<1x8x16xf32>
    %176 = vector.broadcast %175 : vector<1x8x16xf32> to vector<2x8x16xf32>
    %177 = arith.mulf %171, %176 : vector<2x8x16xf32>
    %178 = arith.addf %174, %177 : vector<2x8x16xf32>
    %cst_44 = arith.constant 2.500000e-01 : f32
    %179 = vector.broadcast %cst_44 : f32 to vector<2x8x16xf32>
    %180 = arith.mulf %178, %179 : vector<2x8x16xf32>
    %181 = vector.extract_strided_slice %24 {offsets = [0, 0, 16], sizes = [2, 8, 16], strides = [1, 1, 1]} : vector<2x8x32xf32> to vector<2x8x16xf32>
    %182 = vector.extract_strided_slice %181 {offsets = [0, 0, 0], sizes = [2, 8, 8], strides = [1, 1, 1]} : vector<2x8x16xf32> to vector<2x8x8xf32>
    %183 = vector.extract_strided_slice %181 {offsets = [0, 0, 8], sizes = [2, 8, 8], strides = [1, 1, 1]} : vector<2x8x16xf32> to vector<2x8x8xf32>
    %cst_45 = arith.constant 0.000000e+00 : f32
    %184 = vector.broadcast %cst_45 : f32 to vector<2x8x8xf32>
    %185 = arith.subf %184, %183 : vector<2x8x8xf32>
    %186 = tpu.concatenate %185, %182 in 2 : vector<2x8x8xf32>, vector<2x8x8xf32> -> vector<2x8x16xf32>
    %187 = vector.shape_cast %2 : vector<8x16xf32> to vector<1x8x16xf32>
    %188 = vector.broadcast %187 : vector<1x8x16xf32> to vector<2x8x16xf32>
    %189 = arith.mulf %181, %188 : vector<2x8x16xf32>
    %190 = vector.shape_cast %3 : vector<8x16xf32> to vector<1x8x16xf32>
    %191 = vector.broadcast %190 : vector<1x8x16xf32> to vector<2x8x16xf32>
    %192 = arith.mulf %186, %191 : vector<2x8x16xf32>
    %193 = arith.addf %189, %192 : vector<2x8x16xf32>
    %194 = vector.extract_strided_slice %27 {offsets = [0, 0, 16], sizes = [2, 8, 16], strides = [1, 1, 1]} : vector<2x8x32xf32> to vector<2x8x16xf32>
    %195 = arith.truncf %194 : vector<2x8x16xf32> to vector<2x8x16xbf16>
    %196 = arith.truncf %180 : vector<2x8x16xf32> to vector<2x8x16xbf16>
    %197 = arith.truncf %193 : vector<2x8x16xf32> to vector<2x8x16xbf16>
    "tpu.trace_start"() <{level = 10 : i32, message = "bqd,bkd->bqk"}> : () -> ()
    %cst_46 = arith.constant dense<0.000000e+00> : vector<2x8x8xf32>
    %198 = tpu.matmul %196, %197, %cst_46 {dimension_numbers = #tpu.dot_dimension_numbers<[2], [2], [1], [1], [0, 0, 0, 1, 1, 1], [0], [0]>} : vector<2x8x16xbf16>, vector<2x8x16xbf16>, vector<2x8x8xf32> -> vector<2x8x8xf32>
    "tpu.trace_stop"() : () -> ()
    %199 = arith.addf %198, %4 : vector<2x8x8xf32>
    %cst_47 = arith.constant dense<0xFF800000> : vector<2x8xf32>
    %200 = vector.multi_reduction <maximumf>, %199, %cst_47 [2] : vector<2x8x8xf32> to vector<2x8xf32>
    %201 = vector.shape_cast %200 : vector<2x8xf32> to vector<2x8x1xf32>
    %202 = vector.broadcast %201 : vector<2x8x1xf32> to vector<2x8x8xf32>
    %203 = arith.subf %199, %202 : vector<2x8x8xf32>
    %204 = math.exp %203 : vector<2x8x8xf32>
    %cst_48 = arith.constant dense<0.000000e+00> : vector<2x8xf32>
    %205 = vector.multi_reduction <add>, %204, %cst_48 [2] : vector<2x8x8xf32> to vector<2x8xf32>
    %206 = vector.shape_cast %205 : vector<2x8xf32> to vector<2x8x1xf32>
    %207 = tpu.reciprocal %206 {approx = true} : vector<2x8x1xf32> -> vector<2x8x1xf32>
    %208 = vector.broadcast %207 : vector<2x8x1xf32> to vector<2x8x8xf32>
    %209 = arith.mulf %204, %208 : vector<2x8x8xf32>
    %210 = arith.truncf %209 : vector<2x8x8xf32> to vector<2x8x8xbf16>
    "tpu.trace_start"() <{level = 10 : i32, message = "bqk,bkd->bqd"}> : () -> ()
    %cst_49 = arith.constant dense<0.000000e+00> : vector<2x8x16xf32>
    %211 = tpu.matmul %210, %195, %cst_49 {dimension_numbers = #tpu.dot_dimension_numbers<[2], [1], [1], [2], [0, 0, 0, 1, 1, 2], [0], [0]>} : vector<2x8x8xbf16>, vector<2x8x16xbf16>, vector<2x8x16xf32> -> vector<2x8x16xf32>
    "tpu.trace_stop"() : () -> ()
    %212 = tpu.concatenate %73, %119, %165, %211 in 2 : vector<2x8x16xf32>, vector<2x8x16xf32>, vector<2x8x16xf32>, vector<2x8x16xf32> -> vector<2x8x64xf32>
    %213 = vector.shape_cast %212 : vector<2x8x64xf32> to vector<16x64xf32>
    %214 = arith.truncf %213 : vector<16x64xf32> to vector<16x64xbf16>
    %c0_50 = arith.constant 0 : index
    %c0_51 = arith.constant 0 : index
    %215 = vector.load %arg9[%c0_50, %c0_51] : memref<64x64xbf16, #tpu.memory_space<vmem>>, vector<64x64xbf16>
    %cst_52 = arith.constant dense<0.000000e+00> : vector<16x64xf32>
    %216 = tpu.matmul %214, %215, %cst_52 {dimension_numbers = #tpu.dot_dimension_numbers<[1], [0], [0], [1], [0, 0, 1, 1], [], []>} : vector<16x64xbf16>, vector<64x64xbf16>, vector<16x64xf32> -> vector<16x64xf32>
    %217 = arith.addf %1, %216 : vector<16x64xf32>
    %c0_53 = arith.constant 0 : index
    %c0_54 = arith.constant 0 : index
    %218 = vector.load %arg10[%c0_53, %c0_54] : memref<1x64xf32, #tpu.memory_space<vmem>>, vector<1x64xf32>
    %219 = arith.mulf %217, %217 : vector<16x64xf32>
    %cst_55 = arith.constant dense<0.000000e+00> : vector<16xf32>
    %220 = vector.multi_reduction <add>, %219, %cst_55 [1] : vector<16x64xf32> to vector<16xf32>
    %221 = vector.shape_cast %220 : vector<16xf32> to vector<16x1xf32>
    %cst_56 = arith.constant 6.400000e+01 : f32
    %222 = vector.broadcast %cst_56 : f32 to vector<16x1xf32>
    %223 = arith.divf %221, %222 : vector<16x1xf32>
    %cst_57 = arith.constant 9.99999974E-6 : f32
    %224 = vector.broadcast %cst_57 : f32 to vector<16x1xf32>
    %225 = arith.addf %223, %224 : vector<16x1xf32>
    %226 = math.rsqrt %225 : vector<16x1xf32>
    %227 = vector.broadcast %226 : vector<16x1xf32> to vector<16x64xf32>
    %228 = arith.mulf %217, %227 : vector<16x64xf32>
    %229 = vector.broadcast %218 : vector<1x64xf32> to vector<16x64xf32>
    %230 = arith.mulf %228, %229 : vector<16x64xf32>
    %231 = arith.truncf %230 : vector<16x64xf32> to vector<16x64xbf16>
    %c0_58 = arith.constant 0 : index
    %c0_59 = arith.constant 0 : index
    %232 = vector.load %arg11[%c0_58, %c0_59] : memref<64x128xbf16, #tpu.memory_space<vmem>>, vector<64x128xbf16>
    %cst_60 = arith.constant dense<0.000000e+00> : vector<16x128xf32>
    %233 = tpu.matmul %231, %232, %cst_60 {dimension_numbers = #tpu.dot_dimension_numbers<[1], [0], [0], [1], [0, 0, 1, 1], [], []>} : vector<16x64xbf16>, vector<64x128xbf16>, vector<16x128xf32> -> vector<16x128xf32>
    %c0_61 = arith.constant 0 : index
    %c0_62 = arith.constant 0 : index
    %234 = vector.load %arg12[%c0_61, %c0_62] : memref<64x128xbf16, #tpu.memory_space<vmem>>, vector<64x128xbf16>
    %cst_63 = arith.constant dense<0.000000e+00> : vector<16x128xf32>
    %235 = tpu.matmul %231, %234, %cst_63 {dimension_numbers = #tpu.dot_dimension_numbers<[1], [0], [0], [1], [0, 0, 1, 1], [], []>} : vector<16x64xbf16>, vector<64x128xbf16>, vector<16x128xf32> -> vector<16x128xf32>
    %236 = arith.negf %233 : vector<16x128xf32>
    %237 = math.exp %236 : vector<16x128xf32>
    %cst_64 = arith.constant 1.000000e+00 : f32
    %238 = vector.broadcast %cst_64 : f32 to vector<16x128xf32>
    %239 = arith.addf %238, %237 : vector<16x128xf32>
    %240 = arith.divf %238, %239 : vector<16x128xf32>
    %241 = arith.mulf %233, %240 : vector<16x128xf32>
    %242 = arith.mulf %241, %235 : vector<16x128xf32>
    %243 = arith.truncf %242 : vector<16x128xf32> to vector<16x128xbf16>
    %c0_65 = arith.constant 0 : index
    %c0_66 = arith.constant 0 : index
    %244 = vector.load %arg13[%c0_65, %c0_66] : memref<128x64xbf16, #tpu.memory_space<vmem>>, vector<128x64xbf16>
    %cst_67 = arith.constant dense<0.000000e+00> : vector<16x64xf32>
    %245 = tpu.matmul %243, %244, %cst_67 {dimension_numbers = #tpu.dot_dimension_numbers<[1], [0], [0], [1], [0, 0, 1, 1], [], []>} : vector<16x128xbf16>, vector<128x64xbf16>, vector<16x64xf32> -> vector<16x64xf32>
    %246 = arith.addf %217, %245 : vector<16x64xf32>
    %247 = vector.shape_cast %246 : vector<16x64xf32> to vector<2x8x64xf32>
    %c0_68 = arith.constant 0 : index
    %c0_69 = arith.constant 0 : index
    %c0_70 = arith.constant 0 : index
    %248 = vector.load %arg15[%c0_68, %c0_69, %c0_70] : memref<2x8x64xf32, #tpu.memory_space<vmem>>, vector<2x8x64xf32>
    tpu.vector_store %arg15[%c0_68, %c0_69, %c0_70], %247 {strides = array<i32>} : memref<2x8x64xf32, #tpu.memory_space<vmem>>, vector<2x8x64xf32>,
    return
  }
  func.func @transform_0(%arg0: i32) -> (i32, i32, i32) {
    %c0_i32 = arith.constant 0 : i32
    %c0_i32_0 = arith.constant 0 : i32
    %c0_i32_1 = arith.constant 0 : i32
    %c0_i32_2 = arith.constant 0 : i32
    return %c0_i32, %c0_i32_0, %c0_i32_1 : i32, i32, i32
  }
  func.func @transform_1(%arg0: i32) -> (i32, i32, i32) {
    %c0_i32 = arith.constant 0 : i32
    %c0_i32_0 = arith.constant 0 : i32
    %c0_i32_1 = arith.constant 0 : i32
    %c0_i32_2 = arith.constant 0 : i32
    return %c0_i32, %c0_i32_0, %c0_i32_1 : i32, i32, i32
  }
  func.func @transform_2(%arg0: i32) -> (i32, i32) {
    %c0_i32 = arith.constant 0 : i32
    %c0_i32_0 = arith.constant 0 : i32
    %c0_i32_1 = arith.constant 0 : i32
    return %c0_i32, %c0_i32_0 : i32, i32
  }
  func.func @transform_3(%arg0: i32) -> (i32, i32) {
    %c0_i32 = arith.constant 0 : i32
    %c0_i32_0 = arith.constant 0 : i32
    %c0_i32_1 = arith.constant 0 : i32
    return %c0_i32, %c0_i32_0 : i32, i32
  }
  func.func @transform_4(%arg0: i32) -> (i32, i32) {
    %c0_i32 = arith.constant 0 : i32
    %c0_i32_0 = arith.constant 0 : i32
    %c0_i32_1 = arith.constant 0 : i32
    return %c0_i32, %c0_i32_0 : i32, i32
  }
  func.func @transform_5(%arg0: i32) -> (i32, i32) {
    %c0_i32 = arith.constant 0 : i32
    %c0_i32_0 = arith.constant 0 : i32
    %c0_i32_1 = arith.constant 0 : i32
    return %c0_i32, %c0_i32_0 : i32, i32
  }
  func.func @transform_6(%arg0: i32) -> (i32, i32) {
    %c0_i32 = arith.constant 0 : i32
    %c0_i32_0 = arith.constant 0 : i32
    %c0_i32_1 = arith.constant 0 : i32
    return %c0_i32, %c0_i32_0 : i32, i32
  }
  func.func @transform_7(%arg0: i32) -> (i32, i32) {
    %c0_i32 = arith.constant 0 : i32
    %c0_i32_0 = arith.constant 0 : i32
    %c0_i32_1 = arith.constant 0 : i32
    return %c0_i32, %c0_i32_0 : i32, i32
  }
  func.func @transform_8(%arg0: i32) -> (i32, i32) {
    %c0_i32 = arith.constant 0 : i32
    %c0_i32_0 = arith.constant 0 : i32
    %c0_i32_1 = arith.constant 0 : i32
    return %c0_i32, %c0_i32_0 : i32, i32
  }
  func.func @transform_9(%arg0: i32) -> (i32, i32) {
    %c0_i32 = arith.constant 0 : i32
    %c0_i32_0 = arith.constant 0 : i32
    %c0_i32_1 = arith.constant 0 : i32
    return %c0_i32, %c0_i32_0 : i32, i32
  }
  func.func @transform_10(%arg0: i32) -> (i32, i32) {
    %c0_i32 = arith.constant 0 : i32
    %c0_i32_0 = arith.constant 0 : i32
    %c0_i32_1 = arith.constant 0 : i32
    return %c0_i32, %c0_i32_0 : i32, i32
  }
  func.func @transform_11(%arg0: i32) -> (i32, i32) {
    %c0_i32 = arith.constant 0 : i32
    %c0_i32_0 = arith.constant 0 : i32
    %c0_i32_1 = arith.constant 0 : i32
    return %c0_i32, %c0_i32_0 : i32, i32
  }
  func.func @transform_12(%arg0: i32) -> (i32, i32) {
    %c0_i32 = arith.constant 0 : i32
    %c0_i32_0 = arith.constant 0 : i32
    %c0_i32_1 = arith.constant 0 : i32
    return %c0_i32, %c0_i32_0 : i32, i32
  }
  func.func @transform_13(%arg0: i32) -> (i32, i32) {
    %c0_i32 = arith.constant 0 : i32
    %c0_i32_0 = arith.constant 0 : i32
    %c0_i32_1 = arith.constant 0 : i32
    return %c0_i32, %c0_i32_0 : i32, i32
  }
  func.func @transform_14(%arg0: i32) -> (i32, i32, i32) {
    %c0_i32 = arith.constant 0 : i32
    %c0_i32_0 = arith.constant 0 : i32
    %c0_i32_1 = arith.constant 0 : i32
    %c0_i32_2 = arith.constant 0 : i32
    return %c0_i32, %c0_i32_0, %c0_i32_1 : i32, i32, i32
  }
}

module attributes {stable_mosaic.version = 11 : i64} {
  func.func @_lm_block_kernel(%arg0: i32, %arg1: memref<2x8x64xf32, #tpu.memory_space<vmem>>, %arg2: memref<2x8x8xf32, #tpu.memory_space<vmem>>, %arg3: memref<8x16xf32, #tpu.memory_space<vmem>>, %arg4: memref<8x16xf32, #tpu.memory_space<vmem>>, %arg5: memref<1x64xf32, #tpu.memory_space<vmem>>, %arg6: memref<64x64xbf16, #tpu.memory_space<vmem>>, %arg7: memref<64x32xbf16, #tpu.memory_space<vmem>>, %arg8: memref<64x32xbf16, #tpu.memory_space<vmem>>, %arg9: memref<64x64xbf16, #tpu.memory_space<vmem>>, %arg10: memref<1x64xf32, #tpu.memory_space<vmem>>, %arg11: memref<64x128xbf16, #tpu.memory_space<vmem>>, %arg12: memref<64x128xbf16, #tpu.memory_space<vmem>>, %arg13: memref<128x64xbf16, #tpu.memory_space<vmem>>, %arg14: memref<1x64xf32, #tpu.memory_space<vmem>>, %arg15: memref<2x8x64xf32, #tpu.memory_space<vmem>>) attributes {dimension_semantics = [#tpu.dimension_semantics<arbitrary>], iteration_bounds = array<i64: 1>, scalar_prefetch = 0 : i64, scratch_operands = 0 : i64, tpu.core_type = #tpu.core_type<tc>, window_params = [{pipeline_mode = #tpu.pipeline_mode<synchronous>, transform_indices = @transform_0, window_bounds = array<i64: 2, 8, 64>}, {pipeline_mode = #tpu.pipeline_mode<synchronous>, transform_indices = @transform_1, window_bounds = array<i64: 2, 8, 8>}, {pipeline_mode = #tpu.pipeline_mode<synchronous>, transform_indices = @transform_2, window_bounds = array<i64: 8, 16>}, {pipeline_mode = #tpu.pipeline_mode<synchronous>, transform_indices = @transform_3, window_bounds = array<i64: 8, 16>}, {pipeline_mode = #tpu.pipeline_mode<synchronous>, transform_indices = @transform_4, window_bounds = array<i64: 1, 64>}, {pipeline_mode = #tpu.pipeline_mode<synchronous>, transform_indices = @transform_5, window_bounds = array<i64: 64, 64>}, {pipeline_mode = #tpu.pipeline_mode<synchronous>, transform_indices = @transform_6, window_bounds = array<i64: 64, 32>}, {pipeline_mode = #tpu.pipeline_mode<synchronous>, transform_indices = @transform_7, window_bounds = array<i64: 64, 32>}, {pipeline_mode = #tpu.pipeline_mode<synchronous>, transform_indices = @transform_8, window_bounds = array<i64: 64, 64>}, {pipeline_mode = #tpu.pipeline_mode<synchronous>, transform_indices = @transform_9, window_bounds = array<i64: 1, 64>}, {pipeline_mode = #tpu.pipeline_mode<synchronous>, transform_indices = @transform_10, window_bounds = array<i64: 64, 128>}, {pipeline_mode = #tpu.pipeline_mode<synchronous>, transform_indices = @transform_11, window_bounds = array<i64: 64, 128>}, {pipeline_mode = #tpu.pipeline_mode<synchronous>, transform_indices = @transform_12, window_bounds = array<i64: 128, 64>}, {pipeline_mode = #tpu.pipeline_mode<synchronous>, transform_indices = @transform_13, window_bounds = array<i64: 1, 64>}, {pipeline_mode = #tpu.pipeline_mode<synchronous>, transform_indices = @transform_14, window_bounds = array<i64: 2, 8, 64>}]} {
    %c0 = arith.constant 0 : index
    %c0_0 = arith.constant 0 : index
    %c0_1 = arith.constant 0 : index
    %0 = vector.load %arg1[%c0, %c0_0, %c0_1] : memref<2x8x64xf32, #tpu.memory_space<vmem>>, vector<2x8x64xf32>
    %1 = vector.shape_cast %0 : vector<2x8x64xf32> to vector<16x64xf32>
    %c0_2 = arith.constant 0 : index
    %c0_3 = arith.constant 0 : index
    %2 = vector.load %arg3[%c0_2, %c0_3] : memref<8x16xf32, #tpu.memory_space<vmem>>, vector<8x16xf32>
    %c0_4 = arith.constant 0 : index
    %c0_5 = arith.constant 0 : index
    %3 = vector.load %arg4[%c0_4, %c0_5] : memref<8x16xf32, #tpu.memory_space<vmem>>, vector<8x16xf32>
    %c0_6 = arith.constant 0 : index
    %c0_7 = arith.constant 0 : index
    %c0_8 = arith.constant 0 : index
    %4 = vector.load %arg2[%c0_6, %c0_7, %c0_8] : memref<2x8x8xf32, #tpu.memory_space<vmem>>, vector<2x8x8xf32>
    %c0_9 = arith.constant 0 : index
    %c0_10 = arith.constant 0 : index
    %5 = vector.load %arg5[%c0_9, %c0_10] : memref<1x64xf32, #tpu.memory_space<vmem>>, vector<1x64xf32>
    %6 = arith.mulf %1, %1 : vector<16x64xf32>
    %cst = arith.constant dense<0.000000e+00> : vector<16xf32>
    %7 = vector.multi_reduction <add>, %6, %cst [1] : vector<16x64xf32> to vector<16xf32>
    %8 = vector.shape_cast %7 : vector<16xf32> to vector<16x1xf32>
    %cst_11 = arith.constant 6.400000e+01 : f32
    %9 = vector.broadcast %cst_11 : f32 to vector<16x1xf32>
    %10 = arith.divf %8, %9 : vector<16x1xf32>
    %cst_12 = arith.constant 9.99999974E-6 : f32
    %11 = vector.broadcast %cst_12 : f32 to vector<16x1xf32>
    %12 = arith.addf %10, %11 : vector<16x1xf32>
    %13 = math.rsqrt %12 : vector<16x1xf32>
    %14 = vector.broadcast %13 : vector<16x1xf32> to vector<16x64xf32>
    %15 = arith.mulf %1, %14 : vector<16x64xf32>
    %16 = vector.broadcast %5 : vector<1x64xf32> to vector<16x64xf32>
    %17 = arith.mulf %15, %16 : vector<16x64xf32>
    %18 = arith.truncf %17 : vector<16x64xf32> to vector<16x64xbf16>
    %c0_13 = arith.constant 0 : index
    %c0_14 = arith.constant 0 : index
    %19 = vector.load %arg6[%c0_13, %c0_14] : memref<64x64xbf16, #tpu.memory_space<vmem>>, vector<64x64xbf16>
    %cst_15 = arith.constant dense<0.000000e+00> : vector<16x64xf32>
    %20 = tpu.matmul %18, %19, %cst_15 {dimension_numbers = #tpu.dot_dimension_numbers<[1], [0], [0], [1], [0, 0, 1, 1], [], []>} : vector<16x64xbf16>, vector<64x64xbf16>, vector<16x64xf32> -> vector<16x64xf32>
    %21 = vector.shape_cast %20 : vector<16x64xf32> to vector<2x8x64xf32>
    %c0_16 = arith.constant 0 : index
    %c0_17 = arith.constant 0 : index
    %22 = vector.load %arg7[%c0_16, %c0_17] : memref<64x32xbf16, #tpu.memory_space<vmem>>, vector<64x32xbf16>
    %cst_18 = arith.constant dense<0.000000e+00> : vector<16x32xf32>
    %23 = tpu.matmul %18, %22, %cst_18 {dimension_numbers = #tpu.dot_dimension_numbers<[1], [0], [0], [1], [0, 0, 1, 1], [], []>} : vector<16x64xbf16>, vector<64x32xbf16>, vector<16x32xf32> -> vector<16x32xf32>
    %24 = vector.shape_cast %23 : vector<16x32xf32> to vector<2x8x32xf32>
    %c0_19 = arith.constant 0 : index
    %c0_20 = arith.constant 0 : index
    %25 = vector.load %arg8[%c0_19, %c0_20] : memref<64x32xbf16, #tpu.memory_space<vmem>>, vector<64x32xbf16>
    %cst_21 = arith.constant dense<0.000000e+00> : vector<16x32xf32>
    %26 = tpu.matmul %18, %25, %cst_21 {dimension_numbers = #tpu.dot_dimension_numbers<[1], [0], [0], [1], [0, 0, 1, 1], [], []>} : vector<16x64xbf16>, vector<64x32xbf16>, vector<16x32xf32> -> vector<16x32xf32>
    %27 = vector.shape_cast %26 : vector<16x32xf32> to vector<2x8x32xf32>
    %28 = vector.extract_strided_slice %21 {offsets = [0, 0, 0], sizes = [2, 8, 16], strides = [1, 1, 1]} : vector<2x8x64xf32> to vector<2x8x16xf32>
    %29 = vector.extract_strided_slice %28 {offsets = [0, 0, 0], sizes = [2, 8, 8], strides = [1, 1, 1]} : vector<2x8x16xf32> to vector<2x8x8xf32>
    %30 = vector.extract_strided_slice %28 {offsets = [0, 0, 8], sizes = [2, 8, 8], strides = [1, 1, 1]} : vector<2x8x16xf32> to vector<2x8x8xf32>
    %cst_22 = arith.constant 0.000000e+00 : f32
    %31 = vector.broadcast %cst_22 : f32 to vector<2x8x8xf32>
    %32 = arith.subf %31, %30 : vector<2x8x8xf32>
    %33 = tpu.concatenate %32, %29 in 2 : vector<2x8x8xf32>, vector<2x8x8xf32> -> vector<2x8x16xf32>
    %34 = vector.shape_cast %2 : vector<8x16xf32> to vector<1x8x16xf32>
    %35 = vector.broadcast %34 : vector<1x8x16xf32> to vector<2x8x16xf32>
    %36 = arith.mulf %28, %35 : vector<2x8x16xf32>
    %37 = vector.shape_cast %3 : vector<8x16xf32> to vector<1x8x16xf32>
    %38 = vector.broadcast %37 : vector<1x8x16xf32> to vector<2x8x16xf32>
    %39 = arith.mulf %33, %38 : vector<2x8x16xf32>
    %40 = arith.addf %36, %39 : vector<2x8x16xf32>
    %cst_23 = arith.constant 2.500000e-01 : f32
    %41 = vector.broadcast %cst_23 : f32 to vector<2x8x16xf32>
    %42 = arith.mulf %40, %41 : vector<2x8x16xf32>
    %43 = vector.extract_strided_slice %24 {offsets = [0, 0, 0], sizes = [2, 8, 16], strides = [1, 1, 1]} : vector<2x8x32xf32> to vector<2x8x16xf32>
    %44 = vector.extract_strided_slice %43 {offsets = [0, 0, 0], sizes = [2, 8, 8], strides = [1, 1, 1]} : vector<2x8x16xf32> to vector<2x8x8xf32>
    %45 = vector.extract_strided_slice %43 {offsets = [0, 0, 8], sizes = [2, 8, 8], strides = [1, 1, 1]} : vector<2x8x16xf32> to vector<2x8x8xf32>
    %cst_24 = arith.constant 0.000000e+00 : f32
    %46 = vector.broadcast %cst_24 : f32 to vector<2x8x8xf32>
    %47 = arith.subf %46, %45 : vector<2x8x8xf32>
    %48 = tpu.concatenate %47, %44 in 2 : vector<2x8x8xf32>, vector<2x8x8xf32> -> vector<2x8x16xf32>
    %49 = vector.shape_cast %2 : vector<8x16xf32> to vector<1x8x16xf32>
    %50 = vector.broadcast %49 : vector<1x8x16xf32> to vector<2x8x16xf32>
    %51 = arith.mulf %43, %50 : vector<2x8x16xf32>
    %52 = vector.shape_cast %3 : vector<8x16xf32> to vector<1x8x16xf32>
    %53 = vector.broadcast %52 : vector<1x8x16xf32> to vector<2x8x16xf32>
    %54 = arith.mulf %48, %53 : vector<2x8x16xf32>
    %55 = arith.addf %51, %54 : vector<2x8x16xf32>
    %56 = vector.extract_strided_slice %27 {offsets = [0, 0, 0], sizes = [2, 8, 16], strides = [1, 1, 1]} : vector<2x8x32xf32> to vector<2x8x16xf32>
    %57 = arith.truncf %56 : vector<2x8x16xf32> to vector<2x8x16xbf16>
    %58 = arith.truncf %42 : vector<2x8x16xf32> to vector<2x8x16xbf16>
    %59 = arith.truncf %55 : vector<2x8x16xf32> to vector<2x8x16xbf16>
    "tpu.trace_start"() <{level = 10 : i32, message = "bqd,bkd->bqk"}> : () -> ()
    %cst_25 = arith.constant dense<0.000000e+00> : vector<2x8x8xf32>
    %60 = tpu.matmul %58, %59, %cst_25 {dimension_numbers = #tpu.dot_dimension_numbers<[2], [2], [1], [1], [0, 0, 0, 1, 1, 1], [0], [0]>} : vector<2x8x16xbf16>, vector<2x8x16xbf16>, vector<2x8x8xf32> -> vector<2x8x8xf32>
    "tpu.trace_stop"() : () -> ()
    %61 = arith.addf %60, %4 : vector<2x8x8xf32>
    %cst_26 = arith.constant dense<0xFF800000> : vector<2x8xf32>
    %62 = vector.multi_reduction <maximumf>, %61, %cst_26 [2] : vector<2x8x8xf32> to vector<2x8xf32>
    %63 = vector.shape_cast %62 : vector<2x8xf32> to vector<2x8x1xf32>
    %64 = vector.broadcast %63 : vector<2x8x1xf32> to vector<2x8x8xf32>
    %65 = arith.subf %61, %64 : vector<2x8x8xf32>
    %66 = math.exp %65 : vector<2x8x8xf32>
    %cst_27 = arith.constant dense<0.000000e+00> : vector<2x8xf32>
    %67 = vector.multi_reduction <add>, %66, %cst_27 [2] : vector<2x8x8xf32> to vector<2x8xf32>
    %68 = vector.shape_cast %67 : vector<2x8xf32> to vector<2x8x1xf32>
    %69 = tpu.reciprocal %68 {approx = true} : vector<2x8x1xf32> -> vector<2x8x1xf32>
    %70 = vector.broadcast %69 : vector<2x8x1xf32> to vector<2x8x8xf32>
    %71 = arith.mulf %66, %70 : vector<2x8x8xf32>
    %72 = arith.truncf %71 : vector<2x8x8xf32> to vector<2x8x8xbf16>
    "tpu.trace_start"() <{level = 10 : i32, message = "bqk,bkd->bqd"}> : () -> ()
    %cst_28 = arith.constant dense<0.000000e+00> : vector<2x8x16xf32>
    %73 = tpu.matmul %72, %57, %cst_28 {dimension_numbers = #tpu.dot_dimension_numbers<[2], [1], [1], [2], [0, 0, 0, 1, 1, 2], [0], [0]>} : vector<2x8x8xbf16>, vector<2x8x16xbf16>, vector<2x8x16xf32> -> vector<2x8x16xf32>
    "tpu.trace_stop"() : () -> ()
    %74 = vector.extract_strided_slice %21 {offsets = [0, 0, 16], sizes = [2, 8, 16], strides = [1, 1, 1]} : vector<2x8x64xf32> to vector<2x8x16xf32>
    %75 = vector.extract_strided_slice %74 {offsets = [0, 0, 0], sizes = [2, 8, 8], strides = [1, 1, 1]} : vector<2x8x16xf32> to vector<2x8x8xf32>
    %76 = vector.extract_strided_slice %74 {offsets = [0, 0, 8], sizes = [2, 8, 8], strides = [1, 1, 1]} : vector<2x8x16xf32> to vector<2x8x8xf32>
    %cst_29 = arith.constant 0.000000e+00 : f32
    %77 = vector.broadcast %cst_29 : f32 to vector<2x8x8xf32>
    %78 = arith.subf %77, %76 : vector<2x8x8xf32>
    %79 = tpu.concatenate %78, %75 in 2 : vector<2x8x8xf32>, vector<2x8x8xf32> -> vector<2x8x16xf32>
    %80 = vector.shape_cast %2 : vector<8x16xf32> to vector<1x8x16xf32>
    %81 = vector.broadcast %80 : vector<1x8x16xf32> to vector<2x8x16xf32>
    %82 = arith.mulf %74, %81 : vector<2x8x16xf32>
    %83 = vector.shape_cast %3 : vector<8x16xf32> to vector<1x8x16xf32>
    %84 = vector.broadcast %83 : vector<1x8x16xf32> to vector<2x8x16xf32>
    %85 = arith.mulf %79, %84 : vector<2x8x16xf32>
    %86 = arith.addf %82, %85 : vector<2x8x16xf32>
    %cst_30 = arith.constant 2.500000e-01 : f32
    %87 = vector.broadcast %cst_30 : f32 to vector<2x8x16xf32>
    %88 = arith.mulf %86, %87 : vector<2x8x16xf32>
    %89 = vector.extract_strided_slice %24 {offsets = [0, 0, 0], sizes = [2, 8, 16], strides = [1, 1, 1]} : vector<2x8x32xf32> to vector<2x8x16xf32>
    %90 = vector.extract_strided_slice %89 {offsets = [0, 0, 0], sizes = [2, 8, 8], strides = [1, 1, 1]} : vector<2x8x16xf32> to vector<2x8x8xf32>
    %91 = vector.extract_strided_slice %89 {offsets = [0, 0, 8], sizes = [2, 8, 8], strides = [1, 1, 1]} : vector<2x8x16xf32> to vector<2x8x8xf32>
    %cst_31 = arith.constant 0.000000e+00 : f32
    %92 = vector.broadcast %cst_31 : f32 to vector<2x8x8xf32>
    %93 = arith.subf %92, %91 : vector<2x8x8xf32>
    %94 = tpu.concatenate %93, %90 in 2 : vector<2x8x8xf32>, vector<2x8x8xf32> -> vector<2x8x16xf32>
    %95 = vector.shape_cast %2 : vector<8x16xf32> to vector<1x8x16xf32>
    %96 = vector.broadcast %95 : vector<1x8x16xf32> to vector<2x8x16xf32>
    %97 = arith.mulf %89, %96 : vector<2x8x16xf32>
    %98 = vector.shape_cast %3 : vector<8x16xf32> to vector<1x8x16xf32>
    %99 = vector.broadcast %98 : vector<1x8x16xf32> to vector<2x8x16xf32>
    %100 = arith.mulf %94, %99 : vector<2x8x16xf32>
    %101 = arith.addf %97, %100 : vector<2x8x16xf32>
    %102 = vector.extract_strided_slice %27 {offsets = [0, 0, 0], sizes = [2, 8, 16], strides = [1, 1, 1]} : vector<2x8x32xf32> to vector<2x8x16xf32>
    %103 = arith.truncf %102 : vector<2x8x16xf32> to vector<2x8x16xbf16>
    %104 = arith.truncf %88 : vector<2x8x16xf32> to vector<2x8x16xbf16>
    %105 = arith.truncf %101 : vector<2x8x16xf32> to vector<2x8x16xbf16>
    "tpu.trace_start"() <{level = 10 : i32, message = "bqd,bkd->bqk"}> : () -> ()
    %cst_32 = arith.constant dense<0.000000e+00> : vector<2x8x8xf32>
    %106 = tpu.matmul %104, %105, %cst_32 {dimension_numbers = #tpu.dot_dimension_numbers<[2], [2], [1], [1], [0, 0, 0, 1, 1, 1], [0], [0]>} : vector<2x8x16xbf16>, vector<2x8x16xbf16>, vector<2x8x8xf32> -> vector<2x8x8xf32>
    "tpu.trace_stop"() : () -> ()
    %107 = arith.addf %106, %4 : vector<2x8x8xf32>
    %cst_33 = arith.constant dense<0xFF800000> : vector<2x8xf32>
    %108 = vector.multi_reduction <maximumf>, %107, %cst_33 [2] : vector<2x8x8xf32> to vector<2x8xf32>
    %109 = vector.shape_cast %108 : vector<2x8xf32> to vector<2x8x1xf32>
    %110 = vector.broadcast %109 : vector<2x8x1xf32> to vector<2x8x8xf32>
    %111 = arith.subf %107, %110 : vector<2x8x8xf32>
    %112 = math.exp %111 : vector<2x8x8xf32>
    %cst_34 = arith.constant dense<0.000000e+00> : vector<2x8xf32>
    %113 = vector.multi_reduction <add>, %112, %cst_34 [2] : vector<2x8x8xf32> to vector<2x8xf32>
    %114 = vector.shape_cast %113 : vector<2x8xf32> to vector<2x8x1xf32>
    %115 = tpu.reciprocal %114 {approx = true} : vector<2x8x1xf32> -> vector<2x8x1xf32>
    %116 = vector.broadcast %115 : vector<2x8x1xf32> to vector<2x8x8xf32>
    %117 = arith.mulf %112, %116 : vector<2x8x8xf32>
    %118 = arith.truncf %117 : vector<2x8x8xf32> to vector<2x8x8xbf16>
    "tpu.trace_start"() <{level = 10 : i32, message = "bqk,bkd->bqd"}> : () -> ()
    %cst_35 = arith.constant dense<0.000000e+00> : vector<2x8x16xf32>
    %119 = tpu.matmul %118, %103, %cst_35 {dimension_numbers = #tpu.dot_dimension_numbers<[2], [1], [1], [2], [0, 0, 0, 1, 1, 2], [0], [0]>} : vector<2x8x8xbf16>, vector<2x8x16xbf16>, vector<2x8x16xf32> -> vector<2x8x16xf32>
    "tpu.trace_stop"() : () -> ()
    %120 = vector.extract_strided_slice %21 {offsets = [0, 0, 32], sizes = [2, 8, 16], strides = [1, 1, 1]} : vector<2x8x64xf32> to vector<2x8x16xf32>
    %121 = vector.extract_strided_slice %120 {offsets = [0, 0, 0], sizes = [2, 8, 8], strides = [1, 1, 1]} : vector<2x8x16xf32> to vector<2x8x8xf32>
    %122 = vector.extract_strided_slice %120 {offsets = [0, 0, 8], sizes = [2, 8, 8], strides = [1, 1, 1]} : vector<2x8x16xf32> to vector<2x8x8xf32>
    %cst_36 = arith.constant 0.000000e+00 : f32
    %123 = vector.broadcast %cst_36 : f32 to vector<2x8x8xf32>
    %124 = arith.subf %123, %122 : vector<2x8x8xf32>
    %125 = tpu.concatenate %124, %121 in 2 : vector<2x8x8xf32>, vector<2x8x8xf32> -> vector<2x8x16xf32>
    %126 = vector.shape_cast %2 : vector<8x16xf32> to vector<1x8x16xf32>
    %127 = vector.broadcast %126 : vector<1x8x16xf32> to vector<2x8x16xf32>
    %128 = arith.mulf %120, %127 : vector<2x8x16xf32>
    %129 = vector.shape_cast %3 : vector<8x16xf32> to vector<1x8x16xf32>
    %130 = vector.broadcast %129 : vector<1x8x16xf32> to vector<2x8x16xf32>
    %131 = arith.mulf %125, %130 : vector<2x8x16xf32>
    %132 = arith.addf %128, %131 : vector<2x8x16xf32>
    %cst_37 = arith.constant 2.500000e-01 : f32
    %133 = vector.broadcast %cst_37 : f32 to vector<2x8x16xf32>
    %134 = arith.mulf %132, %133 : vector<2x8x16xf32>
    %135 = vector.extract_strided_slice %24 {offsets = [0, 0, 16], sizes = [2, 8, 16], strides = [1, 1, 1]} : vector<2x8x32xf32> to vector<2x8x16xf32>
    %136 = vector.extract_strided_slice %135 {offsets = [0, 0, 0], sizes = [2, 8, 8], strides = [1, 1, 1]} : vector<2x8x16xf32> to vector<2x8x8xf32>
    %137 = vector.extract_strided_slice %135 {offsets = [0, 0, 8], sizes = [2, 8, 8], strides = [1, 1, 1]} : vector<2x8x16xf32> to vector<2x8x8xf32>
    %cst_38 = arith.constant 0.000000e+00 : f32
    %138 = vector.broadcast %cst_38 : f32 to vector<2x8x8xf32>
    %139 = arith.subf %138, %137 : vector<2x8x8xf32>
    %140 = tpu.concatenate %139, %136 in 2 : vector<2x8x8xf32>, vector<2x8x8xf32> -> vector<2x8x16xf32>
    %141 = vector.shape_cast %2 : vector<8x16xf32> to vector<1x8x16xf32>
    %142 = vector.broadcast %141 : vector<1x8x16xf32> to vector<2x8x16xf32>
    %143 = arith.mulf %135, %142 : vector<2x8x16xf32>
    %144 = vector.shape_cast %3 : vector<8x16xf32> to vector<1x8x16xf32>
    %145 = vector.broadcast %144 : vector<1x8x16xf32> to vector<2x8x16xf32>
    %146 = arith.mulf %140, %145 : vector<2x8x16xf32>
    %147 = arith.addf %143, %146 : vector<2x8x16xf32>
    %148 = vector.extract_strided_slice %27 {offsets = [0, 0, 16], sizes = [2, 8, 16], strides = [1, 1, 1]} : vector<2x8x32xf32> to vector<2x8x16xf32>
    %149 = arith.truncf %148 : vector<2x8x16xf32> to vector<2x8x16xbf16>
    %150 = arith.truncf %134 : vector<2x8x16xf32> to vector<2x8x16xbf16>
    %151 = arith.truncf %147 : vector<2x8x16xf32> to vector<2x8x16xbf16>
    "tpu.trace_start"() <{level = 10 : i32, message = "bqd,bkd->bqk"}> : () -> ()
    %cst_39 = arith.constant dense<0.000000e+00> : vector<2x8x8xf32>
    %152 = tpu.matmul %150, %151, %cst_39 {dimension_numbers = #tpu.dot_dimension_numbers<[2], [2], [1], [1], [0, 0, 0, 1, 1, 1], [0], [0]>} : vector<2x8x16xbf16>, vector<2x8x16xbf16>, vector<2x8x8xf32> -> vector<2x8x8xf32>
    "tpu.trace_stop"() : () -> ()
    %153 = arith.addf %152, %4 : vector<2x8x8xf32>
    %cst_40 = arith.constant dense<0xFF800000> : vector<2x8xf32>
    %154 = vector.multi_reduction <maximumf>, %153, %cst_40 [2] : vector<2x8x8xf32> to vector<2x8xf32>
    %155 = vector.shape_cast %154 : vector<2x8xf32> to vector<2x8x1xf32>
    %156 = vector.broadcast %155 : vector<2x8x1xf32> to vector<2x8x8xf32>
    %157 = arith.subf %153, %156 : vector<2x8x8xf32>
    %158 = math.exp %157 : vector<2x8x8xf32>
    %cst_41 = arith.constant dense<0.000000e+00> : vector<2x8xf32>
    %159 = vector.multi_reduction <add>, %158, %cst_41 [2] : vector<2x8x8xf32> to vector<2x8xf32>
    %160 = vector.shape_cast %159 : vector<2x8xf32> to vector<2x8x1xf32>
    %161 = tpu.reciprocal %160 {approx = true} : vector<2x8x1xf32> -> vector<2x8x1xf32>
    %162 = vector.broadcast %161 : vector<2x8x1xf32> to vector<2x8x8xf32>
    %163 = arith.mulf %158, %162 : vector<2x8x8xf32>
    %164 = arith.truncf %163 : vector<2x8x8xf32> to vector<2x8x8xbf16>
    "tpu.trace_start"() <{level = 10 : i32, message = "bqk,bkd->bqd"}> : () -> ()
    %cst_42 = arith.constant dense<0.000000e+00> : vector<2x8x16xf32>
    %165 = tpu.matmul %164, %149, %cst_42 {dimension_numbers = #tpu.dot_dimension_numbers<[2], [1], [1], [2], [0, 0, 0, 1, 1, 2], [0], [0]>} : vector<2x8x8xbf16>, vector<2x8x16xbf16>, vector<2x8x16xf32> -> vector<2x8x16xf32>
    "tpu.trace_stop"() : () -> ()
    %166 = vector.extract_strided_slice %21 {offsets = [0, 0, 48], sizes = [2, 8, 16], strides = [1, 1, 1]} : vector<2x8x64xf32> to vector<2x8x16xf32>
    %167 = vector.extract_strided_slice %166 {offsets = [0, 0, 0], sizes = [2, 8, 8], strides = [1, 1, 1]} : vector<2x8x16xf32> to vector<2x8x8xf32>
    %168 = vector.extract_strided_slice %166 {offsets = [0, 0, 8], sizes = [2, 8, 8], strides = [1, 1, 1]} : vector<2x8x16xf32> to vector<2x8x8xf32>
    %cst_43 = arith.constant 0.000000e+00 : f32
    %169 = vector.broadcast %cst_43 : f32 to vector<2x8x8xf32>
    %170 = arith.subf %169, %168 : vector<2x8x8xf32>
    %171 = tpu.concatenate %170, %167 in 2 : vector<2x8x8xf32>, vector<2x8x8xf32> -> vector<2x8x16xf32>
    %172 = vector.shape_cast %2 : vector<8x16xf32> to vector<1x8x16xf32>
    %173 = vector.broadcast %172 : vector<1x8x16xf32> to vector<2x8x16xf32>
    %174 = arith.mulf %166, %173 : vector<2x8x16xf32>
    %175 = vector.shape_cast %3 : vector<8x16xf32> to vector<1x8x16xf32>
    %176 = vector.broadcast %175 : vector<1x8x16xf32> to vector<2x8x16xf32>
    %177 = arith.mulf %171, %176 : vector<2x8x16xf32>
    %178 = arith.addf %174, %177 : vector<2x8x16xf32>
    %cst_44 = arith.constant 2.500000e-01 : f32
    %179 = vector.broadcast %cst_44 : f32 to vector<2x8x16xf32>
    %180 = arith.mulf %178, %179 : vector<2x8x16xf32>
    %181 = vector.extract_strided_slice %24 {offsets = [0, 0, 16], sizes = [2, 8, 16], strides = [1, 1, 1]} : vector<2x8x32xf32> to vector<2x8x16xf32>
    %182 = vector.extract_strided_slice %181 {offsets = [0, 0, 0], sizes = [2, 8, 8], strides = [1, 1, 1]} : vector<2x8x16xf32> to vector<2x8x8xf32>
    %183 = vector.extract_strided_slice %181 {offsets = [0, 0, 8], sizes = [2, 8, 8], strides = [1, 1, 1]} : vector<2x8x16xf32> to vector<2x8x8xf32>
    %cst_45 = arith.constant 0.000000e+00 : f32
    %184 = vector.broadcast %cst_45 : f32 to vector<2x8x8xf32>
    %185 = arith.subf %184, %183 : vector<2x8x8xf32>
    %186 = tpu.concatenate %185, %182 in 2 : vector<2x8x8xf32>, vector<2x8x8xf32> -> vector<2x8x16xf32>
    %187 = vector.shape_cast %2 : vector<8x16xf32> to vector<1x8x16xf32>
    %188 = vector.broadcast %187 : vector<1x8x16xf32> to vector<2x8x16xf32>
    %189 = arith.mulf %181, %188 : vector<2x8x16xf32>
    %190 = vector.shape_cast %3 : vector<8x16xf32> to vector<1x8x16xf32>
    %191 = vector.broadcast %190 : vector<1x8x16xf32> to vector<2x8x16xf32>
    %192 = arith.mulf %186, %191 : vector<2x8x16xf32>
    %193 = arith.addf %189, %192 : vector<2x8x16xf32>
    %194 = vector.extract_strided_slice %27 {offsets = [0, 0, 16], sizes = [2, 8, 16], strides = [1, 1, 1]} : vector<2x8x32xf32> to vector<2x8x16xf32>
    %195 = arith.truncf %194 : vector<2x8x16xf32> to vector<2x8x16xbf16>
    %196 = arith.truncf %180 : vector<2x8x16xf32> to vector<2x8x16xbf16>
    %197 = arith.truncf %193 : vector<2x8x16xf32> to vector<2x8x16xbf16>
    "tpu.trace_start"() <{level = 10 : i32, message = "bqd,bkd->bqk"}> : () -> ()
    %cst_46 = arith.constant dense<0.000000e+00> : vector<2x8x8xf32>
    %198 = tpu.matmul %196, %197, %cst_46 {dimension_numbers = #tpu.dot_dimension_numbers<[2], [2], [1], [1], [0, 0, 0, 1, 1, 1], [0], [0]>} : vector<2x8x16xbf16>, vector<2x8x16xbf16>, vector<2x8x8xf32> -> vector<2x8x8xf32>
    "tpu.trace_stop"() : () -> ()
    %199 = arith.addf %198, %4 : vector<2x8x8xf32>
    %cst_47 = arith.constant dense<0xFF800000> : vector<2x8xf32>
    %200 = vector.multi_reduction <maximumf>, %199, %cst_47 [2] : vector<2x8x8xf32> to vector<2x8xf32>
    %201 = vector.shape_cast %200 : vector<2x8xf32> to vector<2x8x1xf32>
    %202 = vector.broadcast %201 : vector<2x8x1xf32> to vector<2x8x8xf32>
    %203 = arith.subf %199, %202 : vector<2x8x8xf32>
    %204 = math.exp %203 : vector<2x8x8xf32>
    %cst_48 = arith.constant dense<0.000000e+00> : vector<2x8xf32>
    %205 = vector.multi_reduction <add>, %204, %cst_48 [2] : vector<2x8x8xf32> to vector<2x8xf32>
    %206 = vector.shape_cast %205 : vector<2x8xf32> to vector<2x8x1xf32>
    %207 = tpu.reciprocal %206 {approx = true} : vector<2x8x1xf32> -> vector<2x8x1xf32>
    %208 = vector.broadcast %207 : vector<2x8x1xf32> to vector<2x8x8xf32>
    %209 = arith.mulf %204, %208 : vector<2x8x8xf32>
    %210 = arith.truncf %209 : vector<2x8x8xf32> to vector<2x8x8xbf16>
    "tpu.trace_start"() <{level = 10 : i32, message = "bqk,bkd->bqd"}> : () -> ()
    %cst_49 = arith.constant dense<0.000000e+00> : vector<2x8x16xf32>
    %211 = tpu.matmul %210, %195, %cst_49 {dimension_numbers = #tpu.dot_dimension_numbers<[2], [1], [1], [2], [0, 0, 0, 1, 1, 2], [0], [0]>} : vector<2x8x8xbf16>, vector<2x8x16xbf16>, vector<2x8x16xf32> -> vector<2x8x16xf32>
    "tpu.trace_stop"() : () -> ()
    %212 = tpu.concatenate %73, %119, %165, %211 in 2 : vector<2x8x16xf32>, vector<2x8x16xf32>, vector<2x8x16xf32>, vector<2x8x16xf32> -> vector<2x8x64xf32>
    %213 = vector.shape_cast %212 : vector<2x8x64xf32> to vector<16x64xf32>
    %214 = arith.truncf %213 : vector<16x64xf32> to vector<16x64xbf16>
    %c0_50 = arith.constant 0 : index
    %c0_51 = arith.constant 0 : index
    %215 = vector.load %arg9[%c0_50, %c0_51] : memref<64x64xbf16, #tpu.memory_space<vmem>>, vector<64x64xbf16>
    %cst_52 = arith.constant dense<0.000000e+00> : vector<16x64xf32>
    %216 = tpu.matmul %214, %215, %cst_52 {dimension_numbers = #tpu.dot_dimension_numbers<[1], [0], [0], [1], [0, 0, 1, 1], [], []>} : vector<16x64xbf16>, vector<64x64xbf16>, vector<16x64xf32> -> vector<16x64xf32>
    %217 = arith.addf %1, %216 : vector<16x64xf32>
    %c0_53 = arith.constant 0 : index
    %c0_54 = arith.constant 0 : index
    %218 = vector.load %arg10[%c0_53, %c0_54] : memref<1x64xf32, #tpu.memory_space<vmem>>, vector<1x64xf32>
    %219 = arith.mulf %217, %217 : vector<16x64xf32>
    %cst_55 = arith.constant dense<0.000000e+00> : vector<16xf32>
    %220 = vector.multi_reduction <add>, %219, %cst_55 [1] : vector<16x64xf32> to vector<16xf32>
    %221 = vector.shape_cast %220 : vector<16xf32> to vector<16x1xf32>
    %cst_56 = arith.constant 6.400000e+01 : f32
    %222 = vector.broadcast %cst_56 : f32 to vector<16x1xf32>
    %223 = arith.divf %221, %222 : vector<16x1xf32>
    %cst_57 = arith.constant 9.99999974E-6 : f32
    %224 = vector.broadcast %cst_57 : f32 to vector<16x1xf32>
    %225 = arith.addf %223, %224 : vector<16x1xf32>
    %226 = math.rsqrt %225 : vector<16x1xf32>
    %227 = vector.broadcast %226 : vector<16x1xf32> to vector<16x64xf32>
    %228 = arith.mulf %217, %227 : vector<16x64xf32>
    %229 = vector.broadcast %218 : vector<1x64xf32> to vector<16x64xf32>
    %230 = arith.mulf %228, %229 : vector<16x64xf32>
    %231 = arith.truncf %230 : vector<16x64xf32> to vector<16x64xbf16>
    %c0_58 = arith.constant 0 : index
    %c0_59 = arith.constant 0 : index
    %232 = vector.load %arg11[%c0_58, %c0_59] : memref<64x128xbf16, #tpu.memory_space<vmem>>, vector<64x128xbf16>
    %cst_60 = arith.constant dense<0.000000e+00> : vector<16x128xf32>
    %233 = tpu.matmul %231, %232, %cst_60 {dimension_numbers = #tpu.dot_dimension_numbers<[1], [0], [0], [1], [0, 0, 1, 1], [], []>} : vector<16x64xbf16>, vector<64x128xbf16>, vector<16x128xf32> -> vector<16x128xf32>
    %c0_61 = arith.constant 0 : index
    %c0_62 = arith.constant 0 : index
    %234 = vector.load %arg12[%c0_61, %c0_62] : memref<64x128xbf16, #tpu.memory_space<vmem>>, vector<64x128xbf16>
    %cst_63 = arith.constant dense<0.000000e+00> : vector<16x128xf32>
    %235 = tpu.matmul %231, %234, %cst_63 {dimension_numbers = #tpu.dot_dimension_numbers<[1], [0], [0], [1], [0, 0, 1, 1], [], []>} : vector<16x64xbf16>, vector<64x128xbf16>, vector<16x128xf32> -> vector<16x128xf32>
    %236 = arith.negf %233 : vector<16x128xf32>
    %237 = math.exp %236 : vector<16x128xf32>
    %cst_64 = arith.constant 1.000000e+00 : f32
    %238 = vector.broadcast %cst_64 : f32 to vector<16x128xf32>
    %239 = arith.addf %238, %237 : vector<16x128xf32>
    %240 = arith.divf %238, %239 : vector<16x128xf32>
    %241 = arith.mulf %233, %240 : vector<16x128xf32>
    %242 = arith.mulf %241, %235 : vector<16x128xf32>
    %243 = arith.truncf %242 : vector<16x128xf32> to vector<16x128xbf16>
    %c0_65 = arith.constant 0 : index
    %c0_66 = arith.constant 0 : index
    %244 = vector.load %arg13[%c0_65, %c0_66] : memref<128x64xbf16, #tpu.memory_space<vmem>>, vector<128x64xbf16>
    %cst_67 = arith.constant dense<0.000000e+00> : vector<16x64xf32>
    %245 = tpu.matmul %243, %244, %cst_67 {dimension_numbers = #tpu.dot_dimension_numbers<[1], [0], [0], [1], [0, 0, 1, 1], [], []>} : vector<16x128xbf16>, vector<128x64xbf16>, vector<16x64xf32> -> vector<16x64xf32>
    %246 = arith.addf %217, %245 : vector<16x64xf32>
    %c0_68 = arith.constant 0 : index
    %c0_69 = arith.constant 0 : index
    %247 = vector.load %arg14[%c0_68, %c0_69] : memref<1x64xf32, #tpu.memory_space<vmem>>, vector<1x64xf32>
    %248 = arith.mulf %246, %246 : vector<16x64xf32>
    %cst_70 = arith.constant dense<0.000000e+00> : vector<16xf32>
    %249 = vector.multi_reduction <add>, %248, %cst_70 [1] : vector<16x64xf32> to vector<16xf32>
    %250 = vector.shape_cast %249 : vector<16xf32> to vector<16x1xf32>
    %cst_71 = arith.constant 6.400000e+01 : f32
    %251 = vector.broadcast %cst_71 : f32 to vector<16x1xf32>
    %252 = arith.divf %250, %251 : vector<16x1xf32>
    %cst_72 = arith.constant 9.99999974E-6 : f32
    %253 = vector.broadcast %cst_72 : f32 to vector<16x1xf32>
    %254 = arith.addf %252, %253 : vector<16x1xf32>
    %255 = math.rsqrt %254 : vector<16x1xf32>
    %256 = vector.broadcast %255 : vector<16x1xf32> to vector<16x64xf32>
    %257 = arith.mulf %246, %256 : vector<16x64xf32>
    %258 = vector.broadcast %247 : vector<1x64xf32> to vector<16x64xf32>
    %259 = arith.mulf %257, %258 : vector<16x64xf32>
    %260 = vector.shape_cast %259 : vector<16x64xf32> to vector<2x8x64xf32>
    %c0_73 = arith.constant 0 : index
    %c0_74 = arith.constant 0 : index
    %c0_75 = arith.constant 0 : index
    %261 = vector.load %arg15[%c0_73, %c0_74, %c0_75] : memref<2x8x64xf32, #tpu.memory_space<vmem>>, vector<2x8x64xf32>
    tpu.vector_store %arg15[%c0_73, %c0_74, %c0_75], %260 {strides = array<i32>} : memref<2x8x64xf32, #tpu.memory_space<vmem>>, vector<2x8x64xf32>,
    return
  }
  func.func @transform_0(%arg0: i32) -> (i32, i32, i32) {
    %c0_i32 = arith.constant 0 : i32
    %c0_i32_0 = arith.constant 0 : i32
    %c0_i32_1 = arith.constant 0 : i32
    %c0_i32_2 = arith.constant 0 : i32
    return %c0_i32, %c0_i32_0, %c0_i32_1 : i32, i32, i32
  }
  func.func @transform_1(%arg0: i32) -> (i32, i32, i32) {
    %c0_i32 = arith.constant 0 : i32
    %c0_i32_0 = arith.constant 0 : i32
    %c0_i32_1 = arith.constant 0 : i32
    %c0_i32_2 = arith.constant 0 : i32
    return %c0_i32, %c0_i32_0, %c0_i32_1 : i32, i32, i32
  }
  func.func @transform_2(%arg0: i32) -> (i32, i32) {
    %c0_i32 = arith.constant 0 : i32
    %c0_i32_0 = arith.constant 0 : i32
    %c0_i32_1 = arith.constant 0 : i32
    return %c0_i32, %c0_i32_0 : i32, i32
  }
  func.func @transform_3(%arg0: i32) -> (i32, i32) {
    %c0_i32 = arith.constant 0 : i32
    %c0_i32_0 = arith.constant 0 : i32
    %c0_i32_1 = arith.constant 0 : i32
    return %c0_i32, %c0_i32_0 : i32, i32
  }
  func.func @transform_4(%arg0: i32) -> (i32, i32) {
    %c0_i32 = arith.constant 0 : i32
    %c0_i32_0 = arith.constant 0 : i32
    %c0_i32_1 = arith.constant 0 : i32
    return %c0_i32, %c0_i32_0 : i32, i32
  }
  func.func @transform_5(%arg0: i32) -> (i32, i32) {
    %c0_i32 = arith.constant 0 : i32
    %c0_i32_0 = arith.constant 0 : i32
    %c0_i32_1 = arith.constant 0 : i32
    return %c0_i32, %c0_i32_0 : i32, i32
  }
  func.func @transform_6(%arg0: i32) -> (i32, i32) {
    %c0_i32 = arith.constant 0 : i32
    %c0_i32_0 = arith.constant 0 : i32
    %c0_i32_1 = arith.constant 0 : i32
    return %c0_i32, %c0_i32_0 : i32, i32
  }
  func.func @transform_7(%arg0: i32) -> (i32, i32) {
    %c0_i32 = arith.constant 0 : i32
    %c0_i32_0 = arith.constant 0 : i32
    %c0_i32_1 = arith.constant 0 : i32
    return %c0_i32, %c0_i32_0 : i32, i32
  }
  func.func @transform_8(%arg0: i32) -> (i32, i32) {
    %c0_i32 = arith.constant 0 : i32
    %c0_i32_0 = arith.constant 0 : i32
    %c0_i32_1 = arith.constant 0 : i32
    return %c0_i32, %c0_i32_0 : i32, i32
  }
  func.func @transform_9(%arg0: i32) -> (i32, i32) {
    %c0_i32 = arith.constant 0 : i32
    %c0_i32_0 = arith.constant 0 : i32
    %c0_i32_1 = arith.constant 0 : i32
    return %c0_i32, %c0_i32_0 : i32, i32
  }
  func.func @transform_10(%arg0: i32) -> (i32, i32) {
    %c0_i32 = arith.constant 0 : i32
    %c0_i32_0 = arith.constant 0 : i32
    %c0_i32_1 = arith.constant 0 : i32
    return %c0_i32, %c0_i32_0 : i32, i32
  }
  func.func @transform_11(%arg0: i32) -> (i32, i32) {
    %c0_i32 = arith.constant 0 : i32
    %c0_i32_0 = arith.constant 0 : i32
    %c0_i32_1 = arith.constant 0 : i32
    return %c0_i32, %c0_i32_0 : i32, i32
  }
  func.func @transform_12(%arg0: i32) -> (i32, i32) {
    %c0_i32 = arith.constant 0 : i32
    %c0_i32_0 = arith.constant 0 : i32
    %c0_i32_1 = arith.constant 0 : i32
    return %c0_i32, %c0_i32_0 : i32, i32
  }
  func.func @transform_13(%arg0: i32) -> (i32, i32) {
    %c0_i32 = arith.constant 0 : i32
    %c0_i32_0 = arith.constant 0 : i32
    %c0_i32_1 = arith.constant 0 : i32
    return %c0_i32, %c0_i32_0 : i32, i32
  }
  func.func @transform_14(%arg0: i32) -> (i32, i32, i32) {
    %c0_i32 = arith.constant 0 : i32
    %c0_i32_0 = arith.constant 0 : i32
    %c0_i32_1 = arith.constant 0 : i32
    %c0_i32_2 = arith.constant 0 : i32
    return %c0_i32, %c0_i32_0, %c0_i32_1 : i32, i32, i32
  }
}

</mosaic_0001>

<llo_original>
// kernel: vlm_forward.9
$region0: #{vlm_forward.9}
  #allocation0 [shape = 'u32[]', space=smem, size = 0x4, offset = 0x4, fixed_abs, tag = 'smem constant byte address 0x4 - core index']
  #allocation1 [shape = 'u32[72,128]{1,0:T(1,128)}', space=vmem, size = 0x9000, scoped, tag = 'internal scratch']
  %s0 = inlined_call_operand.vmem [shape: f32[8,128], index: 0, kind: input, shape index: {}]
  %s1 = inlined_call_operand.vmem [shape: f32[1,32], index: 1, kind: input, shape index: {}]
  %s2 = inlined_call_operand.vmem [shape: f32[1,32], index: 2, kind: input, shape index: {}]
  %s3 = inlined_call_operand.vmem [shape: bf16[128,64], index: 3, kind: input, shape index: {}]
  %s4 = inlined_call_operand.vmem [shape: f32[8,64], index: 4, kind: output, shape index: {}]
  %s5 = sld [smem:[#allocation0]]
  $region26: #{vlm_forward.9} parent=0
    _
  %s7 = ssub.s32 1, %s5
  %s8 = scalar_select 0, %s7, %s5
  // Predicated region
  $region2: #{vlm_forward.9} parent=0 // pred_check
    _
  $region3: #{vlm_forward.9} parent=0 // pred_check_branch
    %10 = sbr.rel (0) target = $region5
  $region4: #{vlm_forward.9} parent=0 // pred_region
    _
  $region5: #{vlm_forward.9} parent=0 // pred_fallthru
    _
  // Predicated region
  $region6: #{vlm_forward.9} parent=0 // pred_check
    _
  $region7: #{vlm_forward.9} parent=0 // pred_check_branch
    %12 = sbr.rel (0) target = $region9
  $region8: #{vlm_forward.9} parent=0 // pred_region
    _
  $region9: #{vlm_forward.9} parent=0 // pred_fallthru
    _
  // Predicated region
  $region10: #{vlm_forward.9} parent=0 // pred_check
    _
  $region11: #{vlm_forward.9} parent=0 // pred_check_branch
    %14 = sbr.rel (0) target = $region13
  $region12: #{vlm_forward.9} parent=0 // pred_region
    _
  $region13: #{vlm_forward.9} parent=0 // pred_fallthru
    _
  // Predicated region
  $region14: #{vlm_forward.9} parent=0 // pred_check
    _
  $region15: #{vlm_forward.9} parent=0 // pred_check_branch
    %16 = sbr.rel (0) target = $region17
  $region16: #{vlm_forward.9} parent=0 // pred_region
    _
  $region17: #{vlm_forward.9} parent=0 // pred_fallthru
    _
  %v17 = vld [vmem:[%s0] sm:$0xff]
  %v18 = vld [vmem:[%s1] sm:$0x1]
  %v19 = vld [vmem:[%s2] sm:$0x1]
  %vm20 = vcmask 261120
  %v21 = vsel %vm20, %v17, 0.0
  %22 = vadd.xlane.f32.xlu0 %v21
  %v23 = vpop.xlane.xlu0 %22
  %v24 = vrcp.pop 32.0
  %v25 = vmul.f32 32.0, %v24
  %v26 = vsub.f32 1.0, %v25
  %v27 = vmul.f32 %v24, %v26
  %v28 = vadd.f32 %v24, %v27
  %vm29 = vweird.f32 %v24
  %v30 = vsel %vm29, %v24, %v28
  %v31 = vmul.f32 %v23, %v30
  %v32 = vsub.f32 %v17, %v31
  %v33 = vmul.f32 %v32, %v32
  %v34 = vsel %vm20, %v33, 0.0
  %35 = vadd.xlane.f32.xlu0 %v34
  %v36 = vpop.xlane.xlu0 %35
  %v37 = vmul.f32 %v36, %v30
  %v38 = vadd.f32 %v37, 1e-05
  %v39 = vrsqrt.pop %v38
  %v40 = vmul.f32 %v39, %v38
  %v41 = vmul.f32 %v40, %v39
  %v42 = vmul.f32 0.5, %v41
  %v43 = vsub.f32 1.5, %v42
  %v44 = vmul.f32 %v39, %v43
  %vm45 = vweird.f32 %v38
  %vm46 = vweird.f32 %v39
  %vm47 = vmor %vm45, %vm46
  %v48 = vsel %vm47, %v39, %v44
  %v49 = vmul.f32 %v32, %v48
  %v51 = vperm.slane %v18, 0
  %v53 = vmul.f32 %v49, %v51
  %v55 = vperm.slane %v19, 0
  %v57 = vadd.f32 %v53, %v55
  %59 = vrot.lane.b32.xlu0 %v17, 96
  %v60 = vpop.permute.xlu0 %59
  %v62 = vsel %vm20, %v60, 0.0
  %63 = vadd.xlane.f32.xlu0 %v62
  %v64 = vpop.xlane.xlu0 %63
  %v65 = vmul.f32 %v64, %v30
  %v66 = vsub.f32 %v17, %v65
  %v67 = vmul.f32 %v66, %v66
  %69 = vrot.lane.b32.xlu0 %v67, 96
  %v70 = vpop.permute.xlu0 %69
  %v72 = vsel %vm20, %v70, 0.0
  %73 = vadd.xlane.f32.xlu0 %v72
  %v74 = vpop.xlane.xlu0 %73
  %v75 = vmul.f32 %v74, %v30
  %v76 = vadd.f32 %v75, 1e-05
  %v77 = vrsqrt.pop %v76
  %v78 = vmul.f32 %v77, %v76
  %v79 = vmul.f32 %v78, %v77
  %v80 = vmul.f32 0.5, %v79
  %v81 = vsub.f32 1.5, %v80
  %v82 = vmul.f32 %v77, %v81
  %vm83 = vweird.f32 %v76
  %vm84 = vweird.f32 %v77
  %vm85 = vmor %vm83, %vm84
  %v86 = vsel %vm85, %v77, %v82
  %v87 = vmul.f32 %v66, %v86
  %88 = vrot.lane.b32.xlu0 %v51, 32
  %v89 = vpop.permute.xlu0 %88
  %v91 = vmul.f32 %v87, %v89
  %92 = vrot.lane.b32.xlu0 %v55, 32
  %v93 = vpop.permute.xlu0 %92
  %v95 = vadd.f32 %v91, %v93
  %96 = vrot.lane.b32.xlu0 %v17, 64
  %v97 = vpop.permute.xlu0 %96
  %v99 = vsel %vm20, %v97, 0.0
  %100 = vadd.xlane.f32.xlu0 %v99
  %v101 = vpop.xlane.xlu0 %100
  %v102 = vmul.f32 %v101, %v30
  %v103 = vsub.f32 %v17, %v102
  %v104 = vmul.f32 %v103, %v103
  %106 = vrot.lane.b32.xlu0 %v104, 64
  %v107 = vpop.permute.xlu0 %106
  %v109 = vsel %vm20, %v107, 0.0
  %110 = vadd.xlane.f32.xlu0 %v109
  %v111 = vpop.xlane.xlu0 %110
  %v112 = vmul.f32 %v111, %v30
  %v113 = vadd.f32 %v112, 1e-05
  %v114 = vrsqrt.pop %v113
  %v115 = vmul.f32 %v114, %v113
  %v116 = vmul.f32 %v115, %v114
  %v117 = vmul.f32 0.5, %v116
  %v118 = vsub.f32 1.5, %v117
  %v119 = vmul.f32 %v114, %v118
  %vm120 = vweird.f32 %v113
  %vm121 = vweird.f32 %v114
  %vm122 = vmor %vm120, %vm121
  %v123 = vsel %vm122, %v114, %v119
  %v124 = vmul.f32 %v103, %v123
  %125 = vrot.lane.b32.xlu0 %v51, 64
  %v126 = vpop.permute.xlu0 %125
  %v128 = vmul.f32 %v124, %v126
  %129 = vrot.lane.b32.xlu0 %v55, 64
  %v130 = vpop.permute.xlu0 %129
  %v132 = vadd.f32 %v128, %v130
  %133 = vrot.lane.b32.xlu0 %v17, 32
  %v134 = vpop.permute.xlu0 %133
  %v136 = vsel %vm20, %v134, 0.0
  %137 = vadd.xlane.f32.xlu0 %v136
  %v138 = vpop.xlane.xlu0 %137
  %v139 = vmul.f32 %v138, %v30
  %v140 = vsub.f32 %v17, %v139
  %v141 = vmul.f32 %v140, %v140
  %143 = vrot.lane.b32.xlu0 %v141, 32
  %v144 = vpop.permute.xlu0 %143
  %v146 = vsel %vm20, %v144, 0.0
  %147 = vadd.xlane.f32.xlu0 %v146
  %v148 = vpop.xlane.xlu0 %147
  %v149 = vmul.f32 %v148, %v30
  %v150 = vadd.f32 %v149, 1e-05
  %v151 = vrsqrt.pop %v150
  %v152 = vmul.f32 %v151, %v150
  %v153 = vmul.f32 %v152, %v151
  %v154 = vmul.f32 0.5, %v153
  %v155 = vsub.f32 1.5, %v154
  %v156 = vmul.f32 %v151, %v155
  %vm157 = vweird.f32 %v150
  %vm158 = vweird.f32 %v151
  %vm159 = vmor %vm157, %vm158
  %v160 = vsel %vm159, %v151, %v156
  %v161 = vmul.f32 %v140, %v160
  %162 = vrot.lane.b32.xlu0 %v51, 96
  %v163 = vpop.permute.xlu0 %162
  %v165 = vmul.f32 %v161, %v163
  %166 = vrot.lane.b32.xlu0 %v55, 96
  %v167 = vpop.permute.xlu0 %166
  %v169 = vadd.f32 %v165, %v167
  %v170 = vsel %vm20, %v57, %v95
  %vm171 = vcmask 523264
  %v172 = vsel %vm171, %v170, %v132
  %vm173 = vcmask 785408
  %v174 = vsel %vm173, %v172, %v169
  %v175 = vpack.c.bf16 %v174, %v174
  %v176 = vld [vmem:[%s3] sm:$0xf]
  %v177 = vld [vmem:[%s3 + $0x4] sm:$0xf]
  %v178 = vld [vmem:[%s3 + $0x8] sm:$0xf]
  %v179 = vld [vmem:[%s3 + $0xc] sm:$0xf]
  %v180 = vld [vmem:[%s3 + $0x10] sm:$0xf]
  %v181 = vld [vmem:[%s3 + $0x14] sm:$0xf]
  %v182 = vld [vmem:[%s3 + $0x18] sm:$0xf]
  %v183 = vld [vmem:[%s3 + $0x1c] sm:$0xf]
  %v184 = vld [vmem:[%s3 + $0x20] sm:$0xf]
  %v185 = vld [vmem:[%s3 + $0x24] sm:$0xf]
  %v186 = vld [vmem:[%s3 + $0x28] sm:$0xf]
  %v187 = vld [vmem:[%s3 + $0x2c] sm:$0xf]
  %v188 = vld [vmem:[%s3 + $0x30] sm:$0xf]
  %v189 = vld [vmem:[%s3 + $0x34] sm:$0xf]
  %v190 = vld [vmem:[%s3 + $0x38] sm:$0xf]
  %v191 = vld [vmem:[%s3 + $0x3c] sm:$0xf]
  %v208 = vunpack.c.l.b16 %v176
  %v209 = vunpack.c.l.b16 %v177
  %v210 = vunpack.c.l.b16 %v178
  %v211 = vunpack.c.l.b16 %v179
  %v212 = vunpack.c.l.b16 %v180
  %v213 = vunpack.c.l.b16 %v181
  %v214 = vunpack.c.l.b16 %v182
  %v215 = vunpack.c.l.b16 %v183
  %v216 = vunpack.c.l.b16 %v184
  %v217 = vunpack.c.l.b16 %v185
  %v218 = vunpack.c.l.b16 %v186
  %v219 = vunpack.c.l.b16 %v187
  %v220 = vunpack.c.l.b16 %v188
  %v221 = vunpack.c.l.b16 %v189
  %v222 = vunpack.c.l.b16 %v190
  %v223 = vunpack.c.l.b16 %v191
  %v224 = vpack.c.b16 %v209, %v208
  %v225 = vpack.c.b16 %v211, %v210
  %v226 = vpack.c.b16 %v213, %v212
  %v227 = vpack.c.b16 %v215, %v214
  %v228 = vpack.c.b16 %v217, %v216
  %v229 = vpack.c.b16 %v219, %v218
  %v230 = vpack.c.b16 %v221, %v220
  %v231 = vpack.c.b16 %v223, %v222
  %240 = vmatpush.bf16.msra.mxu0 %v231
  %241 = vmatpush.bf16.msra.mxu0 %v230
  %242 = vmatpush.bf16.msra.mxu0 %v229
  %243 = vmatpush.bf16.msra.mxu0 %v228
  %244 = vmatpush.bf16.msra.mxu0 %v227
  %245 = vmatpush.bf16.msra.mxu0 %v226
  %246 = vmatpush.bf16.msra.mxu0 %v225
  %247 = vmatpush.bf16.msra.mxu0 %v224
  %248 = vmatmul.bf16.gmra.mxu0 %v175
  %v249 = vpop.f32.mrf.mxu0
  %v250 = vadd.f32 0.0, %v249
  %v251 = vpop.f32.mrf.mxu0
  %252 = vdwg.mxu0
  %253 = vst.msk [vmem:[%s4] sm:$0xff] %vm171, %v250
  // Predicated region
  $region18: #{vlm_forward.9} parent=0 // pred_check
    _
  $region19: #{vlm_forward.9} parent=0 // pred_check_branch
    %255 = sbr.rel (0) target = $region21
  $region20: #{vlm_forward.9} parent=0 // pred_region
    _
  $region21: #{vlm_forward.9} parent=0 // pred_fallthru
    _
  // Predicated region
  $region22: #{vlm_forward.9} parent=0 // pred_check
    _
  $region23: #{vlm_forward.9} parent=0 // pred_check_branch
    %257 = sbr.rel (0) target = $region25
  $region24: #{vlm_forward.9} parent=0 // pred_region
    _
  $region25: #{vlm_forward.9} parent=0 // pred_fallthru
    _

// kernel: vlm_forward.6
$region0: #{vlm_forward.6}
  #allocation0 [shape = 'u32[]', space=smem, size = 0x4, offset = 0x4, fixed_abs, tag = 'smem constant byte address 0x4 - core index']
  #allocation1 [shape = 'u32[72,128]{1,0:T(1,128)}', space=vmem, size = 0x9000, scoped, tag = 'internal scratch']
  %s0 = inlined_call_operand.vmem [shape: f32[2,16,48], index: 0, kind: input, shape index: {}]
  %s1 = inlined_call_operand.vmem [shape: bf16[48,32], index: 1, kind: input, shape index: {}]
  %s2 = inlined_call_operand.vmem [shape: f32[1,32], index: 2, kind: input, shape index: {}]
  %s3 = inlined_call_operand.vmem [shape: f32[1,16,32], index: 3, kind: input, shape index: {}]
  %s4 = inlined_call_operand.vmem [shape: f32[2,16,32], index: 4, kind: output, shape index: {}]
  %s5 = sld [smem:[#allocation0]]
  $region26: #{vlm_forward.6} parent=0
    _
  %s7 = ssub.s32 1, %s5
  %s8 = scalar_select 0, %s7, %s5
  // Predicated region
  $region2: #{vlm_forward.6} parent=0 // pred_check
    _
  $region3: #{vlm_forward.6} parent=0 // pred_check_branch
    %10 = sbr.rel (0) target = $region5
  $region4: #{vlm_forward.6} parent=0 // pred_region
    _
  $region5: #{vlm_forward.6} parent=0 // pred_fallthru
    _
  // Predicated region
  $region6: #{vlm_forward.6} parent=0 // pred_check
    _
  $region7: #{vlm_forward.6} parent=0 // pred_check_branch
    %12 = sbr.rel (0) target = $region9
  $region8: #{vlm_forward.6} parent=0 // pred_region
    _
  $region9: #{vlm_forward.6} parent=0 // pred_fallthru
    _
  // Predicated region
  $region10: #{vlm_forward.6} parent=0 // pred_check
    _
  $region11: #{vlm_forward.6} parent=0 // pred_check_branch
    %14 = sbr.rel (0) target = $region13
  $region12: #{vlm_forward.6} parent=0 // pred_region
    _
  $region13: #{vlm_forward.6} parent=0 // pred_fallthru
    _
  // Predicated region
  $region14: #{vlm_forward.6} parent=0 // pred_check
    _
  $region15: #{vlm_forward.6} parent=0 // pred_check_branch
    %16 = sbr.rel (0) target = $region17
  $region16: #{vlm_forward.6} parent=0 // pred_region
    _
  $region17: #{vlm_forward.6} parent=0 // pred_fallthru
    _
  %v18 = vld [vmem:[%s0] sm:$0xff]
  %v19 = vld [vmem:[%s0 + $0x8] sm:$0xff]
  %v20 = vld [vmem:[%s0 + $0x10] sm:$0xff]
  %v21 = vld [vmem:[%s0 + $0x18] sm:$0xff]
  %v22 = vpack.c.bf16 %v19, %v18
  %v23 = vpack.c.bf16 %v21, %v20
  %v24 = vld [vmem:[%s1] sm:$0xf]
  %v25 = vld [vmem:[%s1 + $0x4] sm:$0xf]
  %v26 = vld [vmem:[%s1 + $0x8] sm:$0xf]
  %v27 = vld [vmem:[%s1 + $0xc] sm:$0xf]
  %v28 = vld [vmem:[%s1 + $0x10] sm:$0xf]
  %v29 = vld [vmem:[%s1 + $0x14] sm:$0xf]
  %v30 = vld [vmem:[%s2] sm:$0x1]
  %v32 = vperm.slane %v30, 0
  %v40 = vunpack.c.l.b16 %v24
  %v41 = vunpack.c.l.b16 %v25
  %v42 = vunpack.c.l.b16 %v26
  %v43 = vunpack.c.l.b16 %v27
  %v44 = vunpack.c.l.b16 %v28
  %v45 = vunpack.c.l.b16 %v29
  %v46 = vpack.c.b16 %v41, %v40
  %v47 = vpack.c.b16 %v43, %v42
  %v48 = vpack.c.b16 %v45, %v44
  %vm52 = vcmask 392192
  %v54 = vsel %vm52, %v22, 0
  %v57 = vsel %vm52, %v23, 0
  %59 = vmatpush.bf16.msra.mxu0 0
  %60 = vmatpush.bf16.msra.mxu0 0
  %61 = vmatpush.bf16.msra.mxu0 0
  %62 = vmatpush.bf16.msra.mxu0 0
  %63 = vmatpush.bf16.msra.mxu0 0
  %64 = vmatpush.bf16.msra.mxu0 %v48
  %65 = vmatpush.bf16.msra.mxu0 %v47
  %66 = vmatpush.bf16.msra.mxu0 %v46
  %67 = vmatmul.bf16.gmra.mxu0 %v54
  %v68 = vpop.f32.mrf.mxu0
  %v69 = vadd.f32 %v32, %v68
  %v70 = vpop.f32.mrf.mxu0
  %v71 = vadd.f32 %v32, %v70
  %72 = vmatmul.bf16.gmra.mxu0 %v57
  %v73 = vpop.f32.mrf.mxu0
  %v74 = vadd.f32 %v32, %v73
  %v75 = vpop.f32.mrf.mxu0
  %v76 = vadd.f32 %v32, %v75
  %77 = vdwg.mxu0
  %v78 = vld [vmem:[%s3] sm:$0xff]
  %v79 = vld [vmem:[%s3 + $0x8] sm:$0xff]
  %v80 = vadd.f32 %v69, %v78
  %v81 = vadd.f32 %v71, %v79
  %v82 = vadd.f32 %v74, %v78
  %v83 = vadd.f32 %v76, %v79
  %vm84 = vcmask 261120
  %85 = vst.msk [vmem:[%s4] sm:$0xff] %vm84, %v80
  %86 = vst.msk [vmem:[%s4 + $0x8] sm:$0xff] %vm84, %v81
  %87 = vst.msk [vmem:[%s4 + $0x10] sm:$0xff] %vm84, %v82
  %88 = vst.msk [vmem:[%s4 + $0x18] sm:$0xff] %vm84, %v83
  // Predicated region
  $region18: #{vlm_forward.6} parent=0 // pred_check
    _
  $region19: #{vlm_forward.6} parent=0 // pred_check_branch
    %90 = sbr.rel (0) target = $region21
  $region20: #{vlm_forward.6} parent=0 // pred_region
    _
  $region21: #{vlm_forward.6} parent=0 // pred_fallthru
    _
  // Predicated region
  $region22: #{vlm_forward.6} parent=0 // pred_check
    _
  $region23: #{vlm_forward.6} parent=0 // pred_check_branch
    %92 = sbr.rel (0) target = $region25
  $region24: #{vlm_forward.6} parent=0 // pred_region
    _
  $region25: #{vlm_forward.6} parent=0 // pred_fallthru
    _

// kernel: vlm_forward.7
$region0: #{vlm_forward.7}
  #allocation0 [shape = 'u32[]', space=smem, size = 0x4, offset = 0x4, fixed_abs, tag = 'smem constant byte address 0x4 - core index']
  #allocation1 [shape = 'u32[72,128]{1,0:T(1,128)}', space=vmem, size = 0x9000, scoped, tag = 'internal scratch']
  %s0 = inlined_call_operand.vmem [shape: f32[2,16,32], index: 0, kind: input, shape index: {}]
  %s1 = inlined_call_operand.vmem [shape: f32[1,32], index: 1, kind: input, shape index: {}]
  %s2 = inlined_call_operand.vmem [shape: f32[1,32], index: 2, kind: input, shape index: {}]
  %s3 = inlined_call_operand.vmem [shape: bf16[32,32], index: 3, kind: input, shape index: {}]
  %s4 = inlined_call_operand.vmem [shape: f32[1,32], index: 4, kind: input, shape index: {}]
  %s5 = inlined_call_operand.vmem [shape: bf16[32,32], index: 5, kind: input, shape index: {}]
  %s6 = inlined_call_operand.vmem [shape: f32[1,32], index: 6, kind: input, shape index: {}]
  %s7 = inlined_call_operand.vmem [shape: bf16[32,32], index: 7, kind: input, shape index: {}]
  %s8 = inlined_call_operand.vmem [shape: f32[1,32], index: 8, kind: input, shape index: {}]
  %s9 = inlined_call_operand.vmem [shape: bf16[32,32], index: 9, kind: input, shape index: {}]
  %s10 = inlined_call_operand.vmem [shape: f32[1,32], index: 10, kind: input, shape index: {}]
  %s11 = inlined_call_operand.vmem [shape: f32[1,32], index: 11, kind: input, shape index: {}]
  %s12 = inlined_call_operand.vmem [shape: f32[1,32], index: 12, kind: input, shape index: {}]
  %s13 = inlined_call_operand.vmem [shape: bf16[32,128], index: 13, kind: input, shape index: {}]
  %s14 = inlined_call_operand.vmem [shape: f32[1,128], index: 14, kind: input, shape index: {}]
  %s15 = inlined_call_operand.vmem [shape: bf16[128,32], index: 15, kind: input, shape index: {}]
  %s16 = inlined_call_operand.vmem [shape: f32[1,32], index: 16, kind: input, shape index: {}]
  %s17 = inlined_call_operand.vmem [shape: f32[2,16,32], index: 17, kind: output, shape index: {}]
  %s18 = sld [smem:[#allocation0]]
  $region78: #{vlm_forward.7} parent=0
    _
  %s20 = ssub.s32 1, %s18
  %s21 = scalar_select 0, %s20, %s18
  // Predicated region
  $region2: #{vlm_forward.7} parent=0 // pred_check
    _
  $region3: #{vlm_forward.7} parent=0 // pred_check_branch
    %23 = sbr.rel (0) target = $region5
  $region4: #{vlm_forward.7} parent=0 // pred_region
    _
  $region5: #{vlm_forward.7} parent=0 // pred_fallthru
    _
  // Predicated region
  $region6: #{vlm_forward.7} parent=0 // pred_check
    _
  $region7: #{vlm_forward.7} parent=0 // pred_check_branch
    %25 = sbr.rel (0) target = $region9
  $region8: #{vlm_forward.7} parent=0 // pred_region
    _
  $region9: #{vlm_forward.7} parent=0 // pred_fallthru
    _
  // Predicated region
  $region10: #{vlm_forward.7} parent=0 // pred_check
    _
  $region11: #{vlm_forward.7} parent=0 // pred_check_branch
    %27 = sbr.rel (0) target = $region13
  $region12: #{vlm_forward.7} parent=0 // pred_region
    _
  $region13: #{vlm_forward.7} parent=0 // pred_fallthru
    _
  // Predicated region
  $region14: #{vlm_forward.7} parent=0 // pred_check
    _
  $region15: #{vlm_forward.7} parent=0 // pred_check_branch
    %29 = sbr.rel (0) target = $region17
  $region16: #{vlm_forward.7} parent=0 // pred_region
    _
  $region17: #{vlm_forward.7} parent=0 // pred_fallthru
    _
  // Predicated region
  $region18: #{vlm_forward.7} parent=0 // pred_check
    _
  $region19: #{vlm_forward.7} parent=0 // pred_check_branch
    %31 = sbr.rel (0) target = $region21
  $region20: #{vlm_forward.7} parent=0 // pred_region
    _
  $region21: #{vlm_forward.7} parent=0 // pred_fallthru
    _
  // Predicated region
  $region22: #{vlm_forward.7} parent=0 // pred_check
    _
  $region23: #{vlm_forward.7} parent=0 // pred_check_branch
    %33 = sbr.rel (0) target = $region25
  $region24: #{vlm_forward.7} parent=0 // pred_region
    _
  $region25: #{vlm_forward.7} parent=0 // pred_fallthru
    _
  // Predicated region
  $region26: #{vlm_forward.7} parent=0 // pred_check
    _
  $region27: #{vlm_forward.7} parent=0 // pred_check_branch
    %35 = sbr.rel (0) target = $region29
  $region28: #{vlm_forward.7} parent=0 // pred_region
    _
  $region29: #{vlm_forward.7} parent=0 // pred_fallthru
    _
  // Predicated region
  $region30: #{vlm_forward.7} parent=0 // pred_check
    _
  $region31: #{vlm_forward.7} parent=0 // pred_check_branch
    %37 = sbr.rel (0) target = $region33
  $region32: #{vlm_forward.7} parent=0 // pred_region
    _
  $region33: #{vlm_forward.7} parent=0 // pred_fallthru
    _
  // Predicated region
  $region34: #{vlm_forward.7} parent=0 // pred_check
    _
  $region35: #{vlm_forward.7} parent=0 // pred_check_branch
    %39 = sbr.rel (0) target = $region37
  $region36: #{vlm_forward.7} parent=0 // pred_region
    _
  $region37: #{vlm_forward.7} parent=0 // pred_fallthru
    _
  // Predicated region
  $region38: #{vlm_forward.7} parent=0 // pred_check
    _
  $region39: #{vlm_forward.7} parent=0 // pred_check_branch
    %41 = sbr.rel (0) target = $region41
  $region40: #{vlm_forward.7} parent=0 // pred_region
    _
  $region41: #{vlm_forward.7} parent=0 // pred_fallthru
    _
  // Predicated region
  $region42: #{vlm_forward.7} parent=0 // pred_check
    _
  $region43: #{vlm_forward.7} parent=0 // pred_check_branch
    %43 = sbr.rel (0) target = $region45
  $region44: #{vlm_forward.7} parent=0 // pred_region
    _
  $region45: #{vlm_forward.7} parent=0 // pred_fallthru
    _
  // Predicated region
  $region46: #{vlm_forward.7} parent=0 // pred_check
    _
  $region47: #{vlm_forward.7} parent=0 // pred_check_branch
    %45 = sbr.rel (0) target = $region49
  $region48: #{vlm_forward.7} parent=0 // pred_region
    _
  $region49: #{vlm_forward.7} parent=0 // pred_fallthru
    _
  // Predicated region
  $region50: #{vlm_forward.7} parent=0 // pred_check
    _
  $region51: #{vlm_forward.7} parent=0 // pred_check_branch
    %47 = sbr.rel (0) target = $region53
  $region52: #{vlm_forward.7} parent=0 // pred_region
    _
  $region53: #{vlm_forward.7} parent=0 // pred_fallthru
    _
  // Predicated region
  $region54: #{vlm_forward.7} parent=0 // pred_check
    _
  $region55: #{vlm_forward.7} parent=0 // pred_check_branch
    %49 = sbr.rel (0) target = $region57
  $region56: #{vlm_forward.7} parent=0 // pred_region
    _
  $region57: #{vlm_forward.7} parent=0 // pred_fallthru
    _
  // Predicated region
  $region58: #{vlm_forward.7} parent=0 // pred_check
    _
  $region59: #{vlm_forward.7} parent=0 // pred_check_branch
    %51 = sbr.rel (0) target = $region61
  $region60: #{vlm_forward.7} parent=0 // pred_region
    _
  $region61: #{vlm_forward.7} parent=0 // pred_fallthru
    _
  // Predicated region
  $region62: #{vlm_forward.7} parent=0 // pred_check
    _
  $region63: #{vlm_forward.7} parent=0 // pred_check_branch
    %53 = sbr.rel (0) target = $region65
  $region64: #{vlm_forward.7} parent=0 // pred_region
    _
  $region65: #{vlm_forward.7} parent=0 // pred_fallthru
    _
  // Predicated region
  $region66: #{vlm_forward.7} parent=0 // pred_check
    _
  $region67: #{vlm_forward.7} parent=0 // pred_check_branch
    %55 = sbr.rel (0) target = $region69
  $region68: #{vlm_forward.7} parent=0 // pred_region
    _
  $region69: #{vlm_forward.7} parent=0 // pred_fallthru
    _
  %v57 = vld [vmem:[%s0] sm:$0xff]
  %v58 = vld [vmem:[%s0 + $0x8] sm:$0xff]
  %v59 = vld [vmem:[%s0 + $0x10] sm:$0xff]
  %v60 = vld [vmem:[%s0 + $0x18] sm:$0xff]
  %v61 = vld [vmem:[%s1] sm:$0x1]
  %v62 = vld [vmem:[%s2] sm:$0x1]
  %vm63 = vcmask 261120
  %v64 = vsel %vm63, %v57, 0.0
  %65 = vadd.xlane.f32.xlu0 %v64
  %v66 = vpop.xlane.xlu0 %65
  %v67 = vsel %vm63, %v58, 0.0
  %68 = vadd.xlane.f32.xlu0 %v67
  %v69 = vpop.xlane.xlu0 %68
  %v70 = vsel %vm63, %v59, 0.0
  %71 = vadd.xlane.f32.xlu0 %v70
  %v72 = vpop.xlane.xlu0 %71
  %v73 = vsel %vm63, %v60, 0.0
  %74 = vadd.xlane.f32.xlu0 %v73
  %v75 = vpop.xlane.xlu0 %74
  %v76 = vrcp.pop 32.0
  %v77 = vmul.f32 32.0, %v76
  %v78 = vsub.f32 1.0, %v77
  %v79 = vmul.f32 %v76, %v78
  %v80 = vadd.f32 %v76, %v79
  %vm81 = vweird.f32 %v76
  %v82 = vsel %vm81, %v76, %v80
  %v83 = vmul.f32 %v66, %v82
  %v84 = vmul.f32 %v69, %v82
  %v85 = vmul.f32 %v72, %v82
  %v86 = vmul.f32 %v75, %v82
  %v87 = vsub.f32 %v57, %v83
  %v88 = vsub.f32 %v58, %v84
  %v89 = vsub.f32 %v59, %v85
  %v90 = vsub.f32 %v60, %v86
  %v91 = vmul.f32 %v87, %v87
  %v92 = vmul.f32 %v88, %v88
  %v93 = vmul.f32 %v89, %v89
  %v94 = vmul.f32 %v90, %v90
  %v95 = vsel %vm63, %v91, 0.0
  %96 = vadd.xlane.f32.xlu0 %v95
  %v97 = vpop.xlane.xlu0 %96
  %v98 = vsel %vm63, %v92, 0.0
  %99 = vadd.xlane.f32.xlu0 %v98
  %v100 = vpop.xlane.xlu0 %99
  %v101 = vsel %vm63, %v93, 0.0
  %102 = vadd.xlane.f32.xlu0 %v101
  %v103 = vpop.xlane.xlu0 %102
  %v104 = vsel %vm63, %v94, 0.0
  %105 = vadd.xlane.f32.xlu0 %v104
  %v106 = vpop.xlane.xlu0 %105
  %v107 = vmul.f32 %v97, %v82
  %v108 = vmul.f32 %v100, %v82
  %v109 = vmul.f32 %v103, %v82
  %v110 = vmul.f32 %v106, %v82
  %v111 = vadd.f32 %v107, 1e-05
  %v112 = vadd.f32 %v108, 1e-05
  %v113 = vadd.f32 %v109, 1e-05
  %v114 = vadd.f32 %v110, 1e-05
  %v115 = vrsqrt.pop %v111
  %v116 = vmul.f32 %v115, %v111
  %v117 = vmul.f32 %v116, %v115
  %v118 = vmul.f32 0.5, %v117
  %v119 = vsub.f32 1.5, %v118
  %v120 = vmul.f32 %v115, %v119
  %vm121 = vweird.f32 %v111
  %vm122 = vweird.f32 %v115
  %vm123 = vmor %vm121, %vm122
  %v124 = vsel %vm123, %v115, %v120
  %v125 = vrsqrt.pop %v112
  %v126 = vmul.f32 %v125, %v112
  %v127 = vmul.f32 %v126, %v125
  %v128 = vmul.f32 0.5, %v127
  %v129 = vsub.f32 1.5, %v128
  %v130 = vmul.f32 %v125, %v129
  %vm131 = vweird.f32 %v112
  %vm132 = vweird.f32 %v125
  %vm133 = vmor %vm131, %vm132
  %v134 = vsel %vm133, %v125, %v130
  %v135 = vrsqrt.pop %v113
  %v136 = vmul.f32 %v135, %v113
  %v137 = vmul.f32 %v136, %v135
  %v138 = vmul.f32 0.5, %v137
  %v139 = vsub.f32 1.5, %v138
  %v140 = vmul.f32 %v135, %v139
  %vm141 = vweird.f32 %v113
  %vm142 = vweird.f32 %v135
  %vm143 = vmor %vm141, %vm142
  %v144 = vsel %vm143, %v135, %v140
  %v145 = vrsqrt.pop %v114
  %v146 = vmul.f32 %v145, %v114
  %v147 = vmul.f32 %v146, %v145
  %v148 = vmul.f32 0.5, %v147
  %v149 = vsub.f32 1.5, %v148
  %v150 = vmul.f32 %v145, %v149
  %vm151 = vweird.f32 %v114
  %vm152 = vweird.f32 %v145
  %vm153 = vmor %vm151, %vm152
  %v154 = vsel %vm153, %v145, %v150
  %v155 = vmul.f32 %v87, %v124
  %v156 = vmul.f32 %v88, %v134
  %v157 = vmul.f32 %v89, %v144
  %v158 = vmul.f32 %v90, %v154
  %v160 = vperm.slane %v61, 0
  %v162 = vmul.f32 %v155, %v160
  %v163 = vmul.f32 %v156, %v160
  %v164 = vmul.f32 %v157, %v160
  %v165 = vmul.f32 %v158, %v160
  %v167 = vperm.slane %v62, 0
  %v169 = vadd.f32 %v162, %v167
  %v170 = vadd.f32 %v163, %v167
  %v171 = vadd.f32 %v164, %v167
  %v172 = vadd.f32 %v165, %v167
  %v173 = vpack.c.bf16 %v170, %v169
  %v174 = vpack.c.bf16 %v172, %v171
  %v175 = vld [vmem:[%s3] sm:$0xf]
  %v176 = vld [vmem:[%s3 + $0x4] sm:$0xf]
  %v177 = vld [vmem:[%s3 + $0x8] sm:$0xf]
  %v178 = vld [vmem:[%s3 + $0xc] sm:$0xf]
  %v179 = vld [vmem:[%s4] sm:$0x1]
  %v181 = vperm.slane %v179, 0
  %v187 = vunpack.c.l.b16 %v175
  %v188 = vunpack.c.l.b16 %v176
  %v189 = vunpack.c.l.b16 %v177
  %v190 = vunpack.c.l.b16 %v178
  %v191 = vpack.c.b16 %v188, %v187
  %v192 = vpack.c.b16 %v190, %v189
  %v196 = vsel %vm63, %v173, 0
  %v199 = vsel %vm63, %v174, 0
  %201 = vmatpush.bf16.msra.mxu0 0
  %202 = vmatpush.bf16.msra.mxu0 0
  %203 = vmatpush.bf16.msra.mxu0 0
  %204 = vmatpush.bf16.msra.mxu0 0
  %205 = vmatpush.bf16.msra.mxu0 0
  %206 = vmatpush.bf16.msra.mxu0 0
  %207 = vmatpush.bf16.msra.mxu0 %v192
  %208 = vmatpush.bf16.msra.mxu0 %v191
  %209 = vmatmul.bf16.gmra.mxu0 %v196
  %v210 = vpop.f32.mrf.mxu0
  %v211 = vadd.f32 %v181, %v210
  %v212 = vpop.f32.mrf.mxu0
  %v213 = vadd.f32 %v181, %v212
  %214 = vmatmul.bf16.gmra.mxu0 %v199
  %v215 = vpop.f32.mrf.mxu0
  %v216 = vadd.f32 %v181, %v215
  %v217 = vpop.f32.mrf.mxu0
  %v218 = vadd.f32 %v181, %v217
  %219 = vdwg.mxu0
  %v220 = vld [vmem:[%s5] sm:$0xf]
  %v221 = vld [vmem:[%s5 + $0x4] sm:$0xf]
  %v222 = vld [vmem:[%s5 + $0x8] sm:$0xf]
  %v223 = vld [vmem:[%s5 + $0xc] sm:$0xf]
  %v224 = vld [vmem:[%s6] sm:$0x1]
  %v226 = vperm.slane %v224, 0
  %v232 = vunpack.c.l.b16 %v220
  %v233 = vunpack.c.l.b16 %v221
  %v234 = vunpack.c.l.b16 %v222
  %v235 = vunpack.c.l.b16 %v223
  %v236 = vpack.c.b16 %v233, %v232
  %v237 = vpack.c.b16 %v235, %v234
  %240 = vmatpush.bf16.msra.mxu0 0
  %241 = vmatpush.bf16.msra.mxu0 0
  %242 = vmatpush.bf16.msra.mxu0 0
  %243 = vmatpush.bf16.msra.mxu0 0
  %244 = vmatpush.bf16.msra.mxu0 0
  %245 = vmatpush.bf16.msra.mxu0 0
  %246 = vmatpush.bf16.msra.mxu0 %v237
  %247 = vmatpush.bf16.msra.mxu0 %v236
  %248 = vmatmul.bf16.gmra.mxu0 %v196
  %v249 = vpop.f32.mrf.mxu0
  %v250 = vadd.f32 %v226, %v249
  %v251 = vpop.f32.mrf.mxu0
  %v252 = vadd.f32 %v226, %v251
  %253 = vmatmul.bf16.gmra.mxu0 %v199
  %v254 = vpop.f32.mrf.mxu0
  %v255 = vadd.f32 %v226, %v254
  %v256 = vpop.f32.mrf.mxu0
  %v257 = vadd.f32 %v226, %v256
  %258 = vdwg.mxu0
  %v259 = vld [vmem:[%s7] sm:$0xf]
  %v260 = vld [vmem:[%s7 + $0x4] sm:$0xf]
  %v261 = vld [vmem:[%s7 + $0x8] sm:$0xf]
  %v262 = vld [vmem:[%s7 + $0xc] sm:$0xf]
  %v263 = vld [vmem:[%s8] sm:$0x1]
  %v265 = vperm.slane %v263, 0
  %v271 = vunpack.c.l.b16 %v259
  %v272 = vunpack.c.l.b16 %v260
  %v273 = vunpack.c.l.b16 %v261
  %v274 = vunpack.c.l.b16 %v262
  %v275 = vpack.c.b16 %v272, %v271
  %v276 = vpack.c.b16 %v274, %v273
  %279 = vmatpush.bf16.msra.mxu0 0
  %280 = vmatpush.bf16.msra.mxu0 0
  %281 = vmatpush.bf16.msra.mxu0 0
  %282 = vmatpush.bf16.msra.mxu0 0
  %283 = vmatpush.bf16.msra.mxu0 0
  %284 = vmatpush.bf16.msra.mxu0 0
  %285 = vmatpush.bf16.msra.mxu0 %v276
  %286 = vmatpush.bf16.msra.mxu0 %v275
  %287 = vmatmul.bf16.gmra.mxu0 %v196
  %v288 = vpop.f32.mrf.mxu0
  %v289 = vadd.f32 %v265, %v288
  %v290 = vpop.f32.mrf.mxu0
  %v291 = vadd.f32 %v265, %v290
  %292 = vmatmul.bf16.gmra.mxu0 %v199
  %v293 = vpop.f32.mrf.mxu0
  %v294 = vadd.f32 %v265, %v293
  %v295 = vpop.f32.mrf.mxu0
  %v296 = vadd.f32 %v265, %v295
  %297 = vdwg.mxu0
  %v298 = vmul.f32 %v211, 0.25
  %v299 = vmul.f32 %v213, 0.25
  %v300 = vmul.f32 %v216, 0.25
  %v301 = vmul.f32 %v218, 0.25
  %v302 = vpack.c.bf16 %v298, %v298
  %v303 = vpack.c.bf16 %v299, %v299
  %v304 = vpack.c.bf16 %v300, %v300
  %v305 = vpack.c.bf16 %v301, %v301
  %v306 = vpack.c.bf16 %v250, %v250
  %v307 = vpack.c.bf16 %v252, %v252
  %v308 = vpack.c.bf16 %v255, %v255
  %v309 = vpack.c.bf16 %v257, %v257
  %v310 = vpack.c.bf16 %v289, %v289
  %v311 = vpack.c.bf16 %v291, %v291
  %v312 = vpack.c.bf16 %v294, %v294
  %v313 = vpack.c.bf16 %v296, %v296
  %v316 = vunpack.c.l.b16 %v302
  %v317 = vunpack.c.l.b16 %v303
  %v318 = vpack.c.b16 %v317, %v316
  %v321 = vunpack.c.l.b16 %v306
  %v322 = vunpack.c.l.b16 %v307
  %v323 = vpack.c.b16 %v322, %v321
  %vm324 = vcmask 130048
  %v326 = vsel %vm324, %v318, 0
  %v329 = vsel %vm324, %v323, 0
  %331 = vmatpush.bf16.xpose.msra.mxu0 0
  %332 = vmatpush.bf16.xpose.msra.mxu0 0
  %333 = vmatpush.bf16.xpose.msra.mxu0 0
  %334 = vmatpush.bf16.xpose.msra.mxu0 0
  %335 = vmatpush.bf16.xpose.msra.mxu0 0
  %336 = vmatpush.bf16.xpose.msra.mxu0 0
  %337 = vmatpush.bf16.xpose.msra.mxu0 0
  %338 = vmatpush.bf16.xpose.msra.mxu0 %v329
  %339 = vmatmul.bf16.gmra.mxu0 %v326
  %v340 = vpop.f32.mrf.mxu0
  %v341 = vadd.f32 0.0, %v340
  %v342 = vpop.f32.mrf.mxu0
  %v343 = vadd.f32 0.0, %v342
  %344 = vdwg.mxu0
  %v347 = vunpack.c.l.b16 %v304
  %v348 = vunpack.c.l.b16 %v305
  %v349 = vpack.c.b16 %v348, %v347
  %v352 = vunpack.c.l.b16 %v308
  %v353 = vunpack.c.l.b16 %v309
  %v354 = vpack.c.b16 %v353, %v352
  %v356 = vsel %vm324, %v349, 0
  %v359 = vsel %vm324, %v354, 0
  %361 = vmatpush.bf16.xpose.msra.mxu0 0
  %362 = vmatpush.bf16.xpose.msra.mxu0 0
  %363 = vmatpush.bf16.xpose.msra.mxu0 0
  %364 = vmatpush.bf16.xpose.msra.mxu0 0
  %365 = vmatpush.bf16.xpose.msra.mxu0 0
  %366 = vmatpush.bf16.xpose.msra.mxu0 0
  %367 = vmatpush.bf16.xpose.msra.mxu0 0
  %368 = vmatpush.bf16.xpose.msra.mxu0 %v359
  %369 = vmatmul.bf16.gmra.mxu0 %v356
  %v370 = vpop.f32.mrf.mxu0
  %v371 = vadd.f32 0.0, %v370
  %v372 = vpop.f32.mrf.mxu0
  %v373 = vadd.f32 0.0, %v372
  %374 = vdwg.mxu0
  %v375 = vsel %vm324, %v341, -inf
  %376 = vmax.xlane.f32.xlu0 %v375
  %v377 = vpop.xlane.xlu0 %376
  %v378 = vsel %vm324, %v343, -inf
  %379 = vmax.xlane.f32.xlu0 %v378
  %v380 = vpop.xlane.xlu0 %379
  %v381 = vsel %vm324, %v371, -inf
  %382 = vmax.xlane.f32.xlu0 %v381
  %v383 = vpop.xlane.xlu0 %382
  %v384 = vsel %vm324, %v373, -inf
  %385 = vmax.xlane.f32.xlu0 %v384
  %v386 = vpop.xlane.xlu0 %385
  %v387 = vsub.f32 %v341, %v377
  %v388 = vsub.f32 %v343, %v380
  %v389 = vsub.f32 %v371, %v383
  %v390 = vsub.f32 %v373, %v386
  %v391 = vmul.f32 %v387, 1.442695
  %v392 = vpow.pop %v391
  %v393 = vmul.f32 %v388, 1.442695
  %v394 = vpow.pop %v393
  %v395 = vmul.f32 %v389, 1.442695
  %v396 = vpow.pop %v395
  %v397 = vmul.f32 %v390, 1.442695
  %v398 = vpow.pop %v397
  %v399 = vsel %vm324, %v392, 0.0
  %400 = vadd.xlane.f32.xlu0 %v399
  %v401 = vpop.xlane.xlu0 %400
  %v402 = vsel %vm324, %v394, 0.0
  %403 = vadd.xlane.f32.xlu0 %v402
  %v404 = vpop.xlane.xlu0 %403
  %v405 = vsel %vm324, %v396, 0.0
  %406 = vadd.xlane.f32.xlu0 %v405
  %v407 = vpop.xlane.xlu0 %406
  %v408 = vsel %vm324, %v398, 0.0
  %409 = vadd.xlane.f32.xlu0 %v408
  %v410 = vpop.xlane.xlu0 %409
  %v411 = vrcp.pop %v401
  %v412 = vrcp.pop %v404
  %v413 = vrcp.pop %v407
  %v414 = vrcp.pop %v410
  %v415 = vmul.f32 %v392, %v411
  %v416 = vmul.f32 %v394, %v412
  %v417 = vmul.f32 %v396, %v413
  %v418 = vmul.f32 %v398, %v414
  %v419 = vpack.c.bf16 %v415, %v415
  %v420 = vpack.c.bf16 %v416, %v416
  %v421 = vpack.c.bf16 %v417, %v417
  %v422 = vpack.c.bf16 %v418, %v418
  %v425 = vunpack.c.l.b16 %v419
  %v426 = vunpack.c.l.b16 %v420
  %v427 = vpack.c.b16 %v426, %v425
  %v430 = vunpack.c.l.b16 %v310
  %v431 = vunpack.c.l.b16 %v311
  %v432 = vpack.c.b16 %v431, %v430
  %v435 = vsel %vm324, %v427, 0
  %437 = vmatpush.bf16.msra.mxu0 0
  %438 = vmatpush.bf16.msra.mxu0 0
  %439 = vmatpush.bf16.msra.mxu0 0
  %440 = vmatpush.bf16.msra.mxu0 0
  %441 = vmatpush.bf16.msra.mxu0 0
  %442 = vmatpush.bf16.msra.mxu0 0
  %443 = vmatpush.bf16.msra.mxu0 0
  %444 = vmatpush.bf16.msra.mxu0 %v432
  %445 = vmatmul.bf16.gmra.mxu0 %v435
  %v446 = vpop.f32.mrf.mxu0
  %v447 = vadd.f32 0.0, %v446
  %v448 = vpop.f32.mrf.mxu0
  %v449 = vadd.f32 0.0, %v448
  %450 = vdwg.mxu0
  %v453 = vunpack.c.l.b16 %v421
  %v454 = vunpack.c.l.b16 %v422
  %v455 = vpack.c.b16 %v454, %v453
  %v458 = vunpack.c.l.b16 %v312
  %v459 = vunpack.c.l.b16 %v313
  %v460 = vpack.c.b16 %v459, %v458
  %v463 = vsel %vm324, %v455, 0
  %465 = vmatpush.bf16.msra.mxu0 0
  %466 = vmatpush.bf16.msra.mxu0 0
  %467 = vmatpush.bf16.msra.mxu0 0
  %468 = vmatpush.bf16.msra.mxu0 0
  %469 = vmatpush.bf16.msra.mxu0 0
  %470 = vmatpush.bf16.msra.mxu0 0
  %471 = vmatpush.bf16.msra.mxu0 0
  %472 = vmatpush.bf16.msra.mxu0 %v460
  %473 = vmatmul.bf16.gmra.mxu0 %v463
  %v474 = vpop.f32.mrf.mxu0
  %v475 = vadd.f32 0.0, %v474
  %v476 = vpop.f32.mrf.mxu0
  %v477 = vadd.f32 0.0, %v476
  %478 = vdwg.mxu0
  %479 = vrot.lane.b32.xlu0 %v318, 112
  %v480 = vpop.permute.xlu0 %479
  %481 = vrot.lane.b32.xlu0 %v323, 112
  %v482 = vpop.permute.xlu0 %481
  %v484 = vsel %vm324, %v480, 0
  %v487 = vsel %vm324, %v482, 0
  %489 = vmatpush.bf16.xpose.msra.mxu0 0
  %490 = vmatpush.bf16.xpose.msra.mxu0 0
  %491 = vmatpush.bf16.xpose.msra.mxu0 0
  %492 = vmatpush.bf16.xpose.msra.mxu0 0
  %493 = vmatpush.bf16.xpose.msra.mxu0 0
  %494 = vmatpush.bf16.xpose.msra.mxu0 0
  %495 = vmatpush.bf16.xpose.msra.mxu0 0
  %496 = vmatpush.bf16.xpose.msra.mxu0 %v487
  %497 = vmatmul.bf16.gmra.mxu0 %v484
  %v498 = vpop.f32.mrf.mxu0
  %v499 = vadd.f32 0.0, %v498
  %v500 = vpop.f32.mrf.mxu0
  %v501 = vadd.f32 0.0, %v500
  %502 = vdwg.mxu0
  %503 = vrot.lane.b32.xlu0 %v349, 112
  %v504 = vpop.permute.xlu0 %503
  %505 = vrot.lane.b32.xlu0 %v354, 112
  %v506 = vpop.permute.xlu0 %505
  %v508 = vsel %vm324, %v504, 0
  %v511 = vsel %vm324, %v506, 0
  %513 = vmatpush.bf16.xpose.msra.mxu0 0
  %514 = vmatpush.bf16.xpose.msra.mxu0 0
  %515 = vmatpush.bf16.xpose.msra.mxu0 0
  %516 = vmatpush.bf16.xpose.msra.mxu0 0
  %517 = vmatpush.bf16.xpose.msra.mxu0 0
  %518 = vmatpush.bf16.xpose.msra.mxu0 0
  %519 = vmatpush.bf16.xpose.msra.mxu0 0
  %520 = vmatpush.bf16.xpose.msra.mxu0 %v511
  %521 = vmatmul.bf16.gmra.mxu0 %v508
  %v522 = vpop.f32.mrf.mxu0
  %v523 = vadd.f32 0.0, %v522
  %v524 = vpop.f32.mrf.mxu0
  %v525 = vadd.f32 0.0, %v524
  %526 = vdwg.mxu0
  %v527 = vsel %vm324, %v499, -inf
  %528 = vmax.xlane.f32.xlu0 %v527
  %v529 = vpop.xlane.xlu0 %528
  %v530 = vsel %vm324, %v501, -inf
  %531 = vmax.xlane.f32.xlu0 %v530
  %v532 = vpop.xlane.xlu0 %531
  %v533 = vsel %vm324, %v523, -inf
  %534 = vmax.xlane.f32.xlu0 %v533
  %v535 = vpop.xlane.xlu0 %534
  %v536 = vsel %vm324, %v525, -inf
  %537 = vmax.xlane.f32.xlu0 %v536
  %v538 = vpop.xlane.xlu0 %537
  %v539 = vsub.f32 %v499, %v529
  %v540 = vsub.f32 %v501, %v532
  %v541 = vsub.f32 %v523, %v535
  %v542 = vsub.f32 %v525, %v538
  %v543 = vmul.f32 %v539, 1.442695
  %v544 = vpow.pop %v543
  %v545 = vmul.f32 %v540, 1.442695
  %v546 = vpow.pop %v545
  %v547 = vmul.f32 %v541, 1.442695
  %v548 = vpow.pop %v547
  %v549 = vmul.f32 %v542, 1.442695
  %v550 = vpow.pop %v549
  %v551 = vsel %vm324, %v544, 0.0
  %552 = vadd.xlane.f32.xlu0 %v551
  %v553 = vpop.xlane.xlu0 %552
  %v554 = vsel %vm324, %v546, 0.0
  %555 = vadd.xlane.f32.xlu0 %v554
  %v556 = vpop.xlane.xlu0 %555
  %v557 = vsel %vm324, %v548, 0.0
  %558 = vadd.xlane.f32.xlu0 %v557
  %v559 = vpop.xlane.xlu0 %558
  %v560 = vsel %vm324, %v550, 0.0
  %561 = vadd.xlane.f32.xlu0 %v560
  %v562 = vpop.xlane.xlu0 %561
  %v563 = vrcp.pop %v553
  %v564 = vrcp.pop %v556
  %v565 = vrcp.pop %v559
  %v566 = vrcp.pop %v562
  %v567 = vmul.f32 %v544, %v563
  %v568 = vmul.f32 %v546, %v564
  %v569 = vmul.f32 %v548, %v565
  %v570 = vmul.f32 %v550, %v566
  %v571 = vpack.c.bf16 %v567, %v567
  %v572 = vpack.c.bf16 %v568, %v568
  %v573 = vpack.c.bf16 %v569, %v569
  %v574 = vpack.c.bf16 %v570, %v570
  %v577 = vunpack.c.l.b16 %v571
  %v578 = vunpack.c.l.b16 %v572
  %v579 = vpack.c.b16 %v578, %v577
  %580 = vrot.lane.b32.xlu0 %v432, 112
  %v581 = vpop.permute.xlu0 %580
  %v584 = vsel %vm324, %v579, 0
  %586 = vmatpush.bf16.msra.mxu0 0
  %587 = vmatpush.bf16.msra.mxu0 0
  %588 = vmatpush.bf16.msra.mxu0 0
  %589 = vmatpush.bf16.msra.mxu0 0
  %590 = vmatpush.bf16.msra.mxu0 0
  %591 = vmatpush.bf16.msra.mxu0 0
  %592 = vmatpush.bf16.msra.mxu0 0
  %593 = vmatpush.bf16.msra.mxu0 %v581
  %594 = vmatmul.bf16.gmra.mxu0 %v584
  %v595 = vpop.f32.mrf.mxu0
  %v596 = vadd.f32 0.0, %v595
  %v597 = vpop.f32.mrf.mxu0
  %v598 = vadd.f32 0.0, %v597
  %599 = vdwg.mxu0
  %v602 = vunpack.c.l.b16 %v573
  %v603 = vunpack.c.l.b16 %v574
  %v604 = vpack.c.b16 %v603, %v602
  %605 = vrot.lane.b32.xlu0 %v460, 112
  %v606 = vpop.permute.xlu0 %605
  %v609 = vsel %vm324, %v604, 0
  %611 = vmatpush.bf16.msra.mxu0 0
  %612 = vmatpush.bf16.msra.mxu0 0
  %613 = vmatpush.bf16.msra.mxu0 0
  %614 = vmatpush.bf16.msra.mxu0 0
  %615 = vmatpush.bf16.msra.mxu0 0
  %616 = vmatpush.bf16.msra.mxu0 0
  %617 = vmatpush.bf16.msra.mxu0 0
  %618 = vmatpush.bf16.msra.mxu0 %v606
  %619 = vmatmul.bf16.gmra.mxu0 %v609
  %v620 = vpop.f32.mrf.mxu0
  %v621 = vadd.f32 0.0, %v620
  %v622 = vpop.f32.mrf.mxu0
  %v623 = vadd.f32 0.0, %v622
  %624 = vdwg.mxu0
  %629 = vrot.lane.b32.xlu0 %v596, 16
  %v630 = vpop.permute.xlu0 %629
  %631 = vrot.lane.b32.xlu0 %v598, 16
  %v632 = vpop.permute.xlu0 %631
  %633 = vrot.lane.b32.xlu0 %v621, 16
  %v634 = vpop.permute.xlu0 %633
  %635 = vrot.lane.b32.xlu0 %v623, 16
  %v636 = vpop.permute.xlu0 %635
  %v641 = vsel %vm324, %v447, %v630
  %v642 = vsel %vm324, %v449, %v632
  %v643 = vsel %vm324, %v475, %v634
  %v644 = vsel %vm324, %v477, %v636
  %v645 = vpack.c.bf16 %v642, %v641
  %v646 = vpack.c.bf16 %v644, %v643
  %v647 = vld [vmem:[%s9] sm:$0xf]
  %v648 = vld [vmem:[%s9 + $0x4] sm:$0xf]
  %v649 = vld [vmem:[%s9 + $0x8] sm:$0xf]
  %v650 = vld [vmem:[%s9 + $0xc] sm:$0xf]
  %v655 = vunpack.c.l.b16 %v647
  %v656 = vunpack.c.l.b16 %v648
  %v657 = vunpack.c.l.b16 %v649
  %v658 = vunpack.c.l.b16 %v650
  %v659 = vpack.c.b16 %v656, %v655
  %v660 = vpack.c.b16 %v658, %v657
  %v664 = vsel %vm63, %v645, 0
  %v667 = vsel %vm63, %v646, 0
  %669 = vmatpush.bf16.msra.mxu0 0
  %670 = vmatpush.bf16.msra.mxu0 0
  %671 = vmatpush.bf16.msra.mxu0 0
  %672 = vmatpush.bf16.msra.mxu0 0
  %673 = vmatpush.bf16.msra.mxu0 0
  %674 = vmatpush.bf16.msra.mxu0 0
  %675 = vmatpush.bf16.msra.mxu0 %v660
  %676 = vmatpush.bf16.msra.mxu0 %v659
  %677 = vmatmul.bf16.gmra.mxu0 %v664
  %v678 = vpop.f32.mrf.mxu0
  %v679 = vadd.f32 0.0, %v678
  %v680 = vpop.f32.mrf.mxu0
  %v681 = vadd.f32 0.0, %v680
  %682 = vmatmul.bf16.gmra.mxu0 %v667
  %v683 = vpop.f32.mrf.mxu0
  %v684 = vadd.f32 0.0, %v683
  %v685 = vpop.f32.mrf.mxu0
  %v686 = vadd.f32 0.0, %v685
  %687 = vdwg.mxu0
  %v688 = vadd.f32 %v57, %v679
  %v689 = vadd.f32 %v58, %v681
  %v690 = vadd.f32 %v59, %v684
  %v691 = vadd.f32 %v60, %v686
  %v692 = vld [vmem:[%s10] sm:$0x1]
  %v694 = vperm.slane %v692, 0
  %v696 = vadd.f32 %v688, %v694
  %v697 = vadd.f32 %v689, %v694
  %v698 = vadd.f32 %v690, %v694
  %v699 = vadd.f32 %v691, %v694
  %v700 = vld [vmem:[%s11] sm:$0x1]
  %v701 = vld [vmem:[%s12] sm:$0x1]
  %v702 = vsel %vm63, %v696, 0.0
  %703 = vadd.xlane.f32.xlu0 %v702
  %v704 = vpop.xlane.xlu0 %703
  %v705 = vsel %vm63, %v697, 0.0
  %706 = vadd.xlane.f32.xlu0 %v705
  %v707 = vpop.xlane.xlu0 %706
  %v708 = vsel %vm63, %v698, 0.0
  %709 = vadd.xlane.f32.xlu0 %v708
  %v710 = vpop.xlane.xlu0 %709
  %v711 = vsel %vm63, %v699, 0.0
  %712 = vadd.xlane.f32.xlu0 %v711
  %v713 = vpop.xlane.xlu0 %712
  %v714 = vmul.f32 %v704, %v82
  %v715 = vmul.f32 %v707, %v82
  %v716 = vmul.f32 %v710, %v82
  %v717 = vmul.f32 %v713, %v82
  %v718 = vsub.f32 %v696, %v714
  %v719 = vsub.f32 %v697, %v715
  %v720 = vsub.f32 %v698, %v716
  %v721 = vsub.f32 %v699, %v717
  %v722 = vmul.f32 %v718, %v718
  %v723 = vmul.f32 %v719, %v719
  %v724 = vmul.f32 %v720, %v720
  %v725 = vmul.f32 %v721, %v721
  %v726 = vsel %vm63, %v722, 0.0
  %727 = vadd.xlane.f32.xlu0 %v726
  %v728 = vpop.xlane.xlu0 %727
  %v729 = vsel %vm63, %v723, 0.0
  %730 = vadd.xlane.f32.xlu0 %v729
  %v731 = vpop.xlane.xlu0 %730
  %v732 = vsel %vm63, %v724, 0.0
  %733 = vadd.xlane.f32.xlu0 %v732
  %v734 = vpop.xlane.xlu0 %733
  %v735 = vsel %vm63, %v725, 0.0
  %736 = vadd.xlane.f32.xlu0 %v735
  %v737 = vpop.xlane.xlu0 %736
  %v738 = vmul.f32 %v728, %v82
  %v739 = vmul.f32 %v731, %v82
  %v740 = vmul.f32 %v734, %v82
  %v741 = vmul.f32 %v737, %v82
  %v742 = vadd.f32 %v738, 1e-05
  %v743 = vadd.f32 %v739, 1e-05
  %v744 = vadd.f32 %v740, 1e-05
  %v745 = vadd.f32 %v741, 1e-05
  %v746 = vrsqrt.pop %v742
  %v747 = vmul.f32 %v746, %v742
  %v748 = vmul.f32 %v747, %v746
  %v749 = vmul.f32 0.5, %v748
  %v750 = vsub.f32 1.5, %v749
  %v751 = vmul.f32 %v746, %v750
  %vm752 = vweird.f32 %v742
  %vm753 = vweird.f32 %v746
  %vm754 = vmor %vm752, %vm753
  %v755 = vsel %vm754, %v746, %v751
  %v756 = vrsqrt.pop %v743
  %v757 = vmul.f32 %v756, %v743
  %v758 = vmul.f32 %v757, %v756
  %v759 = vmul.f32 0.5, %v758
  %v760 = vsub.f32 1.5, %v759
  %v761 = vmul.f32 %v756, %v760
  %vm762 = vweird.f32 %v743
  %vm763 = vweird.f32 %v756
  %vm764 = vmor %vm762, %vm763
  %v765 = vsel %vm764, %v756, %v761
  %v766 = vrsqrt.pop %v744
  %v767 = vmul.f32 %v766, %v744
  %v768 = vmul.f32 %v767, %v766
  %v769 = vmul.f32 0.5, %v768
  %v770 = vsub.f32 1.5, %v769
  %v771 = vmul.f32 %v766, %v770
  %vm772 = vweird.f32 %v744
  %vm773 = vweird.f32 %v766
  %vm774 = vmor %vm772, %vm773
  %v775 = vsel %vm774, %v766, %v771
  %v776 = vrsqrt.pop %v745
  %v777 = vmul.f32 %v776, %v745
  %v778 = vmul.f32 %v777, %v776
  %v779 = vmul.f32 0.5, %v778
  %v780 = vsub.f32 1.5, %v779
  %v781 = vmul.f32 %v776, %v780
  %vm782 = vweird.f32 %v745
  %vm783 = vweird.f32 %v776
  %vm784 = vmor %vm782, %vm783
  %v785 = vsel %vm784, %v776, %v781
  %v786 = vmul.f32 %v718, %v755
  %v787 = vmul.f32 %v719, %v765
  %v788 = vmul.f32 %v720, %v775
  %v789 = vmul.f32 %v721, %v785
  %v791 = vperm.slane %v700, 0
  %v793 = vmul.f32 %v786, %v791
  %v794 = vmul.f32 %v787, %v791
  %v795 = vmul.f32 %v788, %v791
  %v796 = vmul.f32 %v789, %v791
  %v798 = vperm.slane %v701, 0
  %v800 = vadd.f32 %v793, %v798
  %v801 = vadd.f32 %v794, %v798
  %v802 = vadd.f32 %v795, %v798
  %v803 = vadd.f32 %v796, %v798
  %v804 = vpack.c.bf16 %v801, %v800
  %v805 = vpack.c.bf16 %v803, %v802
  %v806 = vld [vmem:[%s13] sm:$0xf]
  %v807 = vld [vmem:[%s13 + $0x4] sm:$0xf]
  %v808 = vld [vmem:[%s13 + $0x8] sm:$0xf]
  %v809 = vld [vmem:[%s13 + $0xc] sm:$0xf]
  %v810 = vld [vmem:[%s14] sm:$0x1]
  %v812 = vperm.slane %v810, 0
  %v818 = vunpack.c.l.b16 %v806
  %v819 = vunpack.c.l.b16 %v807
  %v820 = vunpack.c.l.b16 %v808
  %v821 = vunpack.c.l.b16 %v809
  %v822 = vpack.c.b16 %v819, %v818
  %v823 = vpack.c.b16 %v821, %v820
  %v827 = vsel %vm63, %v804, 0
  %v830 = vsel %vm63, %v805, 0
  %832 = vmatpush.bf16.msra.mxu0 0
  %833 = vmatpush.bf16.msra.mxu0 0
  %834 = vmatpush.bf16.msra.mxu0 0
  %835 = vmatpush.bf16.msra.mxu0 0
  %836 = vmatpush.bf16.msra.mxu0 0
  %837 = vmatpush.bf16.msra.mxu0 0
  %838 = vmatpush.bf16.msra.mxu0 %v823
  %839 = vmatpush.bf16.msra.mxu0 %v822
  %840 = vmatmul.bf16.gmra.mxu0 %v827
  %v841 = vpop.f32.mrf.mxu0
  %v842 = vadd.f32 %v812, %v841
  %v843 = vpop.f32.mrf.mxu0
  %v844 = vadd.f32 %v812, %v843
  %845 = vmatmul.bf16.gmra.mxu0 %v830
  %v846 = vpop.f32.mrf.mxu0
  %v847 = vadd.f32 %v812, %v846
  %v848 = vpop.f32.mrf.mxu0
  %v849 = vadd.f32 %v812, %v848
  %850 = vdwg.mxu0
  %v851 = vmul.f32 %v842, %v842
  %v852 = vmul.f32 %v844, %v844
  %v853 = vmul.f32 %v847, %v847
  %v854 = vmul.f32 %v849, %v849
  %v855 = vmul.f32 %v842, %v851
  %v856 = vmul.f32 %v844, %v852
  %v857 = vmul.f32 %v847, %v853
  %v858 = vmul.f32 %v849, %v854
  %v859 = vmul.f32 %v855, 0.044715
  %v860 = vmul.f32 %v856, 0.044715
  %v861 = vmul.f32 %v857, 0.044715
  %v862 = vmul.f32 %v858, 0.044715
  %v863 = vadd.f32 %v842, %v859
  %v864 = vadd.f32 %v844, %v860
  %v865 = vadd.f32 %v847, %v861
  %v866 = vadd.f32 %v849, %v862
  %v867 = vmul.f32 %v863, 0.7978846
  %v868 = vmul.f32 %v864, 0.7978846
  %v869 = vmul.f32 %v865, 0.7978846
  %v870 = vmul.f32 %v866, 0.7978846
  %v871 = vtanh.pop %v867
  %v872 = vtanh.pop %v868
  %v873 = vtanh.pop %v869
  %v874 = vtanh.pop %v870
  %v875 = vadd.f32 %v871, 1.0
  %v876 = vadd.f32 %v872, 1.0
  %v877 = vadd.f32 %v873, 1.0
  %v878 = vadd.f32 %v874, 1.0
  %v879 = vmul.f32 %v875, 0.5
  %v880 = vmul.f32 %v876, 0.5
  %v881 = vmul.f32 %v877, 0.5
  %v882 = vmul.f32 %v878, 0.5
  %v883 = vmul.f32 %v842, %v879
  %v884 = vmul.f32 %v844, %v880
  %v885 = vmul.f32 %v847, %v881
  %v886 = vmul.f32 %v849, %v882
  %v887 = vpack.c.bf16 %v884, %v883
  %v888 = vpack.c.bf16 %v886, %v885
  %v889 = vld [vmem:[%s15] sm:$0xf]
  %v890 = vld [vmem:[%s15 + $0x4] sm:$0xf]
  %v891 = vld [vmem:[%s15 + $0x8] sm:$0xf]
  %v892 = vld [vmem:[%s15 + $0xc] sm:$0xf]
  %v893 = vld [vmem:[%s15 + $0x10] sm:$0xf]
  %v894 = vld [vmem:[%s15 + $0x14] sm:$0xf]
  %v895 = vld [vmem:[%s15 + $0x18] sm:$0xf]
  %v896 = vld [vmem:[%s15 + $0x1c] sm:$0xf]
  %v897 = vld [vmem:[%s15 + $0x20] sm:$0xf]
  %v898 = vld [vmem:[%s15 + $0x24] sm:$0xf]
  %v899 = vld [vmem:[%s15 + $0x28] sm:$0xf]
  %v900 = vld [vmem:[%s15 + $0x2c] sm:$0xf]
  %v901 = vld [vmem:[%s15 + $0x30] sm:$0xf]
  %v902 = vld [vmem:[%s15 + $0x34] sm:$0xf]
  %v903 = vld [vmem:[%s15 + $0x38] sm:$0xf]
  %v904 = vld [vmem:[%s15 + $0x3c] sm:$0xf]
  %v921 = vunpack.c.l.b16 %v889
  %v922 = vunpack.c.l.b16 %v890
  %v923 = vunpack.c.l.b16 %v891
  %v924 = vunpack.c.l.b16 %v892
  %v925 = vunpack.c.l.b16 %v893
  %v926 = vunpack.c.l.b16 %v894
  %v927 = vunpack.c.l.b16 %v895
  %v928 = vunpack.c.l.b16 %v896
  %v929 = vunpack.c.l.b16 %v897
  %v930 = vunpack.c.l.b16 %v898
  %v931 = vunpack.c.l.b16 %v899
  %v932 = vunpack.c.l.b16 %v900
  %v933 = vunpack.c.l.b16 %v901
  %v934 = vunpack.c.l.b16 %v902
  %v935 = vunpack.c.l.b16 %v903
  %v936 = vunpack.c.l.b16 %v904
  %v937 = vpack.c.b16 %v922, %v921
  %v938 = vpack.c.b16 %v924, %v923
  %v939 = vpack.c.b16 %v926, %v925
  %v940 = vpack.c.b16 %v928, %v927
  %v941 = vpack.c.b16 %v930, %v929
  %v942 = vpack.c.b16 %v932, %v931
  %v943 = vpack.c.b16 %v934, %v933
  %v944 = vpack.c.b16 %v936, %v935
  %953 = vmatpush.bf16.msra.mxu0 %v944
  %954 = vmatpush.bf16.msra.mxu0 %v943
  %955 = vmatpush.bf16.msra.mxu0 %v942
  %956 = vmatpush.bf16.msra.mxu0 %v941
  %957 = vmatpush.bf16.msra.mxu0 %v940
  %958 = vmatpush.bf16.msra.mxu0 %v939
  %959 = vmatpush.bf16.msra.mxu0 %v938
  %960 = vmatpush.bf16.msra.mxu0 %v937
  %961 = vmatmul.bf16.gmra.mxu0 %v887
  %v962 = vpop.f32.mrf.mxu0
  %v963 = vadd.f32 0.0, %v962
  %v964 = vpop.f32.mrf.mxu0
  %v965 = vadd.f32 0.0, %v964
  %966 = vmatmul.bf16.gmra.mxu0 %v888
  %v967 = vpop.f32.mrf.mxu0
  %v968 = vadd.f32 0.0, %v967
  %v969 = vpop.f32.mrf.mxu0
  %v970 = vadd.f32 0.0, %v969
  %971 = vdwg.mxu0
  %v972 = vadd.f32 %v696, %v963
  %v973 = vadd.f32 %v697, %v965
  %v974 = vadd.f32 %v698, %v968
  %v975 = vadd.f32 %v699, %v970
  %v976 = vld [vmem:[%s16] sm:$0x1]
  %v978 = vperm.slane %v976, 0
  %v980 = vadd.f32 %v972, %v978
  %v981 = vadd.f32 %v973, %v978
  %v982 = vadd.f32 %v974, %v978
  %v983 = vadd.f32 %v975, %v978
  %984 = vst.msk [vmem:[%s17] sm:$0xff] %vm63, %v980
  %985 = vst.msk [vmem:[%s17 + $0x8] sm:$0xff] %vm63, %v981
  %986 = vst.msk [vmem:[%s17 + $0x10] sm:$0xff] %vm63, %v982
  %987 = vst.msk [vmem:[%s17 + $0x18] sm:$0xff] %vm63, %v983
  // Predicated region
  $region70: #{vlm_forward.7} parent=0 // pred_check
    _
  $region71: #{vlm_forward.7} parent=0 // pred_check_branch
    %989 = sbr.rel (0) target = $region73
  $region72: #{vlm_forward.7} parent=0 // pred_region
    _
  $region73: #{vlm_forward.7} parent=0 // pred_fallthru
    _
  // Predicated region
  $region74: #{vlm_forward.7} parent=0 // pred_check
    _
  $region75: #{vlm_forward.7} parent=0 // pred_check_branch
    %991 = sbr.rel (0) target = $region77
  $region76: #{vlm_forward.7} parent=0 // pred_region
    _
  $region77: #{vlm_forward.7} parent=0 // pred_fallthru
    _

// kernel: vlm_forward.10
$region0: #{vlm_forward.10}
  #allocation0 [shape = 'u32[]', space=smem, size = 0x4, offset = 0x4, fixed_abs, tag = 'smem constant byte address 0x4 - core index']
  #allocation1 [shape = 'u32[72,128]{1,0:T(1,128)}', space=vmem, size = 0x9000, scoped, tag = 'internal scratch']
  %s0 = inlined_call_operand.vmem [shape: f32[2,8,64], index: 0, kind: input, shape index: {}]
  %s1 = inlined_call_operand.vmem [shape: f32[2,8,8], index: 1, kind: input, shape index: {}]
  %s2 = inlined_call_operand.vmem [shape: f32[8,16], index: 2, kind: input, shape index: {}]
  %s3 = inlined_call_operand.vmem [shape: f32[8,16], index: 3, kind: input, shape index: {}]
  %s4 = inlined_call_operand.vmem [shape: f32[1,64], index: 4, kind: input, shape index: {}]
  %s5 = inlined_call_operand.vmem [shape: bf16[64,64], index: 5, kind: input, shape index: {}]
  %s6 = inlined_call_operand.vmem [shape: bf16[64,32], index: 6, kind: input, shape index: {}]
  %s7 = inlined_call_operand.vmem [shape: bf16[64,32], index: 7, kind: input, shape index: {}]
  %s8 = inlined_call_operand.vmem [shape: bf16[64,64], index: 8, kind: input, shape index: {}]
  %s9 = inlined_call_operand.vmem [shape: f32[1,64], index: 9, kind: input, shape index: {}]
  %s10 = inlined_call_operand.vmem [shape: bf16[64,128], index: 10, kind: input, shape index: {}]
  %s11 = inlined_call_operand.vmem [shape: bf16[64,128], index: 11, kind: input, shape index: {}]
  %s12 = inlined_call_operand.vmem [shape: bf16[128,64], index: 12, kind: input, shape index: {}]
  %s13 = inlined_call_operand.vmem [shape: f32[1,64], index: 13, kind: input, shape index: {}]
  %s14 = inlined_call_operand.vmem [shape: f32[2,8,64], index: 14, kind: output, shape index: {}]
  %s15 = sld [smem:[#allocation0]]
  $region66: #{vlm_forward.10} parent=0
    _
  %s17 = ssub.s32 1, %s15
  %s18 = scalar_select 0, %s17, %s15
  // Predicated region
  $region2: #{vlm_forward.10} parent=0 // pred_check
    _
  $region3: #{vlm_forward.10} parent=0 // pred_check_branch
    %20 = sbr.rel (0) target = $region5
  $region4: #{vlm_forward.10} parent=0 // pred_region
    _
  $region5: #{vlm_forward.10} parent=0 // pred_fallthru
    _
  // Predicated region
  $region6: #{vlm_forward.10} parent=0 // pred_check
    _
  $region7: #{vlm_forward.10} parent=0 // pred_check_branch
    %22 = sbr.rel (0) target = $region9
  $region8: #{vlm_forward.10} parent=0 // pred_region
    _
  $region9: #{vlm_forward.10} parent=0 // pred_fallthru
    _
  // Predicated region
  $region10: #{vlm_forward.10} parent=0 // pred_check
    _
  $region11: #{vlm_forward.10} parent=0 // pred_check_branch
    %24 = sbr.rel (0) target = $region13
  $region12: #{vlm_forward.10} parent=0 // pred_region
    _
  $region13: #{vlm_forward.10} parent=0 // pred_fallthru
    _
  // Predicated region
  $region14: #{vlm_forward.10} parent=0 // pred_check
    _
  $region15: #{vlm_forward.10} parent=0 // pred_check_branch
    %26 = sbr.rel (0) target = $region17
  $region16: #{vlm_forward.10} parent=0 // pred_region
    _
  $region17: #{vlm_forward.10} parent=0 // pred_fallthru
    _
  // Predicated region
  $region18: #{vlm_forward.10} parent=0 // pred_check
    _
  $region19: #{vlm_forward.10} parent=0 // pred_check_branch
    %28 = sbr.rel (0) target = $region21
  $region20: #{vlm_forward.10} parent=0 // pred_region
    _
  $region21: #{vlm_forward.10} parent=0 // pred_fallthru
    _
  // Predicated region
  $region22: #{vlm_forward.10} parent=0 // pred_check
    _
  $region23: #{vlm_forward.10} parent=0 // pred_check_branch
    %30 = sbr.rel (0) target = $region25
  $region24: #{vlm_forward.10} parent=0 // pred_region
    _
  $region25: #{vlm_forward.10} parent=0 // pred_fallthru
    _
  // Predicated region
  $region26: #{vlm_forward.10} parent=0 // pred_check
    _
  $region27: #{vlm_forward.10} parent=0 // pred_check_branch
    %32 = sbr.rel (0) target = $region29
  $region28: #{vlm_forward.10} parent=0 // pred_region
    _
  $region29: #{vlm_forward.10} parent=0 // pred_fallthru
    _
  // Predicated region
  $region30: #{vlm_forward.10} parent=0 // pred_check
    _
  $region31: #{vlm_forward.10} parent=0 // pred_check_branch
    %34 = sbr.rel (0) target = $region33
  $region32: #{vlm_forward.10} parent=0 // pred_region
    _
  $region33: #{vlm_forward.10} parent=0 // pred_fallthru
    _
  // Predicated region
  $region34: #{vlm_forward.10} parent=0 // pred_check
    _
  $region35: #{vlm_forward.10} parent=0 // pred_check_branch
    %36 = sbr.rel (0) target = $region37
  $region36: #{vlm_forward.10} parent=0 // pred_region
    _
  $region37: #{vlm_forward.10} parent=0 // pred_fallthru
    _
  // Predicated region
  $region38: #{vlm_forward.10} parent=0 // pred_check
    _
  $region39: #{vlm_forward.10} parent=0 // pred_check_branch
    %38 = sbr.rel (0) target = $region41
  $region40: #{vlm_forward.10} parent=0 // pred_region
    _
  $region41: #{vlm_forward.10} parent=0 // pred_fallthru
    _
  // Predicated region
  $region42: #{vlm_forward.10} parent=0 // pred_check
    _
  $region43: #{vlm_forward.10} parent=0 // pred_check_branch
    %40 = sbr.rel (0) target = $region45
  $region44: #{vlm_forward.10} parent=0 // pred_region
    _
  $region45: #{vlm_forward.10} parent=0 // pred_fallthru
    _
  // Predicated region
  $region46: #{vlm_forward.10} parent=0 // pred_check
    _
  $region47: #{vlm_forward.10} parent=0 // pred_check_branch
    %42 = sbr.rel (0) target = $region49
  $region48: #{vlm_forward.10} parent=0 // pred_region
    _
  $region49: #{vlm_forward.10} parent=0 // pred_fallthru
    _
  // Predicated region
  $region50: #{vlm_forward.10} parent=0 // pred_check
    _
  $region51: #{vlm_forward.10} parent=0 // pred_check_branch
    %44 = sbr.rel (0) target = $region53
  $region52: #{vlm_forward.10} parent=0 // pred_region
    _
  $region53: #{vlm_forward.10} parent=0 // pred_fallthru
    _
  // Predicated region
  $region54: #{vlm_forward.10} parent=0 // pred_check
    _
  $region55: #{vlm_forward.10} parent=0 // pred_check_branch
    %46 = sbr.rel (0) target = $region57
  $region56: #{vlm_forward.10} parent=0 // pred_region
    _
  $region57: #{vlm_forward.10} parent=0 // pred_fallthru
    _
  %v48 = vld [vmem:[%s0] sm:$0xff]
  %v49 = vld [vmem:[%s0 + $0x8] sm:$0xff]
  %v50 = vld [vmem:[%s2] sm:$0xff]
  %v51 = vld [vmem:[%s3] sm:$0xff]
  %v52 = vld [vmem:[%s1] sm:$0xff]
  %v53 = vld [vmem:[%s1 + $0x8] sm:$0xff]
  %v54 = vld [vmem:[%s4] sm:$0x1]
  %v55 = vmul.f32 %v48, %v48
  %v56 = vmul.f32 %v49, %v49
  %vm57 = vcmask 523264
  %v58 = vsel %vm57, %v55, 0.0
  %59 = vadd.xlane.f32.xlu0 %v58
  %v60 = vpop.xlane.xlu0 %59
  %v61 = vsel %vm57, %v56, 0.0
  %62 = vadd.xlane.f32.xlu0 %v61
  %v63 = vpop.xlane.xlu0 %62
  %v64 = vrcp.pop 64.0
  %v65 = vmul.f32 64.0, %v64
  %v66 = vsub.f32 1.0, %v65
  %v67 = vmul.f32 %v64, %v66
  %v68 = vadd.f32 %v64, %v67
  %vm69 = vweird.f32 %v64
  %v70 = vsel %vm69, %v64, %v68
  %v71 = vmul.f32 %v60, %v70
  %v72 = vmul.f32 %v63, %v70
  %v73 = vadd.f32 %v71, 1e-05
  %v74 = vadd.f32 %v72, 1e-05
  %v75 = vrsqrt.pop %v73
  %v76 = vmul.f32 %v75, %v73
  %v77 = vmul.f32 %v76, %v75
  %v78 = vmul.f32 0.5, %v77
  %v79 = vsub.f32 1.5, %v78
  %v80 = vmul.f32 %v75, %v79
  %vm81 = vweird.f32 %v73
  %vm82 = vweird.f32 %v75
  %vm83 = vmor %vm81, %vm82
  %v84 = vsel %vm83, %v75, %v80
  %v85 = vrsqrt.pop %v74
  %v86 = vmul.f32 %v85, %v74
  %v87 = vmul.f32 %v86, %v85
  %v88 = vmul.f32 0.5, %v87
  %v89 = vsub.f32 1.5, %v88
  %v90 = vmul.f32 %v85, %v89
  %vm91 = vweird.f32 %v74
  %vm92 = vweird.f32 %v85
  %vm93 = vmor %vm91, %vm92
  %v94 = vsel %vm93, %v85, %v90
  %v95 = vmul.f32 %v48, %v84
  %v96 = vmul.f32 %v49, %v94
  %v98 = vperm.slane %v54, 0
  %v100 = vmul.f32 %v95, %v98
  %v101 = vmul.f32 %v96, %v98
  %v102 = vpack.c.bf16 %v101, %v100
  %v103 = vld [vmem:[%s5] sm:$0xf]
  %v104 = vld [vmem:[%s5 + $0x4] sm:$0xf]
  %v105 = vld [vmem:[%s5 + $0x8] sm:$0xf]
  %v106 = vld [vmem:[%s5 + $0xc] sm:$0xf]
  %v107 = vld [vmem:[%s5 + $0x10] sm:$0xf]
  %v108 = vld [vmem:[%s5 + $0x14] sm:$0xf]
  %v109 = vld [vmem:[%s5 + $0x18] sm:$0xf]
  %v110 = vld [vmem:[%s5 + $0x1c] sm:$0xf]
  %v119 = vunpack.c.l.b16 %v103
  %v120 = vunpack.c.l.b16 %v104
  %v121 = vunpack.c.l.b16 %v105
  %v122 = vunpack.c.l.b16 %v106
  %v123 = vunpack.c.l.b16 %v107
  %v124 = vunpack.c.l.b16 %v108
  %v125 = vunpack.c.l.b16 %v109
  %v126 = vunpack.c.l.b16 %v110
  %v127 = vpack.c.b16 %v120, %v119
  %v128 = vpack.c.b16 %v122, %v121
  %v129 = vpack.c.b16 %v124, %v123
  %v130 = vpack.c.b16 %v126, %v125
  %v136 = vsel %vm57, %v102, 0
  %138 = vmatpush.bf16.msra.mxu0 0
  %139 = vmatpush.bf16.msra.mxu0 0
  %140 = vmatpush.bf16.msra.mxu0 0
  %141 = vmatpush.bf16.msra.mxu0 0
  %142 = vmatpush.bf16.msra.mxu0 %v130
  %143 = vmatpush.bf16.msra.mxu0 %v129
  %144 = vmatpush.bf16.msra.mxu0 %v128
  %145 = vmatpush.bf16.msra.mxu0 %v127
  %146 = vmatmul.bf16.gmra.mxu0 %v136
  %v147 = vpop.f32.mrf.mxu0
  %v148 = vadd.f32 0.0, %v147
  %v149 = vpop.f32.mrf.mxu0
  %v150 = vadd.f32 0.0, %v149
  %151 = vdwg.mxu0
  %v152 = vld [vmem:[%s6] sm:$0xf]
  %v153 = vld [vmem:[%s6 + $0x4] sm:$0xf]
  %v154 = vld [vmem:[%s6 + $0x8] sm:$0xf]
  %v155 = vld [vmem:[%s6 + $0xc] sm:$0xf]
  %v156 = vld [vmem:[%s6 + $0x10] sm:$0xf]
  %v157 = vld [vmem:[%s6 + $0x14] sm:$0xf]
  %v158 = vld [vmem:[%s6 + $0x18] sm:$0xf]
  %v159 = vld [vmem:[%s6 + $0x1c] sm:$0xf]
  %v168 = vunpack.c.l.b16 %v152
  %v169 = vunpack.c.l.b16 %v153
  %v170 = vunpack.c.l.b16 %v154
  %v171 = vunpack.c.l.b16 %v155
  %v172 = vunpack.c.l.b16 %v156
  %v173 = vunpack.c.l.b16 %v157
  %v174 = vunpack.c.l.b16 %v158
  %v175 = vunpack.c.l.b16 %v159
  %v176 = vpack.c.b16 %v169, %v168
  %v177 = vpack.c.b16 %v171, %v170
  %v178 = vpack.c.b16 %v173, %v172
  %v179 = vpack.c.b16 %v175, %v174
  %184 = vmatpush.bf16.msra.mxu0 0
  %185 = vmatpush.bf16.msra.mxu0 0
  %186 = vmatpush.bf16.msra.mxu0 0
  %187 = vmatpush.bf16.msra.mxu0 0
  %188 = vmatpush.bf16.msra.mxu0 %v179
  %189 = vmatpush.bf16.msra.mxu0 %v178
  %190 = vmatpush.bf16.msra.mxu0 %v177
  %191 = vmatpush.bf16.msra.mxu0 %v176
  %192 = vmatmul.bf16.gmra.mxu0 %v136
  %v193 = vpop.f32.mrf.mxu0
  %v194 = vadd.f32 0.0, %v193
  %v195 = vpop.f32.mrf.mxu0
  %v196 = vadd.f32 0.0, %v195
  %197 = vdwg.mxu0
  %v198 = vld [vmem:[%s7] sm:$0xf]
  %v199 = vld [vmem:[%s7 + $0x4] sm:$0xf]
  %v200 = vld [vmem:[%s7 + $0x8] sm:$0xf]
  %v201 = vld [vmem:[%s7 + $0xc] sm:$0xf]
  %v202 = vld [vmem:[%s7 + $0x10] sm:$0xf]
  %v203 = vld [vmem:[%s7 + $0x14] sm:$0xf]
  %v204 = vld [vmem:[%s7 + $0x18] sm:$0xf]
  %v205 = vld [vmem:[%s7 + $0x1c] sm:$0xf]
  %v214 = vunpack.c.l.b16 %v198
  %v215 = vunpack.c.l.b16 %v199
  %v216 = vunpack.c.l.b16 %v200
  %v217 = vunpack.c.l.b16 %v201
  %v218 = vunpack.c.l.b16 %v202
  %v219 = vunpack.c.l.b16 %v203
  %v220 = vunpack.c.l.b16 %v204
  %v221 = vunpack.c.l.b16 %v205
  %v222 = vpack.c.b16 %v215, %v214
  %v223 = vpack.c.b16 %v217, %v216
  %v224 = vpack.c.b16 %v219, %v218
  %v225 = vpack.c.b16 %v221, %v220
  %230 = vmatpush.bf16.msra.mxu0 0
  %231 = vmatpush.bf16.msra.mxu0 0
  %232 = vmatpush.bf16.msra.mxu0 0
  %233 = vmatpush.bf16.msra.mxu0 0
  %234 = vmatpush.bf16.msra.mxu0 %v225
  %235 = vmatpush.bf16.msra.mxu0 %v224
  %236 = vmatpush.bf16.msra.mxu0 %v223
  %237 = vmatpush.bf16.msra.mxu0 %v222
  %238 = vmatmul.bf16.gmra.mxu0 %v136
  %v239 = vpop.f32.mrf.mxu0
  %v240 = vadd.f32 0.0, %v239
  %v241 = vpop.f32.mrf.mxu0
  %v242 = vadd.f32 0.0, %v241
  %243 = vdwg.mxu0
  %v244 = vsub.f32 0.0, %v148
  %v245 = vsub.f32 0.0, %v150
  %248 = vrot.lane.b32.xlu0 %v244, 120
  %v249 = vpop.permute.xlu0 %248
  %250 = vrot.lane.b32.xlu0 %v245, 120
  %v251 = vpop.permute.xlu0 %250
  %256 = vrot.lane.b32.xlu0 %v148, 8
  %v257 = vpop.permute.xlu0 %256
  %258 = vrot.lane.b32.xlu0 %v150, 8
  %v259 = vpop.permute.xlu0 %258
  %vm262 = vcmask 64512
  %v263 = vsel %vm262, %v249, %v257
  %v264 = vsel %vm262, %v251, %v259
  %v265 = vmul.f32 %v148, %v50
  %v266 = vmul.f32 %v150, %v50
  %v267 = vmul.f32 %v263, %v51
  %v268 = vmul.f32 %v264, %v51
  %v269 = vadd.f32 %v265, %v267
  %v270 = vadd.f32 %v266, %v268
  %v271 = vmul.f32 %v269, 0.25
  %v272 = vmul.f32 %v270, 0.25
  %v273 = vsub.f32 0.0, %v194
  %v274 = vsub.f32 0.0, %v196
  %277 = vrot.lane.b32.xlu0 %v273, 120
  %v278 = vpop.permute.xlu0 %277
  %279 = vrot.lane.b32.xlu0 %v274, 120
  %v280 = vpop.permute.xlu0 %279
  %285 = vrot.lane.b32.xlu0 %v194, 8
  %v286 = vpop.permute.xlu0 %285
  %287 = vrot.lane.b32.xlu0 %v196, 8
  %v288 = vpop.permute.xlu0 %287
  %v291 = vsel %vm262, %v278, %v286
  %v292 = vsel %vm262, %v280, %v288
  %v293 = vmul.f32 %v194, %v50
  %v294 = vmul.f32 %v196, %v50
  %v295 = vmul.f32 %v291, %v51
  %v296 = vmul.f32 %v292, %v51
  %v297 = vadd.f32 %v293, %v295
  %v298 = vadd.f32 %v294, %v296
  %v299 = vpack.c.bf16 %v240, %v240
  %v300 = vpack.c.bf16 %v242, %v242
  %v301 = vpack.c.bf16 %v271, %v271
  %v302 = vpack.c.bf16 %v272, %v272
  %v303 = vpack.c.bf16 %v297, %v297
  %v304 = vpack.c.bf16 %v298, %v298
  %vm305 = vcmask 130048
  %v307 = vsel %vm305, %v301, 0
  %v310 = vsel %vm305, %v303, 0
  %312 = vmatpush.bf16.xpose.msra.mxu0 0
  %313 = vmatpush.bf16.xpose.msra.mxu0 0
  %314 = vmatpush.bf16.xpose.msra.mxu0 0
  %315 = vmatpush.bf16.xpose.msra.mxu0 0
  %316 = vmatpush.bf16.xpose.msra.mxu0 0
  %317 = vmatpush.bf16.xpose.msra.mxu0 0
  %318 = vmatpush.bf16.xpose.msra.mxu0 0
  %319 = vmatpush.bf16.xpose.msra.mxu0 %v310
  %320 = vmatmul.bf16.gmra.mxu0 %v307
  %v321 = vpop.f32.mrf.mxu0
  %v322 = vadd.f32 %v52, %v321
  %v323 = vpop.f32.mrf.mxu0
  %324 = vdwg.mxu0
  %v326 = vsel %vm305, %v302, 0
  %v329 = vsel %vm305, %v304, 0
  %331 = vmatpush.bf16.xpose.msra.mxu0 0
  %332 = vmatpush.bf16.xpose.msra.mxu0 0
  %333 = vmatpush.bf16.xpose.msra.mxu0 0
  %334 = vmatpush.bf16.xpose.msra.mxu0 0
  %335 = vmatpush.bf16.xpose.msra.mxu0 0
  %336 = vmatpush.bf16.xpose.msra.mxu0 0
  %337 = vmatpush.bf16.xpose.msra.mxu0 0
  %338 = vmatpush.bf16.xpose.msra.mxu0 %v329
  %339 = vmatmul.bf16.gmra.mxu0 %v326
  %v340 = vpop.f32.mrf.mxu0
  %v341 = vadd.f32 %v53, %v340
  %v342 = vpop.f32.mrf.mxu0
  %343 = vdwg.mxu0
  %v344 = vsel %vm262, %v322, -inf
  %345 = vmax.xlane.f32.xlu0 %v344
  %v346 = vpop.xlane.xlu0 %345
  %v347 = vsel %vm262, %v341, -inf
  %348 = vmax.xlane.f32.xlu0 %v347
  %v349 = vpop.xlane.xlu0 %348
  %v350 = vsub.f32 %v322, %v346
  %v351 = vsub.f32 %v341, %v349
  %v352 = vmul.f32 %v350, 1.442695
  %v353 = vpow.pop %v352
  %v354 = vmul.f32 %v351, 1.442695
  %v355 = vpow.pop %v354
  %v356 = vsel %vm262, %v353, 0.0
  %357 = vadd.xlane.f32.xlu0 %v356
  %v358 = vpop.xlane.xlu0 %357
  %v359 = vsel %vm262, %v355, 0.0
  %360 = vadd.xlane.f32.xlu0 %v359
  %v361 = vpop.xlane.xlu0 %360
  %v362 = vrcp.pop %v358
  %v363 = vrcp.pop %v361
  %v364 = vmul.f32 %v353, %v362
  %v365 = vmul.f32 %v355, %v363
  %v366 = vpack.c.bf16 %v364, %v364
  %v367 = vpack.c.bf16 %v365, %v365
  %v369 = vsel %vm262, %v366, 0
  %vm371 = vcmask 1043456
  %v373 = vsel %vm371, %v299, 0
  %375 = vmatpush.bf16.msra.mxu0 0
  %376 = vmatpush.bf16.msra.mxu0 0
  %377 = vmatpush.bf16.msra.mxu0 0
  %378 = vmatpush.bf16.msra.mxu0 0
  %379 = vmatpush.bf16.msra.mxu0 0
  %380 = vmatpush.bf16.msra.mxu0 0
  %381 = vmatpush.bf16.msra.mxu0 0
  %382 = vmatpush.bf16.msra.mxu0 %v373
  %383 = vmatmul.bf16.gmra.mxu0 %v369
  %v384 = vpop.f32.mrf.mxu0
  %v385 = vadd.f32 0.0, %v384
  %v386 = vpop.f32.mrf.mxu0
  %387 = vdwg.mxu0
  %v389 = vsel %vm262, %v367, 0
  %v392 = vsel %vm371, %v300, 0
  %394 = vmatpush.bf16.msra.mxu0 0
  %395 = vmatpush.bf16.msra.mxu0 0
  %396 = vmatpush.bf16.msra.mxu0 0
  %397 = vmatpush.bf16.msra.mxu0 0
  %398 = vmatpush.bf16.msra.mxu0 0
  %399 = vmatpush.bf16.msra.mxu0 0
  %400 = vmatpush.bf16.msra.mxu0 0
  %401 = vmatpush.bf16.msra.mxu0 %v392
  %402 = vmatmul.bf16.gmra.mxu0 %v389
  %v403 = vpop.f32.mrf.mxu0
  %v404 = vadd.f32 0.0, %v403
  %v405 = vpop.f32.mrf.mxu0
  %406 = vdwg.mxu0
  %407 = vrot.lane.b32.xlu0 %v244, 104
  %v408 = vpop.permute.xlu0 %407
  %409 = vrot.lane.b32.xlu0 %v245, 104
  %v410 = vpop.permute.xlu0 %409
  %413 = vrot.lane.b32.xlu0 %v148, 120
  %v414 = vpop.permute.xlu0 %413
  %415 = vrot.lane.b32.xlu0 %v150, 120
  %v416 = vpop.permute.xlu0 %415
  %v419 = vsel %vm262, %v408, %v414
  %v420 = vsel %vm262, %v410, %v416
  %422 = vrot.lane.b32.xlu0 %v50, 16
  %v423 = vpop.permute.xlu0 %422
  %v425 = vmul.f32 %v148, %v423
  %v426 = vmul.f32 %v150, %v423
  %v427 = vmul.f32 %v419, %v51
  %v428 = vmul.f32 %v420, %v51
  %431 = vrot.lane.b32.xlu0 %v427, 16
  %v432 = vpop.permute.xlu0 %431
  %433 = vrot.lane.b32.xlu0 %v428, 16
  %v434 = vpop.permute.xlu0 %433
  %v437 = vadd.f32 %v425, %v432
  %v438 = vadd.f32 %v426, %v434
  %v439 = vmul.f32 %v437, 0.25
  %v440 = vmul.f32 %v438, 0.25
  %v441 = vpack.c.bf16 %v439, %v439
  %v442 = vpack.c.bf16 %v440, %v440
  %v444 = vunpack.c.l.b16 %v441
  %v445 = vpack.c.b16 %v444, %v444
  %446 = vrot.lane.b32.xlu0 %v445, 112
  %v447 = vpop.permute.xlu0 %446
  %v449 = vsel %vm305, %v447, 0
  %451 = vmatpush.bf16.xpose.msra.mxu0 0
  %452 = vmatpush.bf16.xpose.msra.mxu0 0
  %453 = vmatpush.bf16.xpose.msra.mxu0 0
  %454 = vmatpush.bf16.xpose.msra.mxu0 0
  %455 = vmatpush.bf16.xpose.msra.mxu0 0
  %456 = vmatpush.bf16.xpose.msra.mxu0 0
  %457 = vmatpush.bf16.xpose.msra.mxu0 0
  %458 = vmatpush.bf16.xpose.msra.mxu0 %v310
  %459 = vmatmul.bf16.gmra.mxu0 %v449
  %v460 = vpop.f32.mrf.mxu0
  %v461 = vadd.f32 %v52, %v460
  %v462 = vpop.f32.mrf.mxu0
  %463 = vdwg.mxu0
  %v465 = vunpack.c.l.b16 %v442
  %v466 = vpack.c.b16 %v465, %v465
  %467 = vrot.lane.b32.xlu0 %v466, 112
  %v468 = vpop.permute.xlu0 %467
  %v470 = vsel %vm305, %v468, 0
  %472 = vmatpush.bf16.xpose.msra.mxu0 0
  %473 = vmatpush.bf16.xpose.msra.mxu0 0
  %474 = vmatpush.bf16.xpose.msra.mxu0 0
  %475 = vmatpush.bf16.xpose.msra.mxu0 0
  %476 = vmatpush.bf16.xpose.msra.mxu0 0
  %477 = vmatpush.bf16.xpose.msra.mxu0 0
  %478 = vmatpush.bf16.xpose.msra.mxu0 0
  %479 = vmatpush.bf16.xpose.msra.mxu0 %v329
  %480 = vmatmul.bf16.gmra.mxu0 %v470
  %v481 = vpop.f32.mrf.mxu0
  %v482 = vadd.f32 %v53, %v481
  %v483 = vpop.f32.mrf.mxu0
  %484 = vdwg.mxu0
  %v485 = vsel %vm262, %v461, -inf
  %486 = vmax.xlane.f32.xlu0 %v485
  %v487 = vpop.xlane.xlu0 %486
  %v488 = vsel %vm262, %v482, -inf
  %489 = vmax.xlane.f32.xlu0 %v488
  %v490 = vpop.xlane.xlu0 %489
  %v491 = vsub.f32 %v461, %v487
  %v492 = vsub.f32 %v482, %v490
  %v493 = vmul.f32 %v491, 1.442695
  %v494 = vpow.pop %v493
  %v495 = vmul.f32 %v492, 1.442695
  %v496 = vpow.pop %v495
  %v497 = vsel %vm262, %v494, 0.0
  %498 = vadd.xlane.f32.xlu0 %v497
  %v499 = vpop.xlane.xlu0 %498
  %v500 = vsel %vm262, %v496, 0.0
  %501 = vadd.xlane.f32.xlu0 %v500
  %v502 = vpop.xlane.xlu0 %501
  %v503 = vrcp.pop %v499
  %v504 = vrcp.pop %v502
  %v505 = vmul.f32 %v494, %v503
  %v506 = vmul.f32 %v496, %v504
  %v507 = vpack.c.bf16 %v505, %v505
  %v508 = vpack.c.bf16 %v506, %v506
  %v510 = vsel %vm262, %v507, 0
  %512 = vmatpush.bf16.msra.mxu0 0
  %513 = vmatpush.bf16.msra.mxu0 0
  %514 = vmatpush.bf16.msra.mxu0 0
  %515 = vmatpush.bf16.msra.mxu0 0
  %516 = vmatpush.bf16.msra.mxu0 0
  %517 = vmatpush.bf16.msra.mxu0 0
  %518 = vmatpush.bf16.msra.mxu0 0
  %519 = vmatpush.bf16.msra.mxu0 %v373
  %520 = vmatmul.bf16.gmra.mxu0 %v510
  %v521 = vpop.f32.mrf.mxu0
  %v522 = vadd.f32 0.0, %v521
  %v523 = vpop.f32.mrf.mxu0
  %524 = vdwg.mxu0
  %v526 = vsel %vm262, %v508, 0
  %528 = vmatpush.bf16.msra.mxu0 0
  %529 = vmatpush.bf16.msra.mxu0 0
  %530 = vmatpush.bf16.msra.mxu0 0
  %531 = vmatpush.bf16.msra.mxu0 0
  %532 = vmatpush.bf16.msra.mxu0 0
  %533 = vmatpush.bf16.msra.mxu0 0
  %534 = vmatpush.bf16.msra.mxu0 0
  %535 = vmatpush.bf16.msra.mxu0 %v392
  %536 = vmatmul.bf16.gmra.mxu0 %v526
  %v537 = vpop.f32.mrf.mxu0
  %v538 = vadd.f32 0.0, %v537
  %v539 = vpop.f32.mrf.mxu0
  %540 = vdwg.mxu0
  %541 = vrot.lane.b32.xlu0 %v244, 88
  %v542 = vpop.permute.xlu0 %541
  %543 = vrot.lane.b32.xlu0 %v245, 88
  %v544 = vpop.permute.xlu0 %543
  %547 = vrot.lane.b32.xlu0 %v148, 104
  %v548 = vpop.permute.xlu0 %547
  %549 = vrot.lane.b32.xlu0 %v150, 104
  %v550 = vpop.permute.xlu0 %549
  %v553 = vsel %vm262, %v542, %v548
  %v554 = vsel %vm262, %v544, %v550
  %555 = vrot.lane.b32.xlu0 %v50, 32
  %v556 = vpop.permute.xlu0 %555
  %v558 = vmul.f32 %v148, %v556
  %v559 = vmul.f32 %v150, %v556
  %v560 = vmul.f32 %v553, %v51
  %v561 = vmul.f32 %v554, %v51
  %564 = vrot.lane.b32.xlu0 %v560, 32
  %v565 = vpop.permute.xlu0 %564
  %566 = vrot.lane.b32.xlu0 %v561, 32
  %v567 = vpop.permute.xlu0 %566
  %v570 = vadd.f32 %v558, %v565
  %v571 = vadd.f32 %v559, %v567
  %v572 = vmul.f32 %v570, 0.25
  %v573 = vmul.f32 %v571, 0.25
  %574 = vrot.lane.b32.xlu0 %v273, 104
  %v575 = vpop.permute.xlu0 %574
  %576 = vrot.lane.b32.xlu0 %v274, 104
  %v577 = vpop.permute.xlu0 %576
  %580 = vrot.lane.b32.xlu0 %v194, 120
  %v581 = vpop.permute.xlu0 %580
  %582 = vrot.lane.b32.xlu0 %v196, 120
  %v583 = vpop.permute.xlu0 %582
  %v586 = vsel %vm262, %v575, %v581
  %v587 = vsel %vm262, %v577, %v583
  %v588 = vmul.f32 %v194, %v423
  %v589 = vmul.f32 %v196, %v423
  %v590 = vmul.f32 %v586, %v51
  %v591 = vmul.f32 %v587, %v51
  %594 = vrot.lane.b32.xlu0 %v590, 16
  %v595 = vpop.permute.xlu0 %594
  %596 = vrot.lane.b32.xlu0 %v591, 16
  %v597 = vpop.permute.xlu0 %596
  %v600 = vadd.f32 %v588, %v595
  %v601 = vadd.f32 %v589, %v597
  %v602 = vpack.c.bf16 %v572, %v572
  %v603 = vpack.c.bf16 %v573, %v573
  %v604 = vpack.c.bf16 %v600, %v600
  %v605 = vpack.c.bf16 %v601, %v601
  %v607 = vunpack.c.l.b16 %v602
  %v608 = vpack.c.b16 %v607, %v607
  %609 = vrot.lane.b32.xlu0 %v608, 96
  %v610 = vpop.permute.xlu0 %609
  %v612 = vunpack.c.l.b16 %v604
  %v613 = vpack.c.b16 %v612, %v612
  %614 = vrot.lane.b32.xlu0 %v613, 112
  %v615 = vpop.permute.xlu0 %614
  %v617 = vsel %vm305, %v610, 0
  %v620 = vsel %vm305, %v615, 0
  %622 = vmatpush.bf16.xpose.msra.mxu0 0
  %623 = vmatpush.bf16.xpose.msra.mxu0 0
  %624 = vmatpush.bf16.xpose.msra.mxu0 0
  %625 = vmatpush.bf16.xpose.msra.mxu0 0
  %626 = vmatpush.bf16.xpose.msra.mxu0 0
  %627 = vmatpush.bf16.xpose.msra.mxu0 0
  %628 = vmatpush.bf16.xpose.msra.mxu0 0
  %629 = vmatpush.bf16.xpose.msra.mxu0 %v620
  %630 = vmatmul.bf16.gmra.mxu0 %v617
  %v631 = vpop.f32.mrf.mxu0
  %v632 = vadd.f32 %v52, %v631
  %v633 = vpop.f32.mrf.mxu0
  %634 = vdwg.mxu0
  %v636 = vunpack.c.l.b16 %v603
  %v637 = vpack.c.b16 %v636, %v636
  %638 = vrot.lane.b32.xlu0 %v637, 96
  %v639 = vpop.permute.xlu0 %638
  %v641 = vunpack.c.l.b16 %v605
  %v642 = vpack.c.b16 %v641, %v641
  %643 = vrot.lane.b32.xlu0 %v642, 112
  %v644 = vpop.permute.xlu0 %643
  %v646 = vsel %vm305, %v639, 0
  %v649 = vsel %vm305, %v644, 0
  %651 = vmatpush.bf16.xpose.msra.mxu0 0
  %652 = vmatpush.bf16.xpose.msra.mxu0 0
  %653 = vmatpush.bf16.xpose.msra.mxu0 0
  %654 = vmatpush.bf16.xpose.msra.mxu0 0
  %655 = vmatpush.bf16.xpose.msra.mxu0 0
  %656 = vmatpush.bf16.xpose.msra.mxu0 0
  %657 = vmatpush.bf16.xpose.msra.mxu0 0
  %658 = vmatpush.bf16.xpose.msra.mxu0 %v649
  %659 = vmatmul.bf16.gmra.mxu0 %v646
  %v660 = vpop.f32.mrf.mxu0
  %v661 = vadd.f32 %v53, %v660
  %v662 = vpop.f32.mrf.mxu0
  %663 = vdwg.mxu0
  %v664 = vsel %vm262, %v632, -inf
  %665 = vmax.xlane.f32.xlu0 %v664
  %v666 = vpop.xlane.xlu0 %665
  %v667 = vsel %vm262, %v661, -inf
  %668 = vmax.xlane.f32.xlu0 %v667
  %v669 = vpop.xlane.xlu0 %668
  %v670 = vsub.f32 %v632, %v666
  %v671 = vsub.f32 %v661, %v669
  %v672 = vmul.f32 %v670, 1.442695
  %v673 = vpow.pop %v672
  %v674 = vmul.f32 %v671, 1.442695
  %v675 = vpow.pop %v674
  %v676 = vsel %vm262, %v673, 0.0
  %677 = vadd.xlane.f32.xlu0 %v676
  %v678 = vpop.xlane.xlu0 %677
  %v679 = vsel %vm262, %v675, 0.0
  %680 = vadd.xlane.f32.xlu0 %v679
  %v681 = vpop.xlane.xlu0 %680
  %v682 = vrcp.pop %v678
  %v683 = vrcp.pop %v681
  %v684 = vmul.f32 %v673, %v682
  %v685 = vmul.f32 %v675, %v683
  %v686 = vpack.c.bf16 %v684, %v684
  %v687 = vpack.c.bf16 %v685, %v685
  %v689 = vunpack.c.l.b16 %v299
  %v690 = vpack.c.b16 %v689, %v689
  %691 = vrot.lane.b32.xlu0 %v690, 112
  %v692 = vpop.permute.xlu0 %691
  %v694 = vsel %vm262, %v686, 0
  %v697 = vsel %vm371, %v692, 0
  %699 = vmatpush.bf16.msra.mxu0 0
  %700 = vmatpush.bf16.msra.mxu0 0
  %701 = vmatpush.bf16.msra.mxu0 0
  %702 = vmatpush.bf16.msra.mxu0 0
  %703 = vmatpush.bf16.msra.mxu0 0
  %704 = vmatpush.bf16.msra.mxu0 0
  %705 = vmatpush.bf16.msra.mxu0 0
  %706 = vmatpush.bf16.msra.mxu0 %v697
  %707 = vmatmul.bf16.gmra.mxu0 %v694
  %v708 = vpop.f32.mrf.mxu0
  %v709 = vadd.f32 0.0, %v708
  %v710 = vpop.f32.mrf.mxu0
  %711 = vdwg.mxu0
  %v713 = vunpack.c.l.b16 %v300
  %v714 = vpack.c.b16 %v713, %v713
  %715 = vrot.lane.b32.xlu0 %v714, 112
  %v716 = vpop.permute.xlu0 %715
  %v718 = vsel %vm262, %v687, 0
  %v721 = vsel %vm371, %v716, 0
  %723 = vmatpush.bf16.msra.mxu0 0
  %724 = vmatpush.bf16.msra.mxu0 0
  %725 = vmatpush.bf16.msra.mxu0 0
  %726 = vmatpush.bf16.msra.mxu0 0
  %727 = vmatpush.bf16.msra.mxu0 0
  %728 = vmatpush.bf16.msra.mxu0 0
  %729 = vmatpush.bf16.msra.mxu0 0
  %730 = vmatpush.bf16.msra.mxu0 %v721
  %731 = vmatmul.bf16.gmra.mxu0 %v718
  %v732 = vpop.f32.mrf.mxu0
  %v733 = vadd.f32 0.0, %v732
  %v734 = vpop.f32.mrf.mxu0
  %735 = vdwg.mxu0
  %736 = vrot.lane.b32.xlu0 %v244, 72
  %v737 = vpop.permute.xlu0 %736
  %738 = vrot.lane.b32.xlu0 %v245, 72
  %v739 = vpop.permute.xlu0 %738
  %742 = vrot.lane.b32.xlu0 %v148, 88
  %v743 = vpop.permute.xlu0 %742
  %744 = vrot.lane.b32.xlu0 %v150, 88
  %v745 = vpop.permute.xlu0 %744
  %v748 = vsel %vm262, %v737, %v743
  %v749 = vsel %vm262, %v739, %v745
  %750 = vrot.lane.b32.xlu0 %v50, 48
  %v751 = vpop.permute.xlu0 %750
  %v753 = vmul.f32 %v148, %v751
  %v754 = vmul.f32 %v150, %v751
  %v755 = vmul.f32 %v748, %v51
  %v756 = vmul.f32 %v749, %v51
  %759 = vrot.lane.b32.xlu0 %v755, 48
  %v760 = vpop.permute.xlu0 %759
  %761 = vrot.lane.b32.xlu0 %v756, 48
  %v762 = vpop.permute.xlu0 %761
  %v765 = vadd.f32 %v753, %v760
  %v766 = vadd.f32 %v754, %v762
  %v767 = vmul.f32 %v765, 0.25
  %v768 = vmul.f32 %v766, 0.25
  %v769 = vpack.c.bf16 %v767, %v767
  %v770 = vpack.c.bf16 %v768, %v768
  %v772 = vunpack.c.l.b16 %v769
  %v773 = vpack.c.b16 %v772, %v772
  %774 = vrot.lane.b32.xlu0 %v773, 80
  %v775 = vpop.permute.xlu0 %774
  %v777 = vsel %vm305, %v775, 0
  %779 = vmatpush.bf16.xpose.msra.mxu0 0
  %780 = vmatpush.bf16.xpose.msra.mxu0 0
  %781 = vmatpush.bf16.xpose.msra.mxu0 0
  %782 = vmatpush.bf16.xpose.msra.mxu0 0
  %783 = vmatpush.bf16.xpose.msra.mxu0 0
  %784 = vmatpush.bf16.xpose.msra.mxu0 0
  %785 = vmatpush.bf16.xpose.msra.mxu0 0
  %786 = vmatpush.bf16.xpose.msra.mxu0 %v620
  %787 = vmatmul.bf16.gmra.mxu0 %v777
  %v788 = vpop.f32.mrf.mxu0
  %v789 = vadd.f32 %v52, %v788
  %v790 = vpop.f32.mrf.mxu0
  %791 = vdwg.mxu0
  %v793 = vunpack.c.l.b16 %v770
  %v794 = vpack.c.b16 %v793, %v793
  %795 = vrot.lane.b32.xlu0 %v794, 80
  %v796 = vpop.permute.xlu0 %795
  %v798 = vsel %vm305, %v796, 0
  %800 = vmatpush.bf16.xpose.msra.mxu0 0
  %801 = vmatpush.bf16.xpose.msra.mxu0 0
  %802 = vmatpush.bf16.xpose.msra.mxu0 0
  %803 = vmatpush.bf16.xpose.msra.mxu0 0
  %804 = vmatpush.bf16.xpose.msra.mxu0 0
  %805 = vmatpush.bf16.xpose.msra.mxu0 0
  %806 = vmatpush.bf16.xpose.msra.mxu0 0
  %807 = vmatpush.bf16.xpose.msra.mxu0 %v649
  %808 = vmatmul.bf16.gmra.mxu0 %v798
  %v809 = vpop.f32.mrf.mxu0
  %v810 = vadd.f32 %v53, %v809
  %v811 = vpop.f32.mrf.mxu0
  %812 = vdwg.mxu0
  %v813 = vsel %vm262, %v789, -inf
  %814 = vmax.xlane.f32.xlu0 %v813
  %v815 = vpop.xlane.xlu0 %814
  %v816 = vsel %vm262, %v810, -inf
  %817 = vmax.xlane.f32.xlu0 %v816
  %v818 = vpop.xlane.xlu0 %817
  %v819 = vsub.f32 %v789, %v815
  %v820 = vsub.f32 %v810, %v818
  %v821 = vmul.f32 %v819, 1.442695
  %v822 = vpow.pop %v821
  %v823 = vmul.f32 %v820, 1.442695
  %v824 = vpow.pop %v823
  %v825 = vsel %vm262, %v822, 0.0
  %826 = vadd.xlane.f32.xlu0 %v825
  %v827 = vpop.xlane.xlu0 %826
  %v828 = vsel %vm262, %v824, 0.0
  %829 = vadd.xlane.f32.xlu0 %v828
  %v830 = vpop.xlane.xlu0 %829
  %v831 = vrcp.pop %v827
  %v832 = vrcp.pop %v830
  %v833 = vmul.f32 %v822, %v831
  %v834 = vmul.f32 %v824, %v832
  %v835 = vpack.c.bf16 %v833, %v833
  %v836 = vpack.c.bf16 %v834, %v834
  %v838 = vsel %vm262, %v835, 0
  %840 = vmatpush.bf16.msra.mxu0 0
  %841 = vmatpush.bf16.msra.mxu0 0
  %842 = vmatpush.bf16.msra.mxu0 0
  %843 = vmatpush.bf16.msra.mxu0 0
  %844 = vmatpush.bf16.msra.mxu0 0
  %845 = vmatpush.bf16.msra.mxu0 0
  %846 = vmatpush.bf16.msra.mxu0 0
  %847 = vmatpush.bf16.msra.mxu0 %v697
  %848 = vmatmul.bf16.gmra.mxu0 %v838
  %v849 = vpop.f32.mrf.mxu0
  %v850 = vadd.f32 0.0, %v849
  %v851 = vpop.f32.mrf.mxu0
  %852 = vdwg.mxu0
  %v854 = vsel %vm262, %v836, 0
  %856 = vmatpush.bf16.msra.mxu0 0
  %857 = vmatpush.bf16.msra.mxu0 0
  %858 = vmatpush.bf16.msra.mxu0 0
  %859 = vmatpush.bf16.msra.mxu0 0
  %860 = vmatpush.bf16.msra.mxu0 0
  %861 = vmatpush.bf16.msra.mxu0 0
  %862 = vmatpush.bf16.msra.mxu0 0
  %863 = vmatpush.bf16.msra.mxu0 %v721
  %864 = vmatmul.bf16.gmra.mxu0 %v854
  %v865 = vpop.f32.mrf.mxu0
  %v866 = vadd.f32 0.0, %v865
  %v867 = vpop.f32.mrf.mxu0
  %868 = vdwg.mxu0
  %871 = vrot.lane.b32.xlu0 %v522, 16
  %v872 = vpop.permute.xlu0 %871
  %873 = vrot.lane.b32.xlu0 %v538, 16
  %v874 = vpop.permute.xlu0 %873
  %879 = vrot.lane.b32.xlu0 %v709, 32
  %v880 = vpop.permute.xlu0 %879
  %881 = vrot.lane.b32.xlu0 %v733, 32
  %v882 = vpop.permute.xlu0 %881
  %887 = vrot.lane.b32.xlu0 %v850, 48
  %v888 = vpop.permute.xlu0 %887
  %889 = vrot.lane.b32.xlu0 %v866, 48
  %v890 = vpop.permute.xlu0 %889
  %v893 = vsel %vm305, %v385, %v872
  %v894 = vsel %vm305, %v404, %v874
  %vm895 = vcmask 261120
  %v896 = vsel %vm895, %v893, %v880
  %v897 = vsel %vm895, %v894, %v882
  %vm898 = vcmask 392192
  %v899 = vsel %vm898, %v896, %v888
  %v900 = vsel %vm898, %v897, %v890
  %v901 = vpack.c.bf16 %v900, %v899
  %v902 = vld [vmem:[%s8] sm:$0xf]
  %v903 = vld [vmem:[%s8 + $0x4] sm:$0xf]
  %v904 = vld [vmem:[%s8 + $0x8] sm:$0xf]
  %v905 = vld [vmem:[%s8 + $0xc] sm:$0xf]
  %v906 = vld [vmem:[%s8 + $0x10] sm:$0xf]
  %v907 = vld [vmem:[%s8 + $0x14] sm:$0xf]
  %v908 = vld [vmem:[%s8 + $0x18] sm:$0xf]
  %v909 = vld [vmem:[%s8 + $0x1c] sm:$0xf]
  %v918 = vunpack.c.l.b16 %v902
  %v919 = vunpack.c.l.b16 %v903
  %v920 = vunpack.c.l.b16 %v904
  %v921 = vunpack.c.l.b16 %v905
  %v922 = vunpack.c.l.b16 %v906
  %v923 = vunpack.c.l.b16 %v907
  %v924 = vunpack.c.l.b16 %v908
  %v925 = vunpack.c.l.b16 %v909
  %v926 = vpack.c.b16 %v919, %v918
  %v927 = vpack.c.b16 %v921, %v920
  %v928 = vpack.c.b16 %v923, %v922
  %v929 = vpack.c.b16 %v925, %v924
  %v935 = vsel %vm57, %v901, 0
  %937 = vmatpush.bf16.msra.mxu0 0
  %938 = vmatpush.bf16.msra.mxu0 0
  %939 = vmatpush.bf16.msra.mxu0 0
  %940 = vmatpush.bf16.msra.mxu0 0
  %941 = vmatpush.bf16.msra.mxu0 %v929
  %942 = vmatpush.bf16.msra.mxu0 %v928
  %943 = vmatpush.bf16.msra.mxu0 %v927
  %944 = vmatpush.bf16.msra.mxu0 %v926
  %945 = vmatmul.bf16.gmra.mxu0 %v935
  %v946 = vpop.f32.mrf.mxu0
  %v947 = vadd.f32 0.0, %v946
  %v948 = vpop.f32.mrf.mxu0
  %v949 = vadd.f32 0.0, %v948
  %950 = vdwg.mxu0
  %v951 = vadd.f32 %v48, %v947
  %v952 = vadd.f32 %v49, %v949
  %v953 = vld [vmem:[%s9] sm:$0x1]
  %v954 = vmul.f32 %v951, %v951
  %v955 = vmul.f32 %v952, %v952
  %v956 = vsel %vm57, %v954, 0.0
  %957 = vadd.xlane.f32.xlu0 %v956
  %v958 = vpop.xlane.xlu0 %957
  %v959 = vsel %vm57, %v955, 0.0
  %960 = vadd.xlane.f32.xlu0 %v959
  %v961 = vpop.xlane.xlu0 %960
  %v962 = vmul.f32 %v958, %v70
  %v963 = vmul.f32 %v961, %v70
  %v964 = vadd.f32 %v962, 1e-05
  %v965 = vadd.f32 %v963, 1e-05
  %v966 = vrsqrt.pop %v964
  %v967 = vmul.f32 %v966, %v964
  %v968 = vmul.f32 %v967, %v966
  %v969 = vmul.f32 0.5, %v968
  %v970 = vsub.f32 1.5, %v969
  %v971 = vmul.f32 %v966, %v970
  %vm972 = vweird.f32 %v964
  %vm973 = vweird.f32 %v966
  %vm974 = vmor %vm972, %vm973
  %v975 = vsel %vm974, %v966, %v971
  %v976 = vrsqrt.pop %v965
  %v977 = vmul.f32 %v976, %v965
  %v978 = vmul.f32 %v977, %v976
  %v979 = vmul.f32 0.5, %v978
  %v980 = vsub.f32 1.5, %v979
  %v981 = vmul.f32 %v976, %v980
  %vm982 = vweird.f32 %v965
  %vm983 = vweird.f32 %v976
  %vm984 = vmor %vm982, %vm983
  %v985 = vsel %vm984, %v976, %v981
  %v986 = vmul.f32 %v951, %v975
  %v987 = vmul.f32 %v952, %v985
  %v989 = vperm.slane %v953, 0
  %v991 = vmul.f32 %v986, %v989
  %v992 = vmul.f32 %v987, %v989
  %v993 = vpack.c.bf16 %v992, %v991
  %v994 = vld [vmem:[%s10] sm:$0xf]
  %v995 = vld [vmem:[%s10 + $0x4] sm:$0xf]
  %v996 = vld [vmem:[%s10 + $0x8] sm:$0xf]
  %v997 = vld [vmem:[%s10 + $0xc] sm:$0xf]
  %v998 = vld [vmem:[%s10 + $0x10] sm:$0xf]
  %v999 = vld [vmem:[%s10 + $0x14] sm:$0xf]
  %v1000 = vld [vmem:[%s10 + $0x18] sm:$0xf]
  %v1001 = vld [vmem:[%s10 + $0x1c] sm:$0xf]
  %v1010 = vunpack.c.l.b16 %v994
  %v1011 = vunpack.c.l.b16 %v995
  %v1012 = vunpack.c.l.b16 %v996
  %v1013 = vunpack.c.l.b16 %v997
  %v1014 = vunpack.c.l.b16 %v998
  %v1015 = vunpack.c.l.b16 %v999
  %v1016 = vunpack.c.l.b16 %v1000
  %v1017 = vunpack.c.l.b16 %v1001
  %v1018 = vpack.c.b16 %v1011, %v1010
  %v1019 = vpack.c.b16 %v1013, %v1012
  %v1020 = vpack.c.b16 %v1015, %v1014
  %v1021 = vpack.c.b16 %v1017, %v1016
  %v1027 = vsel %vm57, %v993, 0
  %1029 = vmatpush.bf16.msra.mxu0 0
  %1030 = vmatpush.bf16.msra.mxu0 0
  %1031 = vmatpush.bf16.msra.mxu0 0
  %1032 = vmatpush.bf16.msra.mxu0 0
  %1033 = vmatpush.bf16.msra.mxu0 %v1021
  %1034 = vmatpush.bf16.msra.mxu0 %v1020
  %1035 = vmatpush.bf16.msra.mxu0 %v1019
  %1036 = vmatpush.bf16.msra.mxu0 %v1018
  %1037 = vmatmul.bf16.gmra.mxu0 %v1027
  %v1038 = vpop.f32.mrf.mxu0
  %v1039 = vadd.f32 0.0, %v1038
  %v1040 = vpop.f32.mrf.mxu0
  %v1041 = vadd.f32 0.0, %v1040
  %1042 = vdwg.mxu0
  %v1043 = vld [vmem:[%s11] sm:$0xf]
  %v1044 = vld [vmem:[%s11 + $0x4] sm:$0xf]
  %v1045 = vld [vmem:[%s11 + $0x8] sm:$0xf]
  %v1046 = vld [vmem:[%s11 + $0xc] sm:$0xf]
  %v1047 = vld [vmem:[%s11 + $0x10] sm:$0xf]
  %v1048 = vld [vmem:[%s11 + $0x14] sm:$0xf]
  %v1049 = vld [vmem:[%s11 + $0x18] sm:$0xf]
  %v1050 = vld [vmem:[%s11 + $0x1c] sm:$0xf]
  %v1059 = vunpack.c.l.b16 %v1043
  %v1060 = vunpack.c.l.b16 %v1044
  %v1061 = vunpack.c.l.b16 %v1045
  %v1062 = vunpack.c.l.b16 %v1046
  %v1063 = vunpack.c.l.b16 %v1047
  %v1064 = vunpack.c.l.b16 %v1048
  %v1065 = vunpack.c.l.b16 %v1049
  %v1066 = vunpack.c.l.b16 %v1050
  %v1067 = vpack.c.b16 %v1060, %v1059
  %v1068 = vpack.c.b16 %v1062, %v1061
  %v1069 = vpack.c.b16 %v1064, %v1063
  %v1070 = vpack.c.b16 %v1066, %v1065
  %1075 = vmatpush.bf16.msra.mxu0 0
  %1076 = vmatpush.bf16.msra.mxu0 0
  %1077 = vmatpush.bf16.msra.mxu0 0
  %1078 = vmatpush.bf16.msra.mxu0 0
  %1079 = vmatpush.bf16.msra.mxu0 %v1070
  %1080 = vmatpush.bf16.msra.mxu0 %v1069
  %1081 = vmatpush.bf16.msra.mxu0 %v1068
  %1082 = vmatpush.bf16.msra.mxu0 %v1067
  %1083 = vmatmul.bf16.gmra.mxu0 %v1027
  %v1084 = vpop.f32.mrf.mxu0
  %v1085 = vadd.f32 0.0, %v1084
  %v1086 = vpop.f32.mrf.mxu0
  %v1087 = vadd.f32 0.0, %v1086
  %1088 = vdwg.mxu0
  %v1089 = vxor.u32 %v1039, 2147483648
  %v1090 = vxor.u32 %v1041, 2147483648
  %v1091 = vmul.f32 %v1089, 1.442695
  %v1092 = vpow.pop %v1091
  %v1093 = vmul.f32 %v1090, 1.442695
  %v1094 = vpow.pop %v1093
  %v1095 = vadd.f32 %v1092, 1.0
  %v1096 = vadd.f32 %v1094, 1.0
  %v1097 = vrcp.pop %v1095
  %v1098 = vmul.f32 %v1095, %v1097
  %v1099 = vsub.f32 1.0, %v1098
  %v1100 = vmul.f32 %v1097, %v1099
  %v1101 = vadd.f32 %v1097, %v1100
  %vm1102 = vweird.f32 %v1095
  %vm1103 = vweird.f32 %v1097
  %vm1104 = vmor %vm1102, %vm1103
  %v1105 = vsel %vm1104, %v1097, %v1101
  %v1106 = vand.u32 2147483647, %v1095
  %vm1107 = vcmp.eq.f32.partialorder %v1106, 8.507059e+37
  %v1108 = vand.u32 %v1095, 2147483648
  %v1109 = vor.u32 1.1754944e-38, %v1108
  %v1110 = vsel %vm1107, %v1109, %v1105
  %v1111 = vmul.f32 1.0, %v1110
  %v1112 = vrcp.pop %v1096
  %v1113 = vmul.f32 %v1096, %v1112
  %v1114 = vsub.f32 1.0, %v1113
  %v1115 = vmul.f32 %v1112, %v1114
  %v1116 = vadd.f32 %v1112, %v1115
  %vm1117 = vweird.f32 %v1096
  %vm1118 = vweird.f32 %v1112
  %vm1119 = vmor %vm1117, %vm1118
  %v1120 = vsel %vm1119, %v1112, %v1116
  %v1121 = vand.u32 2147483647, %v1096
  %vm1122 = vcmp.eq.f32.partialorder %v1121, 8.507059e+37
  %v1123 = vand.u32 %v1096, 2147483648
  %v1124 = vor.u32 1.1754944e-38, %v1123
  %v1125 = vsel %vm1122, %v1124, %v1120
  %v1126 = vmul.f32 1.0, %v1125
  %v1127 = vmul.f32 %v1039, %v1111
  %v1128 = vmul.f32 %v1041, %v1126
  %v1129 = vmul.f32 %v1127, %v1085
  %v1130 = vmul.f32 %v1128, %v1087
  %v1131 = vpack.c.bf16 %v1130, %v1129
  %v1132 = vld [vmem:[%s12] sm:$0xf]
  %v1133 = vld [vmem:[%s12 + $0x4] sm:$0xf]
  %v1134 = vld [vmem:[%s12 + $0x8] sm:$0xf]
  %v1135 = vld [vmem:[%s12 + $0xc] sm:$0xf]
  %v1136 = vld [vmem:[%s12 + $0x10] sm:$0xf]
  %v1137 = vld [vmem:[%s12 + $0x14] sm:$0xf]
  %v1138 = vld [vmem:[%s12 + $0x18] sm:$0xf]
  %v1139 = vld [vmem:[%s12 + $0x1c] sm:$0xf]
  %v1140 = vld [vmem:[%s12 + $0x20] sm:$0xf]
  %v1141 = vld [vmem:[%s12 + $0x24] sm:$0xf]
  %v1142 = vld [vmem:[%s12 + $0x28] sm:$0xf]
  %v1143 = vld [vmem:[%s12 + $0x2c] sm:$0xf]
  %v1144 = vld [vmem:[%s12 + $0x30] sm:$0xf]
  %v1145 = vld [vmem:[%s12 + $0x34] sm:$0xf]
  %v1146 = vld [vmem:[%s12 + $0x38] sm:$0xf]
  %v1147 = vld [vmem:[%s12 + $0x3c] sm:$0xf]
  %v1164 = vunpack.c.l.b16 %v1132
  %v1165 = vunpack.c.l.b16 %v1133
  %v1166 = vunpack.c.l.b16 %v1134
  %v1167 = vunpack.c.l.b16 %v1135
  %v1168 = vunpack.c.l.b16 %v1136
  %v1169 = vunpack.c.l.b16 %v1137
  %v1170 = vunpack.c.l.b16 %v1138
  %v1171 = vunpack.c.l.b16 %v1139
  %v1172 = vunpack.c.l.b16 %v1140
  %v1173 = vunpack.c.l.b16 %v1141
  %v1174 = vunpack.c.l.b16 %v1142
  %v1175 = vunpack.c.l.b16 %v1143
  %v1176 = vunpack.c.l.b16 %v1144
  %v1177 = vunpack.c.l.b16 %v1145
  %v1178 = vunpack.c.l.b16 %v1146
  %v1179 = vunpack.c.l.b16 %v1147
  %v1180 = vpack.c.b16 %v1165, %v1164
  %v1181 = vpack.c.b16 %v1167, %v1166
  %v1182 = vpack.c.b16 %v1169, %v1168
  %v1183 = vpack.c.b16 %v1171, %v1170
  %v1184 = vpack.c.b16 %v1173, %v1172
  %v1185 = vpack.c.b16 %v1175, %v1174
  %v1186 = vpack.c.b16 %v1177, %v1176
  %v1187 = vpack.c.b16 %v1179, %v1178
  %1196 = vmatpush.bf16.msra.mxu0 %v1187
  %1197 = vmatpush.bf16.msra.mxu0 %v1186
  %1198 = vmatpush.bf16.msra.mxu0 %v1185
  %1199 = vmatpush.bf16.msra.mxu0 %v1184
  %1200 = vmatpush.bf16.msra.mxu0 %v1183
  %1201 = vmatpush.bf16.msra.mxu0 %v1182
  %1202 = vmatpush.bf16.msra.mxu0 %v1181
  %1203 = vmatpush.bf16.msra.mxu0 %v1180
  %1204 = vmatmul.bf16.gmra.mxu0 %v1131
  %v1205 = vpop.f32.mrf.mxu0
  %v1206 = vadd.f32 0.0, %v1205
  %v1207 = vpop.f32.mrf.mxu0
  %v1208 = vadd.f32 0.0, %v1207
  %1209 = vdwg.mxu0
  %v1210 = vadd.f32 %v951, %v1206
  %v1211 = vadd.f32 %v952, %v1208
  %1212 = vst.msk [vmem:[%s14] sm:$0xff] %vm57, %v1210
  %1213 = vst.msk [vmem:[%s14 + $0x8] sm:$0xff] %vm57, %v1211
  // Predicated region
  $region58: #{vlm_forward.10} parent=0 // pred_check
    _
  $region59: #{vlm_forward.10} parent=0 // pred_check_branch
    %1215 = sbr.rel (0) target = $region61
  $region60: #{vlm_forward.10} parent=0 // pred_region
    _
  $region61: #{vlm_forward.10} parent=0 // pred_fallthru
    _
  // Predicated region
  $region62: #{vlm_forward.10} parent=0 // pred_check
    _
  $region63: #{vlm_forward.10} parent=0 // pred_check_branch
    %1217 = sbr.rel (0) target = $region65
  $region64: #{vlm_forward.10} parent=0 // pred_region
    _
  $region65: #{vlm_forward.10} parent=0 // pred_fallthru
    _

// kernel: vlm_forward.11
$region0: #{vlm_forward.11}
  #allocation0 [shape = 'u32[]', space=smem, size = 0x4, offset = 0x4, fixed_abs, tag = 'smem constant byte address 0x4 - core index']
  #allocation1 [shape = 'u32[72,128]{1,0:T(1,128)}', space=vmem, size = 0x9000, scoped, tag = 'internal scratch']
  %s0 = inlined_call_operand.vmem [shape: f32[2,8,64], index: 0, kind: input, shape index: {}]
  %s1 = inlined_call_operand.vmem [shape: f32[2,8,8], index: 1, kind: input, shape index: {}]
  %s2 = inlined_call_operand.vmem [shape: f32[8,16], index: 2, kind: input, shape index: {}]
  %s3 = inlined_call_operand.vmem [shape: f32[8,16], index: 3, kind: input, shape index: {}]
  %s4 = inlined_call_operand.vmem [shape: f32[1,64], index: 4, kind: input, shape index: {}]
  %s5 = inlined_call_operand.vmem [shape: bf16[64,64], index: 5, kind: input, shape index: {}]
  %s6 = inlined_call_operand.vmem [shape: bf16[64,32], index: 6, kind: input, shape index: {}]
  %s7 = inlined_call_operand.vmem [shape: bf16[64,32], index: 7, kind: input, shape index: {}]
  %s8 = inlined_call_operand.vmem [shape: bf16[64,64], index: 8, kind: input, shape index: {}]
  %s9 = inlined_call_operand.vmem [shape: f32[1,64], index: 9, kind: input, shape index: {}]
  %s10 = inlined_call_operand.vmem [shape: bf16[64,128], index: 10, kind: input, shape index: {}]
  %s11 = inlined_call_operand.vmem [shape: bf16[64,128], index: 11, kind: input, shape index: {}]
  %s12 = inlined_call_operand.vmem [shape: bf16[128,64], index: 12, kind: input, shape index: {}]
  %s13 = inlined_call_operand.vmem [shape: f32[1,64], index: 13, kind: input, shape index: {}]
  %s14 = inlined_call_operand.hbm [shape: f32[2,8,64], index: 14, kind: output, shape index: {}]
  %s15 = sld [smem:[#allocation0]]
  $region66: #{vlm_forward.11} parent=0
    _
  %s17 = ssub.s32 1, %s15
  %s18 = scalar_select 0, %s17, %s15
  $region1: #{vlm_forward.11} parent=0
    #allocation2 [shape = 'u8[8192]{0}', space=vmem, size = 0x2000, scoped, tag = 'output window, operand 0, single buffered']
    #allocation3 [shape = 's32[1]{0}', space=sflag, size = 0x4, scoped, tag = 'scoped memory for vlm_forward.11']
    %19 = vsyncpa [#allocation3], 0
    // Predicated region
    $region2: #{vlm_forward.11} parent=1 // pred_check
      _
    $region3: #{vlm_forward.11} parent=1 // pred_check_branch
      %21 = sbr.rel (0) target = $region5
    $region4: #{vlm_forward.11} parent=1 // pred_region
      _
    $region5: #{vlm_forward.11} parent=1 // pred_fallthru
      _
    // Predicated region
    $region6: #{vlm_forward.11} parent=1 // pred_check
      _
    $region7: #{vlm_forward.11} parent=1 // pred_check_branch
      %23 = sbr.rel (0) target = $region9
    $region8: #{vlm_forward.11} parent=1 // pred_region
      _
    $region9: #{vlm_forward.11} parent=1 // pred_fallthru
      _
    // Predicated region
    $region10: #{vlm_forward.11} parent=1 // pred_check
      _
    $region11: #{vlm_forward.11} parent=1 // pred_check_branch
      %25 = sbr.rel (0) target = $region13
    $region12: #{vlm_forward.11} parent=1 // pred_region
      _
    $region13: #{vlm_forward.11} parent=1 // pred_fallthru
      _
    // Predicated region
    $region14: #{vlm_forward.11} parent=1 // pred_check
      _
    $region15: #{vlm_forward.11} parent=1 // pred_check_branch
      %27 = sbr.rel (0) target = $region17
    $region16: #{vlm_forward.11} parent=1 // pred_region
      _
    $region17: #{vlm_forward.11} parent=1 // pred_fallthru
      _
    // Predicated region
    $region18: #{vlm_forward.11} parent=1 // pred_check
      _
    $region19: #{vlm_forward.11} parent=1 // pred_check_branch
      %29 = sbr.rel (0) target = $region21
    $region20: #{vlm_forward.11} parent=1 // pred_region
      _
    $region21: #{vlm_forward.11} parent=1 // pred_fallthru
      _
    // Predicated region
    $region22: #{vlm_forward.11} parent=1 // pred_check
      _
    $region23: #{vlm_forward.11} parent=1 // pred_check_branch
      %31 = sbr.rel (0) target = $region25
    $region24: #{vlm_forward.11} parent=1 // pred_region
      _
    $region25: #{vlm_forward.11} parent=1 // pred_fallthru
      _
    // Predicated region
    $region26: #{vlm_forward.11} parent=1 // pred_check
      _
    $region27: #{vlm_forward.11} parent=1 // pred_check_branch
      %33 = sbr.rel (0) target = $region29
    $region28: #{vlm_forward.11} parent=1 // pred_region
      _
    $region29: #{vlm_forward.11} parent=1 // pred_fallthru
      _
    // Predicated region
    $region30: #{vlm_forward.11} parent=1 // pred_check
      _
    $region31: #{vlm_forward.11} parent=1 // pred_check_branch
      %35 = sbr.rel (0) target = $region33
    $region32: #{vlm_forward.11} parent=1 // pred_region
      _
    $region33: #{vlm_forward.11} parent=1 // pred_fallthru
      _
    // Predicated region
    $region34: #{vlm_forward.11} parent=1 // pred_check
      _
    $region35: #{vlm_forward.11} parent=1 // pred_check_branch
      %37 = sbr.rel (0) target = $region37
    $region36: #{vlm_forward.11} parent=1 // pred_region
      _
    $region37: #{vlm_forward.11} parent=1 // pred_fallthru
      _
    // Predicated region
    $region38: #{vlm_forward.11} parent=1 // pred_check
      _
    $region39: #{vlm_forward.11} parent=1 // pred_check_branch
      %39 = sbr.rel (0) target = $region41
    $region40: #{vlm_forward.11} parent=1 // pred_region
      _
    $region41: #{vlm_forward.11} parent=1 // pred_fallthru
      _
    // Predicated region
    $region42: #{vlm_forward.11} parent=1 // pred_check
      _
    $region43: #{vlm_forward.11} parent=1 // pred_check_branch
      %41 = sbr.rel (0) target = $region45
    $region44: #{vlm_forward.11} parent=1 // pred_region
      _
    $region45: #{vlm_forward.11} parent=1 // pred_fallthru
      _
    // Predicated region
    $region46: #{vlm_forward.11} parent=1 // pred_check
      _
    $region47: #{vlm_forward.11} parent=1 // pred_check_branch
      %43 = sbr.rel (0) target = $region49
    $region48: #{vlm_forward.11} parent=1 // pred_region
      _
    $region49: #{vlm_forward.11} parent=1 // pred_fallthru
      _
    // Predicated region
    $region50: #{vlm_forward.11} parent=1 // pred_check
      _
    $region51: #{vlm_forward.11} parent=1 // pred_check_branch
      %45 = sbr.rel (0) target = $region53
    $region52: #{vlm_forward.11} parent=1 // pred_region
      _
    $region53: #{vlm_forward.11} parent=1 // pred_fallthru
      _
    // Predicated region
    $region54: #{vlm_forward.11} parent=1 // pred_check
      _
    $region55: #{vlm_forward.11} parent=1 // pred_check_branch
      %47 = sbr.rel (0) target = $region57
    $region56: #{vlm_forward.11} parent=1 // pred_region
      _
    $region57: #{vlm_forward.11} parent=1 // pred_fallthru
      _
    %v49 = vld [vmem:[%s0] sm:$0xff]
    %v50 = vld [vmem:[%s0 + $0x8] sm:$0xff]
    %v51 = vld [vmem:[%s2] sm:$0xff]
    %v52 = vld [vmem:[%s3] sm:$0xff]
    %v53 = vld [vmem:[%s1] sm:$0xff]
    %v54 = vld [vmem:[%s1 + $0x8] sm:$0xff]
    %v55 = vld [vmem:[%s4] sm:$0x1]
    %v56 = vmul.f32 %v49, %v49
    %v57 = vmul.f32 %v50, %v50
    %vm58 = vcmask 523264
    %v59 = vsel %vm58, %v56, 0.0
    %60 = vadd.xlane.f32.xlu0 %v59
    %v61 = vpop.xlane.xlu0 %60
    %v62 = vsel %vm58, %v57, 0.0
    %63 = vadd.xlane.f32.xlu0 %v62
    %v64 = vpop.xlane.xlu0 %63
    %v65 = vrcp.pop 64.0
    %v66 = vmul.f32 64.0, %v65
    %v67 = vsub.f32 1.0, %v66
    %v68 = vmul.f32 %v65, %v67
    %v69 = vadd.f32 %v65, %v68
    %vm70 = vweird.f32 %v65
    %v71 = vsel %vm70, %v65, %v69
    %v72 = vmul.f32 %v61, %v71
    %v73 = vmul.f32 %v64, %v71
    %v74 = vadd.f32 %v72, 1e-05
    %v75 = vadd.f32 %v73, 1e-05
    %v76 = vrsqrt.pop %v74
    %v77 = vmul.f32 %v76, %v74
    %v78 = vmul.f32 %v77, %v76
    %v79 = vmul.f32 0.5, %v78
    %v80 = vsub.f32 1.5, %v79
    %v81 = vmul.f32 %v76, %v80
    %vm82 = vweird.f32 %v74
    %vm83 = vweird.f32 %v76
    %vm84 = vmor %vm82, %vm83
    %v85 = vsel %vm84, %v76, %v81
    %v86 = vrsqrt.pop %v75
    %v87 = vmul.f32 %v86, %v75
    %v88 = vmul.f32 %v87, %v86
    %v89 = vmul.f32 0.5, %v88
    %v90 = vsub.f32 1.5, %v89
    %v91 = vmul.f32 %v86, %v90
    %vm92 = vweird.f32 %v75
    %vm93 = vweird.f32 %v86
    %vm94 = vmor %vm92, %vm93
    %v95 = vsel %vm94, %v86, %v91
    %v96 = vmul.f32 %v49, %v85
    %v97 = vmul.f32 %v50, %v95
    %v99 = vperm.slane %v55, 0
    %v101 = vmul.f32 %v96, %v99
    %v102 = vmul.f32 %v97, %v99
    %v103 = vpack.c.bf16 %v102, %v101
    %v104 = vld [vmem:[%s5] sm:$0xf]
    %v105 = vld [vmem:[%s5 + $0x4] sm:$0xf]
    %v106 = vld [vmem:[%s5 + $0x8] sm:$0xf]
    %v107 = vld [vmem:[%s5 + $0xc] sm:$0xf]
    %v108 = vld [vmem:[%s5 + $0x10] sm:$0xf]
    %v109 = vld [vmem:[%s5 + $0x14] sm:$0xf]
    %v110 = vld [vmem:[%s5 + $0x18] sm:$0xf]
    %v111 = vld [vmem:[%s5 + $0x1c] sm:$0xf]
    %v120 = vunpack.c.l.b16 %v104
    %v121 = vunpack.c.l.b16 %v105
    %v122 = vunpack.c.l.b16 %v106
    %v123 = vunpack.c.l.b16 %v107
    %v124 = vunpack.c.l.b16 %v108
    %v125 = vunpack.c.l.b16 %v109
    %v126 = vunpack.c.l.b16 %v110
    %v127 = vunpack.c.l.b16 %v111
    %v128 = vpack.c.b16 %v121, %v120
    %v129 = vpack.c.b16 %v123, %v122
    %v130 = vpack.c.b16 %v125, %v124
    %v131 = vpack.c.b16 %v127, %v126
    %v137 = vsel %vm58, %v103, 0
    %139 = vmatpush.bf16.msra.mxu0 0
    %140 = vmatpush.bf16.msra.mxu0 0
    %141 = vmatpush.bf16.msra.mxu0 0
    %142 = vmatpush.bf16.msra.mxu0 0
    %143 = vmatpush.bf16.msra.mxu0 %v131
    %144 = vmatpush.bf16.msra.mxu0 %v130
    %145 = vmatpush.bf16.msra.mxu0 %v129
    %146 = vmatpush.bf16.msra.mxu0 %v128
    %147 = vmatmul.bf16.gmra.mxu0 %v137
    %v148 = vpop.f32.mrf.mxu0
    %v149 = vadd.f32 0.0, %v148
    %v150 = vpop.f32.mrf.mxu0
    %v151 = vadd.f32 0.0, %v150
    %152 = vdwg.mxu0
    %v153 = vld [vmem:[%s6] sm:$0xf]
    %v154 = vld [vmem:[%s6 + $0x4] sm:$0xf]
    %v155 = vld [vmem:[%s6 + $0x8] sm:$0xf]
    %v156 = vld [vmem:[%s6 + $0xc] sm:$0xf]
    %v157 = vld [vmem:[%s6 + $0x10] sm:$0xf]
    %v158 = vld [vmem:[%s6 + $0x14] sm:$0xf]
    %v159 = vld [vmem:[%s6 + $0x18] sm:$0xf]
    %v160 = vld [vmem:[%s6 + $0x1c] sm:$0xf]
    %v169 = vunpack.c.l.b16 %v153
    %v170 = vunpack.c.l.b16 %v154
    %v171 = vunpack.c.l.b16 %v155
    %v172 = vunpack.c.l.b16 %v156
    %v173 = vunpack.c.l.b16 %v157
    %v174 = vunpack.c.l.b16 %v158
    %v175 = vunpack.c.l.b16 %v159
    %v176 = vunpack.c.l.b16 %v160
    %v177 = vpack.c.b16 %v170, %v169
    %v178 = vpack.c.b16 %v172, %v171
    %v179 = vpack.c.b16 %v174, %v173
    %v180 = vpack.c.b16 %v176, %v175
    %185 = vmatpush.bf16.msra.mxu0 0
    %186 = vmatpush.bf16.msra.mxu0 0
    %187 = vmatpush.bf16.msra.mxu0 0
    %188 = vmatpush.bf16.msra.mxu0 0
    %189 = vmatpush.bf16.msra.mxu0 %v180
    %190 = vmatpush.bf16.msra.mxu0 %v179
    %191 = vmatpush.bf16.msra.mxu0 %v178
    %192 = vmatpush.bf16.msra.mxu0 %v177
    %193 = vmatmul.bf16.gmra.mxu0 %v137
    %v194 = vpop.f32.mrf.mxu0
    %v195 = vadd.f32 0.0, %v194
    %v196 = vpop.f32.mrf.mxu0
    %v197 = vadd.f32 0.0, %v196
    %198 = vdwg.mxu0
    %v199 = vld [vmem:[%s7] sm:$0xf]
    %v200 = vld [vmem:[%s7 + $0x4] sm:$0xf]
    %v201 = vld [vmem:[%s7 + $0x8] sm:$0xf]
    %v202 = vld [vmem:[%s7 + $0xc] sm:$0xf]
    %v203 = vld [vmem:[%s7 + $0x10] sm:$0xf]
    %v204 = vld [vmem:[%s7 + $0x14] sm:$0xf]
    %v205 = vld [vmem:[%s7 + $0x18] sm:$0xf]
    %v206 = vld [vmem:[%s7 + $0x1c] sm:$0xf]
    %v215 = vunpack.c.l.b16 %v199
    %v216 = vunpack.c.l.b16 %v200
    %v217 = vunpack.c.l.b16 %v201
    %v218 = vunpack.c.l.b16 %v202
    %v219 = vunpack.c.l.b16 %v203
    %v220 = vunpack.c.l.b16 %v204
    %v221 = vunpack.c.l.b16 %v205
    %v222 = vunpack.c.l.b16 %v206
    %v223 = vpack.c.b16 %v216, %v215
    %v224 = vpack.c.b16 %v218, %v217
    %v225 = vpack.c.b16 %v220, %v219
    %v226 = vpack.c.b16 %v222, %v221
    %231 = vmatpush.bf16.msra.mxu0 0
    %232 = vmatpush.bf16.msra.mxu0 0
    %233 = vmatpush.bf16.msra.mxu0 0
    %234 = vmatpush.bf16.msra.mxu0 0
    %235 = vmatpush.bf16.msra.mxu0 %v226
    %236 = vmatpush.bf16.msra.mxu0 %v225
    %237 = vmatpush.bf16.msra.mxu0 %v224
    %238 = vmatpush.bf16.msra.mxu0 %v223
    %239 = vmatmul.bf16.gmra.mxu0 %v137
    %v240 = vpop.f32.mrf.mxu0
    %v241 = vadd.f32 0.0, %v240
    %v242 = vpop.f32.mrf.mxu0
    %v243 = vadd.f32 0.0, %v242
    %244 = vdwg.mxu0
    %v245 = vsub.f32 0.0, %v149
    %v246 = vsub.f32 0.0, %v151
    %249 = vrot.lane.b32.xlu0 %v245, 120
    %v250 = vpop.permute.xlu0 %249
    %251 = vrot.lane.b32.xlu0 %v246, 120
    %v252 = vpop.permute.xlu0 %251
    %257 = vrot.lane.b32.xlu0 %v149, 8
    %v258 = vpop.permute.xlu0 %257
    %259 = vrot.lane.b32.xlu0 %v151, 8
    %v260 = vpop.permute.xlu0 %259
    %vm263 = vcmask 64512
    %v264 = vsel %vm263, %v250, %v258
    %v265 = vsel %vm263, %v252, %v260
    %v266 = vmul.f32 %v149, %v51
    %v267 = vmul.f32 %v151, %v51
    %v268 = vmul.f32 %v264, %v52
    %v269 = vmul.f32 %v265, %v52
    %v270 = vadd.f32 %v266, %v268
    %v271 = vadd.f32 %v267, %v269
    %v272 = vmul.f32 %v270, 0.25
    %v273 = vmul.f32 %v271, 0.25
    %v274 = vsub.f32 0.0, %v195
    %v275 = vsub.f32 0.0, %v197
    %278 = vrot.lane.b32.xlu0 %v274, 120
    %v279 = vpop.permute.xlu0 %278
    %280 = vrot.lane.b32.xlu0 %v275, 120
    %v281 = vpop.permute.xlu0 %280
    %286 = vrot.lane.b32.xlu0 %v195, 8
    %v287 = vpop.permute.xlu0 %286
    %288 = vrot.lane.b32.xlu0 %v197, 8
    %v289 = vpop.permute.xlu0 %288
    %v292 = vsel %vm263, %v279, %v287
    %v293 = vsel %vm263, %v281, %v289
    %v294 = vmul.f32 %v195, %v51
    %v295 = vmul.f32 %v197, %v51
    %v296 = vmul.f32 %v292, %v52
    %v297 = vmul.f32 %v293, %v52
    %v298 = vadd.f32 %v294, %v296
    %v299 = vadd.f32 %v295, %v297
    %v300 = vpack.c.bf16 %v241, %v241
    %v301 = vpack.c.bf16 %v243, %v243
    %v302 = vpack.c.bf16 %v272, %v272
    %v303 = vpack.c.bf16 %v273, %v273
    %v304 = vpack.c.bf16 %v298, %v298
    %v305 = vpack.c.bf16 %v299, %v299
    %vm306 = vcmask 130048
    %v308 = vsel %vm306, %v302, 0
    %v311 = vsel %vm306, %v304, 0
    %313 = vmatpush.bf16.xpose.msra.mxu0 0
    %314 = vmatpush.bf16.xpose.msra.mxu0 0
    %315 = vmatpush.bf16.xpose.msra.mxu0 0
    %316 = vmatpush.bf16.xpose.msra.mxu0 0
    %317 = vmatpush.bf16.xpose.msra.mxu0 0
    %318 = vmatpush.bf16.xpose.msra.mxu0 0
    %319 = vmatpush.bf16.xpose.msra.mxu0 0
    %320 = vmatpush.bf16.xpose.msra.mxu0 %v311
    %321 = vmatmul.bf16.gmra.mxu0 %v308
    %v322 = vpop.f32.mrf.mxu0
    %v323 = vadd.f32 %v53, %v322
    %v324 = vpop.f32.mrf.mxu0
    %325 = vdwg.mxu0
    %v327 = vsel %vm306, %v303, 0
    %v330 = vsel %vm306, %v305, 0
    %332 = vmatpush.bf16.xpose.msra.mxu0 0
    %333 = vmatpush.bf16.xpose.msra.mxu0 0
    %334 = vmatpush.bf16.xpose.msra.mxu0 0
    %335 = vmatpush.bf16.xpose.msra.mxu0 0
    %336 = vmatpush.bf16.xpose.msra.mxu0 0
    %337 = vmatpush.bf16.xpose.msra.mxu0 0
    %338 = vmatpush.bf16.xpose.msra.mxu0 0
    %339 = vmatpush.bf16.xpose.msra.mxu0 %v330
    %340 = vmatmul.bf16.gmra.mxu0 %v327
    %v341 = vpop.f32.mrf.mxu0
    %v342 = vadd.f32 %v54, %v341
    %v343 = vpop.f32.mrf.mxu0
    %344 = vdwg.mxu0
    %v345 = vsel %vm263, %v323, -inf
    %346 = vmax.xlane.f32.xlu0 %v345
    %v347 = vpop.xlane.xlu0 %346
    %v348 = vsel %vm263, %v342, -inf
    %349 = vmax.xlane.f32.xlu0 %v348
    %v350 = vpop.xlane.xlu0 %349
    %v351 = vsub.f32 %v323, %v347
    %v352 = vsub.f32 %v342, %v350
    %v353 = vmul.f32 %v351, 1.442695
    %v354 = vpow.pop %v353
    %v355 = vmul.f32 %v352, 1.442695
    %v356 = vpow.pop %v355
    %v357 = vsel %vm263, %v354, 0.0
    %358 = vadd.xlane.f32.xlu0 %v357
    %v359 = vpop.xlane.xlu0 %358
    %v360 = vsel %vm263, %v356, 0.0
    %361 = vadd.xlane.f32.xlu0 %v360
    %v362 = vpop.xlane.xlu0 %361
    %v363 = vrcp.pop %v359
    %v364 = vrcp.pop %v362
    %v365 = vmul.f32 %v354, %v363
    %v366 = vmul.f32 %v356, %v364
    %v367 = vpack.c.bf16 %v365, %v365
    %v368 = vpack.c.bf16 %v366, %v366
    %v370 = vsel %vm263, %v367, 0
    %vm372 = vcmask 1043456
    %v374 = vsel %vm372, %v300, 0
    %376 = vmatpush.bf16.msra.mxu0 0
    %377 = vmatpush.bf16.msra.mxu0 0
    %378 = vmatpush.bf16.msra.mxu0 0
    %379 = vmatpush.bf16.msra.mxu0 0
    %380 = vmatpush.bf16.msra.mxu0 0
    %381 = vmatpush.bf16.msra.mxu0 0
    %382 = vmatpush.bf16.msra.mxu0 0
    %383 = vmatpush.bf16.msra.mxu0 %v374
    %384 = vmatmul.bf16.gmra.mxu0 %v370
    %v385 = vpop.f32.mrf.mxu0
    %v386 = vadd.f32 0.0, %v385
    %v387 = vpop.f32.mrf.mxu0
    %388 = vdwg.mxu0
    %v390 = vsel %vm263, %v368, 0
    %v393 = vsel %vm372, %v301, 0
    %395 = vmatpush.bf16.msra.mxu0 0
    %396 = vmatpush.bf16.msra.mxu0 0
    %397 = vmatpush.bf16.msra.mxu0 0
    %398 = vmatpush.bf16.msra.mxu0 0
    %399 = vmatpush.bf16.msra.mxu0 0
    %400 = vmatpush.bf16.msra.mxu0 0
    %401 = vmatpush.bf16.msra.mxu0 0
    %402 = vmatpush.bf16.msra.mxu0 %v393
    %403 = vmatmul.bf16.gmra.mxu0 %v390
    %v404 = vpop.f32.mrf.mxu0
    %v405 = vadd.f32 0.0, %v404
    %v406 = vpop.f32.mrf.mxu0
    %407 = vdwg.mxu0
    %408 = vrot.lane.b32.xlu0 %v245, 104
    %v409 = vpop.permute.xlu0 %408
    %410 = vrot.lane.b32.xlu0 %v246, 104
    %v411 = vpop.permute.xlu0 %410
    %414 = vrot.lane.b32.xlu0 %v149, 120
    %v415 = vpop.permute.xlu0 %414
    %416 = vrot.lane.b32.xlu0 %v151, 120
    %v417 = vpop.permute.xlu0 %416
    %v420 = vsel %vm263, %v409, %v415
    %v421 = vsel %vm263, %v411, %v417
    %423 = vrot.lane.b32.xlu0 %v51, 16
    %v424 = vpop.permute.xlu0 %423
    %v426 = vmul.f32 %v149, %v424
    %v427 = vmul.f32 %v151, %v424
    %v428 = vmul.f32 %v420, %v52
    %v429 = vmul.f32 %v421, %v52
    %432 = vrot.lane.b32.xlu0 %v428, 16
    %v433 = vpop.permute.xlu0 %432
    %434 = vrot.lane.b32.xlu0 %v429, 16
    %v435 = vpop.permute.xlu0 %434
    %v438 = vadd.f32 %v426, %v433
    %v439 = vadd.f32 %v427, %v435
    %v440 = vmul.f32 %v438, 0.25
    %v441 = vmul.f32 %v439, 0.25
    %v442 = vpack.c.bf16 %v440, %v440
    %v443 = vpack.c.bf16 %v441, %v441
    %v445 = vunpack.c.l.b16 %v442
    %v446 = vpack.c.b16 %v445, %v445
    %447 = vrot.lane.b32.xlu0 %v446, 112
    %v448 = vpop.permute.xlu0 %447
    %v450 = vsel %vm306, %v448, 0
    %452 = vmatpush.bf16.xpose.msra.mxu0 0
    %453 = vmatpush.bf16.xpose.msra.mxu0 0
    %454 = vmatpush.bf16.xpose.msra.mxu0 0
    %455 = vmatpush.bf16.xpose.msra.mxu0 0
    %456 = vmatpush.bf16.xpose.msra.mxu0 0
    %457 = vmatpush.bf16.xpose.msra.mxu0 0
    %458 = vmatpush.bf16.xpose.msra.mxu0 0
    %459 = vmatpush.bf16.xpose.msra.mxu0 %v311
    %460 = vmatmul.bf16.gmra.mxu0 %v450
    %v461 = vpop.f32.mrf.mxu0
    %v462 = vadd.f32 %v53, %v461
    %v463 = vpop.f32.mrf.mxu0
    %464 = vdwg.mxu0
    %v466 = vunpack.c.l.b16 %v443
    %v467 = vpack.c.b16 %v466, %v466
    %468 = vrot.lane.b32.xlu0 %v467, 112
    %v469 = vpop.permute.xlu0 %468
    %v471 = vsel %vm306, %v469, 0
    %473 = vmatpush.bf16.xpose.msra.mxu0 0
    %474 = vmatpush.bf16.xpose.msra.mxu0 0
    %475 = vmatpush.bf16.xpose.msra.mxu0 0
    %476 = vmatpush.bf16.xpose.msra.mxu0 0
    %477 = vmatpush.bf16.xpose.msra.mxu0 0
    %478 = vmatpush.bf16.xpose.msra.mxu0 0
    %479 = vmatpush.bf16.xpose.msra.mxu0 0
    %480 = vmatpush.bf16.xpose.msra.mxu0 %v330
    %481 = vmatmul.bf16.gmra.mxu0 %v471
    %v482 = vpop.f32.mrf.mxu0
    %v483 = vadd.f32 %v54, %v482
    %v484 = vpop.f32.mrf.mxu0
    %485 = vdwg.mxu0
    %v486 = vsel %vm263, %v462, -inf
    %487 = vmax.xlane.f32.xlu0 %v486
    %v488 = vpop.xlane.xlu0 %487
    %v489 = vsel %vm263, %v483, -inf
    %490 = vmax.xlane.f32.xlu0 %v489
    %v491 = vpop.xlane.xlu0 %490
    %v492 = vsub.f32 %v462, %v488
    %v493 = vsub.f32 %v483, %v491
    %v494 = vmul.f32 %v492, 1.442695
    %v495 = vpow.pop %v494
    %v496 = vmul.f32 %v493, 1.442695
    %v497 = vpow.pop %v496
    %v498 = vsel %vm263, %v495, 0.0
    %499 = vadd.xlane.f32.xlu0 %v498
    %v500 = vpop.xlane.xlu0 %499
    %v501 = vsel %vm263, %v497, 0.0
    %502 = vadd.xlane.f32.xlu0 %v501
    %v503 = vpop.xlane.xlu0 %502
    %v504 = vrcp.pop %v500
    %v505 = vrcp.pop %v503
    %v506 = vmul.f32 %v495, %v504
    %v507 = vmul.f32 %v497, %v505
    %v508 = vpack.c.bf16 %v506, %v506
    %v509 = vpack.c.bf16 %v507, %v507
    %v511 = vsel %vm263, %v508, 0
    %513 = vmatpush.bf16.msra.mxu0 0
    %514 = vmatpush.bf16.msra.mxu0 0
    %515 = vmatpush.bf16.msra.mxu0 0
    %516 = vmatpush.bf16.msra.mxu0 0
    %517 = vmatpush.bf16.msra.mxu0 0
    %518 = vmatpush.bf16.msra.mxu0 0
    %519 = vmatpush.bf16.msra.mxu0 0
    %520 = vmatpush.bf16.msra.mxu0 %v374
    %521 = vmatmul.bf16.gmra.mxu0 %v511
    %v522 = vpop.f32.mrf.mxu0
    %v523 = vadd.f32 0.0, %v522
    %v524 = vpop.f32.mrf.mxu0
    %525 = vdwg.mxu0
    %v527 = vsel %vm263, %v509, 0
    %529 = vmatpush.bf16.msra.mxu0 0
    %530 = vmatpush.bf16.msra.mxu0 0
    %531 = vmatpush.bf16.msra.mxu0 0
    %532 = vmatpush.bf16.msra.mxu0 0
    %533 = vmatpush.bf16.msra.mxu0 0
    %534 = vmatpush.bf16.msra.mxu0 0
    %535 = vmatpush.bf16.msra.mxu0 0
    %536 = vmatpush.bf16.msra.mxu0 %v393
    %537 = vmatmul.bf16.gmra.mxu0 %v527
    %v538 = vpop.f32.mrf.mxu0
    %v539 = vadd.f32 0.0, %v538
    %v540 = vpop.f32.mrf.mxu0
    %541 = vdwg.mxu0
    %542 = vrot.lane.b32.xlu0 %v245, 88
    %v543 = vpop.permute.xlu0 %542
    %544 = vrot.lane.b32.xlu0 %v246, 88
    %v545 = vpop.permute.xlu0 %544
    %548 = vrot.lane.b32.xlu0 %v149, 104
    %v549 = vpop.permute.xlu0 %548
    %550 = vrot.lane.b32.xlu0 %v151, 104
    %v551 = vpop.permute.xlu0 %550
    %v554 = vsel %vm263, %v543, %v549
    %v555 = vsel %vm263, %v545, %v551
    %556 = vrot.lane.b32.xlu0 %v51, 32
    %v557 = vpop.permute.xlu0 %556
    %v559 = vmul.f32 %v149, %v557
    %v560 = vmul.f32 %v151, %v557
    %v561 = vmul.f32 %v554, %v52
    %v562 = vmul.f32 %v555, %v52
    %565 = vrot.lane.b32.xlu0 %v561, 32
    %v566 = vpop.permute.xlu0 %565
    %567 = vrot.lane.b32.xlu0 %v562, 32
    %v568 = vpop.permute.xlu0 %567
    %v571 = vadd.f32 %v559, %v566
    %v572 = vadd.f32 %v560, %v568
    %v573 = vmul.f32 %v571, 0.25
    %v574 = vmul.f32 %v572, 0.25
    %575 = vrot.lane.b32.xlu0 %v274, 104
    %v576 = vpop.permute.xlu0 %575
    %577 = vrot.lane.b32.xlu0 %v275, 104
    %v578 = vpop.permute.xlu0 %577
    %581 = vrot.lane.b32.xlu0 %v195, 120
    %v582 = vpop.permute.xlu0 %581
    %583 = vrot.lane.b32.xlu0 %v197, 120
    %v584 = vpop.permute.xlu0 %583
    %v587 = vsel %vm263, %v576, %v582
    %v588 = vsel %vm263, %v578, %v584
    %v589 = vmul.f32 %v195, %v424
    %v590 = vmul.f32 %v197, %v424
    %v591 = vmul.f32 %v587, %v52
    %v592 = vmul.f32 %v588, %v52
    %595 = vrot.lane.b32.xlu0 %v591, 16
    %v596 = vpop.permute.xlu0 %595
    %597 = vrot.lane.b32.xlu0 %v592, 16
    %v598 = vpop.permute.xlu0 %597
    %v601 = vadd.f32 %v589, %v596
    %v602 = vadd.f32 %v590, %v598
    %v603 = vpack.c.bf16 %v573, %v573
    %v604 = vpack.c.bf16 %v574, %v574
    %v605 = vpack.c.bf16 %v601, %v601
    %v606 = vpack.c.bf16 %v602, %v602
    %v608 = vunpack.c.l.b16 %v603
    %v609 = vpack.c.b16 %v608, %v608
    %610 = vrot.lane.b32.xlu0 %v609, 96
    %v611 = vpop.permute.xlu0 %610
    %v613 = vunpack.c.l.b16 %v605
    %v614 = vpack.c.b16 %v613, %v613
    %615 = vrot.lane.b32.xlu0 %v614, 112
    %v616 = vpop.permute.xlu0 %615
    %v618 = vsel %vm306, %v611, 0
    %v621 = vsel %vm306, %v616, 0
    %623 = vmatpush.bf16.xpose.msra.mxu0 0
    %624 = vmatpush.bf16.xpose.msra.mxu0 0
    %625 = vmatpush.bf16.xpose.msra.mxu0 0
    %626 = vmatpush.bf16.xpose.msra.mxu0 0
    %627 = vmatpush.bf16.xpose.msra.mxu0 0
    %628 = vmatpush.bf16.xpose.msra.mxu0 0
    %629 = vmatpush.bf16.xpose.msra.mxu0 0
    %630 = vmatpush.bf16.xpose.msra.mxu0 %v621
    %631 = vmatmul.bf16.gmra.mxu0 %v618
    %v632 = vpop.f32.mrf.mxu0
    %v633 = vadd.f32 %v53, %v632
    %v634 = vpop.f32.mrf.mxu0
    %635 = vdwg.mxu0
    %v637 = vunpack.c.l.b16 %v604
    %v638 = vpack.c.b16 %v637, %v637
    %639 = vrot.lane.b32.xlu0 %v638, 96
    %v640 = vpop.permute.xlu0 %639
    %v642 = vunpack.c.l.b16 %v606
    %v643 = vpack.c.b16 %v642, %v642
    %644 = vrot.lane.b32.xlu0 %v643, 112
    %v645 = vpop.permute.xlu0 %644
    %v647 = vsel %vm306, %v640, 0
    %v650 = vsel %vm306, %v645, 0
    %652 = vmatpush.bf16.xpose.msra.mxu0 0
    %653 = vmatpush.bf16.xpose.msra.mxu0 0
    %654 = vmatpush.bf16.xpose.msra.mxu0 0
    %655 = vmatpush.bf16.xpose.msra.mxu0 0
    %656 = vmatpush.bf16.xpose.msra.mxu0 0
    %657 = vmatpush.bf16.xpose.msra.mxu0 0
    %658 = vmatpush.bf16.xpose.msra.mxu0 0
    %659 = vmatpush.bf16.xpose.msra.mxu0 %v650
    %660 = vmatmul.bf16.gmra.mxu0 %v647
    %v661 = vpop.f32.mrf.mxu0
    %v662 = vadd.f32 %v54, %v661
    %v663 = vpop.f32.mrf.mxu0
    %664 = vdwg.mxu0
    %v665 = vsel %vm263, %v633, -inf
    %666 = vmax.xlane.f32.xlu0 %v665
    %v667 = vpop.xlane.xlu0 %666
    %v668 = vsel %vm263, %v662, -inf
    %669 = vmax.xlane.f32.xlu0 %v668
    %v670 = vpop.xlane.xlu0 %669
    %v671 = vsub.f32 %v633, %v667
    %v672 = vsub.f32 %v662, %v670
    %v673 = vmul.f32 %v671, 1.442695
    %v674 = vpow.pop %v673
    %v675 = vmul.f32 %v672, 1.442695
    %v676 = vpow.pop %v675
    %v677 = vsel %vm263, %v674, 0.0
    %678 = vadd.xlane.f32.xlu0 %v677
    %v679 = vpop.xlane.xlu0 %678
    %v680 = vsel %vm263, %v676, 0.0
    %681 = vadd.xlane.f32.xlu0 %v680
    %v682 = vpop.xlane.xlu0 %681
    %v683 = vrcp.pop %v679
    %v684 = vrcp.pop %v682
    %v685 = vmul.f32 %v674, %v683
    %v686 = vmul.f32 %v676, %v684
    %v687 = vpack.c.bf16 %v685, %v685
    %v688 = vpack.c.bf16 %v686, %v686
    %v690 = vunpack.c.l.b16 %v300
    %v691 = vpack.c.b16 %v690, %v690
    %692 = vrot.lane.b32.xlu0 %v691, 112
    %v693 = vpop.permute.xlu0 %692
    %v695 = vsel %vm263, %v687, 0
    %v698 = vsel %vm372, %v693, 0
    %700 = vmatpush.bf16.msra.mxu0 0
    %701 = vmatpush.bf16.msra.mxu0 0
    %702 = vmatpush.bf16.msra.mxu0 0
    %703 = vmatpush.bf16.msra.mxu0 0
    %704 = vmatpush.bf16.msra.mxu0 0
    %705 = vmatpush.bf16.msra.mxu0 0
    %706 = vmatpush.bf16.msra.mxu0 0
    %707 = vmatpush.bf16.msra.mxu0 %v698
    %708 = vmatmul.bf16.gmra.mxu0 %v695
    %v709 = vpop.f32.mrf.mxu0
    %v710 = vadd.f32 0.0, %v709
    %v711 = vpop.f32.mrf.mxu0
    %712 = vdwg.mxu0
    %v714 = vunpack.c.l.b16 %v301
    %v715 = vpack.c.b16 %v714, %v714
    %716 = vrot.lane.b32.xlu0 %v715, 112
    %v717 = vpop.permute.xlu0 %716
    %v719 = vsel %vm263, %v688, 0
    %v722 = vsel %vm372, %v717, 0
    %724 = vmatpush.bf16.msra.mxu0 0
    %725 = vmatpush.bf16.msra.mxu0 0
    %726 = vmatpush.bf16.msra.mxu0 0
    %727 = vmatpush.bf16.msra.mxu0 0
    %728 = vmatpush.bf16.msra.mxu0 0
    %729 = vmatpush.bf16.msra.mxu0 0
    %730 = vmatpush.bf16.msra.mxu0 0
    %731 = vmatpush.bf16.msra.mxu0 %v722
    %732 = vmatmul.bf16.gmra.mxu0 %v719
    %v733 = vpop.f32.mrf.mxu0
    %v734 = vadd.f32 0.0, %v733
    %v735 = vpop.f32.mrf.mxu0
    %736 = vdwg.mxu0
    %737 = vrot.lane.b32.xlu0 %v245, 72
    %v738 = vpop.permute.xlu0 %737
    %739 = vrot.lane.b32.xlu0 %v246, 72
    %v740 = vpop.permute.xlu0 %739
    %743 = vrot.lane.b32.xlu0 %v149, 88
    %v744 = vpop.permute.xlu0 %743
    %745 = vrot.lane.b32.xlu0 %v151, 88
    %v746 = vpop.permute.xlu0 %745
    %v749 = vsel %vm263, %v738, %v744
    %v750 = vsel %vm263, %v740, %v746
    %751 = vrot.lane.b32.xlu0 %v51, 48
    %v752 = vpop.permute.xlu0 %751
    %v754 = vmul.f32 %v149, %v752
    %v755 = vmul.f32 %v151, %v752
    %v756 = vmul.f32 %v749, %v52
    %v757 = vmul.f32 %v750, %v52
    %760 = vrot.lane.b32.xlu0 %v756, 48
    %v761 = vpop.permute.xlu0 %760
    %762 = vrot.lane.b32.xlu0 %v757, 48
    %v763 = vpop.permute.xlu0 %762
    %v766 = vadd.f32 %v754, %v761
    %v767 = vadd.f32 %v755, %v763
    %v768 = vmul.f32 %v766, 0.25
    %v769 = vmul.f32 %v767, 0.25
    %v770 = vpack.c.bf16 %v768, %v768
    %v771 = vpack.c.bf16 %v769, %v769
    %v773 = vunpack.c.l.b16 %v770
    %v774 = vpack.c.b16 %v773, %v773
    %775 = vrot.lane.b32.xlu0 %v774, 80
    %v776 = vpop.permute.xlu0 %775
    %v778 = vsel %vm306, %v776, 0
    %780 = vmatpush.bf16.xpose.msra.mxu0 0
    %781 = vmatpush.bf16.xpose.msra.mxu0 0
    %782 = vmatpush.bf16.xpose.msra.mxu0 0
    %783 = vmatpush.bf16.xpose.msra.mxu0 0
    %784 = vmatpush.bf16.xpose.msra.mxu0 0
    %785 = vmatpush.bf16.xpose.msra.mxu0 0
    %786 = vmatpush.bf16.xpose.msra.mxu0 0
    %787 = vmatpush.bf16.xpose.msra.mxu0 %v621
    %788 = vmatmul.bf16.gmra.mxu0 %v778
    %v789 = vpop.f32.mrf.mxu0
    %v790 = vadd.f32 %v53, %v789
    %v791 = vpop.f32.mrf.mxu0
    %792 = vdwg.mxu0
    %v794 = vunpack.c.l.b16 %v771
    %v795 = vpack.c.b16 %v794, %v794
    %796 = vrot.lane.b32.xlu0 %v795, 80
    %v797 = vpop.permute.xlu0 %796
    %v799 = vsel %vm306, %v797, 0
    %801 = vmatpush.bf16.xpose.msra.mxu0 0
    %802 = vmatpush.bf16.xpose.msra.mxu0 0
    %803 = vmatpush.bf16.xpose.msra.mxu0 0
    %804 = vmatpush.bf16.xpose.msra.mxu0 0
    %805 = vmatpush.bf16.xpose.msra.mxu0 0
    %806 = vmatpush.bf16.xpose.msra.mxu0 0
    %807 = vmatpush.bf16.xpose.msra.mxu0 0
    %808 = vmatpush.bf16.xpose.msra.mxu0 %v650
    %809 = vmatmul.bf16.gmra.mxu0 %v799
    %v810 = vpop.f32.mrf.mxu0
    %v811 = vadd.f32 %v54, %v810
    %v812 = vpop.f32.mrf.mxu0
    %813 = vdwg.mxu0
    %v814 = vsel %vm263, %v790, -inf
    %815 = vmax.xlane.f32.xlu0 %v814
    %v816 = vpop.xlane.xlu0 %815
    %v817 = vsel %vm263, %v811, -inf
    %818 = vmax.xlane.f32.xlu0 %v817
    %v819 = vpop.xlane.xlu0 %818
    %v820 = vsub.f32 %v790, %v816
    %v821 = vsub.f32 %v811, %v819
    %v822 = vmul.f32 %v820, 1.442695
    %v823 = vpow.pop %v822
    %v824 = vmul.f32 %v821, 1.442695
    %v825 = vpow.pop %v824
    %v826 = vsel %vm263, %v823, 0.0
    %827 = vadd.xlane.f32.xlu0 %v826
    %v828 = vpop.xlane.xlu0 %827
    %v829 = vsel %vm263, %v825, 0.0
    %830 = vadd.xlane.f32.xlu0 %v829
    %v831 = vpop.xlane.xlu0 %830
    %v832 = vrcp.pop %v828
    %v833 = vrcp.pop %v831
    %v834 = vmul.f32 %v823, %v832
    %v835 = vmul.f32 %v825, %v833
    %v836 = vpack.c.bf16 %v834, %v834
    %v837 = vpack.c.bf16 %v835, %v835
    %v839 = vsel %vm263, %v836, 0
    %841 = vmatpush.bf16.msra.mxu0 0
    %842 = vmatpush.bf16.msra.mxu0 0
    %843 = vmatpush.bf16.msra.mxu0 0
    %844 = vmatpush.bf16.msra.mxu0 0
    %845 = vmatpush.bf16.msra.mxu0 0
    %846 = vmatpush.bf16.msra.mxu0 0
    %847 = vmatpush.bf16.msra.mxu0 0
    %848 = vmatpush.bf16.msra.mxu0 %v698
    %849 = vmatmul.bf16.gmra.mxu0 %v839
    %v850 = vpop.f32.mrf.mxu0
    %v851 = vadd.f32 0.0, %v850
    %v852 = vpop.f32.mrf.mxu0
    %853 = vdwg.mxu0
    %v855 = vsel %vm263, %v837, 0
    %857 = vmatpush.bf16.msra.mxu0 0
    %858 = vmatpush.bf16.msra.mxu0 0
    %859 = vmatpush.bf16.msra.mxu0 0
    %860 = vmatpush.bf16.msra.mxu0 0
    %861 = vmatpush.bf16.msra.mxu0 0
    %862 = vmatpush.bf16.msra.mxu0 0
    %863 = vmatpush.bf16.msra.mxu0 0
    %864 = vmatpush.bf16.msra.mxu0 %v722
    %865 = vmatmul.bf16.gmra.mxu0 %v855
    %v866 = vpop.f32.mrf.mxu0
    %v867 = vadd.f32 0.0, %v866
    %v868 = vpop.f32.mrf.mxu0
    %869 = vdwg.mxu0
    %872 = vrot.lane.b32.xlu0 %v523, 16
    %v873 = vpop.permute.xlu0 %872
    %874 = vrot.lane.b32.xlu0 %v539, 16
    %v875 = vpop.permute.xlu0 %874
    %880 = vrot.lane.b32.xlu0 %v710, 32
    %v881 = vpop.permute.xlu0 %880
    %882 = vrot.lane.b32.xlu0 %v734, 32
    %v883 = vpop.permute.xlu0 %882
    %888 = vrot.lane.b32.xlu0 %v851, 48
    %v889 = vpop.permute.xlu0 %888
    %890 = vrot.lane.b32.xlu0 %v867, 48
    %v891 = vpop.permute.xlu0 %890
    %v894 = vsel %vm306, %v386, %v873
    %v895 = vsel %vm306, %v405, %v875
    %vm896 = vcmask 261120
    %v897 = vsel %vm896, %v894, %v881
    %v898 = vsel %vm896, %v895, %v883
    %vm899 = vcmask 392192
    %v900 = vsel %vm899, %v897, %v889
    %v901 = vsel %vm899, %v898, %v891
    %v902 = vpack.c.bf16 %v901, %v900
    %v903 = vld [vmem:[%s8] sm:$0xf]
    %v904 = vld [vmem:[%s8 + $0x4] sm:$0xf]
    %v905 = vld [vmem:[%s8 + $0x8] sm:$0xf]
    %v906 = vld [vmem:[%s8 + $0xc] sm:$0xf]
    %v907 = vld [vmem:[%s8 + $0x10] sm:$0xf]
    %v908 = vld [vmem:[%s8 + $0x14] sm:$0xf]
    %v909 = vld [vmem:[%s8 + $0x18] sm:$0xf]
    %v910 = vld [vmem:[%s8 + $0x1c] sm:$0xf]
    %v919 = vunpack.c.l.b16 %v903
    %v920 = vunpack.c.l.b16 %v904
    %v921 = vunpack.c.l.b16 %v905
    %v922 = vunpack.c.l.b16 %v906
    %v923 = vunpack.c.l.b16 %v907
    %v924 = vunpack.c.l.b16 %v908
    %v925 = vunpack.c.l.b16 %v909
    %v926 = vunpack.c.l.b16 %v910
    %v927 = vpack.c.b16 %v920, %v919
    %v928 = vpack.c.b16 %v922, %v921
    %v929 = vpack.c.b16 %v924, %v923
    %v930 = vpack.c.b16 %v926, %v925
    %v936 = vsel %vm58, %v902, 0
    %938 = vmatpush.bf16.msra.mxu0 0
    %939 = vmatpush.bf16.msra.mxu0 0
    %940 = vmatpush.bf16.msra.mxu0 0
    %941 = vmatpush.bf16.msra.mxu0 0
    %942 = vmatpush.bf16.msra.mxu0 %v930
    %943 = vmatpush.bf16.msra.mxu0 %v929
    %944 = vmatpush.bf16.msra.mxu0 %v928
    %945 = vmatpush.bf16.msra.mxu0 %v927
    %946 = vmatmul.bf16.gmra.mxu0 %v936
    %v947 = vpop.f32.mrf.mxu0
    %v948 = vadd.f32 0.0, %v947
    %v949 = vpop.f32.mrf.mxu0
    %v950 = vadd.f32 0.0, %v949
    %951 = vdwg.mxu0
    %v952 = vadd.f32 %v49, %v948
    %v953 = vadd.f32 %v50, %v950
    %v954 = vld [vmem:[%s9] sm:$0x1]
    %v955 = vmul.f32 %v952, %v952
    %v956 = vmul.f32 %v953, %v953
    %v957 = vsel %vm58, %v955, 0.0
    %958 = vadd.xlane.f32.xlu0 %v957
    %v959 = vpop.xlane.xlu0 %958
    %v960 = vsel %vm58, %v956, 0.0
    %961 = vadd.xlane.f32.xlu0 %v960
    %v962 = vpop.xlane.xlu0 %961
    %v963 = vmul.f32 %v959, %v71
    %v964 = vmul.f32 %v962, %v71
    %v965 = vadd.f32 %v963, 1e-05
    %v966 = vadd.f32 %v964, 1e-05
    %v967 = vrsqrt.pop %v965
    %v968 = vmul.f32 %v967, %v965
    %v969 = vmul.f32 %v968, %v967
    %v970 = vmul.f32 0.5, %v969
    %v971 = vsub.f32 1.5, %v970
    %v972 = vmul.f32 %v967, %v971
    %vm973 = vweird.f32 %v965
    %vm974 = vweird.f32 %v967
    %vm975 = vmor %vm973, %vm974
    %v976 = vsel %vm975, %v967, %v972
    %v977 = vrsqrt.pop %v966
    %v978 = vmul.f32 %v977, %v966
    %v979 = vmul.f32 %v978, %v977
    %v980 = vmul.f32 0.5, %v979
    %v981 = vsub.f32 1.5, %v980
    %v982 = vmul.f32 %v977, %v981
    %vm983 = vweird.f32 %v966
    %vm984 = vweird.f32 %v977
    %vm985 = vmor %vm983, %vm984
    %v986 = vsel %vm985, %v977, %v982
    %v987 = vmul.f32 %v952, %v976
    %v988 = vmul.f32 %v953, %v986
    %v990 = vperm.slane %v954, 0
    %v992 = vmul.f32 %v987, %v990
    %v993 = vmul.f32 %v988, %v990
    %v994 = vpack.c.bf16 %v993, %v992
    %v995 = vld [vmem:[%s10] sm:$0xf]
    %v996 = vld [vmem:[%s10 + $0x4] sm:$0xf]
    %v997 = vld [vmem:[%s10 + $0x8] sm:$0xf]
    %v998 = vld [vmem:[%s10 + $0xc] sm:$0xf]
    %v999 = vld [vmem:[%s10 + $0x10] sm:$0xf]
    %v1000 = vld [vmem:[%s10 + $0x14] sm:$0xf]
    %v1001 = vld [vmem:[%s10 + $0x18] sm:$0xf]
    %v1002 = vld [vmem:[%s10 + $0x1c] sm:$0xf]
    %v1011 = vunpack.c.l.b16 %v995
    %v1012 = vunpack.c.l.b16 %v996
    %v1013 = vunpack.c.l.b16 %v997
    %v1014 = vunpack.c.l.b16 %v998
    %v1015 = vunpack.c.l.b16 %v999
    %v1016 = vunpack.c.l.b16 %v1000
    %v1017 = vunpack.c.l.b16 %v1001
    %v1018 = vunpack.c.l.b16 %v1002
    %v1019 = vpack.c.b16 %v1012, %v1011
    %v1020 = vpack.c.b16 %v1014, %v1013
    %v1021 = vpack.c.b16 %v1016, %v1015
    %v1022 = vpack.c.b16 %v1018, %v1017
    %v1028 = vsel %vm58, %v994, 0
    %1030 = vmatpush.bf16.msra.mxu0 0
    %1031 = vmatpush.bf16.msra.mxu0 0
    %1032 = vmatpush.bf16.msra.mxu0 0
    %1033 = vmatpush.bf16.msra.mxu0 0
    %1034 = vmatpush.bf16.msra.mxu0 %v1022
    %1035 = vmatpush.bf16.msra.mxu0 %v1021
    %1036 = vmatpush.bf16.msra.mxu0 %v1020
    %1037 = vmatpush.bf16.msra.mxu0 %v1019
    %1038 = vmatmul.bf16.gmra.mxu0 %v1028
    %v1039 = vpop.f32.mrf.mxu0
    %v1040 = vadd.f32 0.0, %v1039
    %v1041 = vpop.f32.mrf.mxu0
    %v1042 = vadd.f32 0.0, %v1041
    %1043 = vdwg.mxu0
    %v1044 = vld [vmem:[%s11] sm:$0xf]
    %v1045 = vld [vmem:[%s11 + $0x4] sm:$0xf]
    %v1046 = vld [vmem:[%s11 + $0x8] sm:$0xf]
    %v1047 = vld [vmem:[%s11 + $0xc] sm:$0xf]
    %v1048 = vld [vmem:[%s11 + $0x10] sm:$0xf]
    %v1049 = vld [vmem:[%s11 + $0x14] sm:$0xf]
    %v1050 = vld [vmem:[%s11 + $0x18] sm:$0xf]
    %v1051 = vld [vmem:[%s11 + $0x1c] sm:$0xf]
    %v1060 = vunpack.c.l.b16 %v1044
    %v1061 = vunpack.c.l.b16 %v1045
    %v1062 = vunpack.c.l.b16 %v1046
    %v1063 = vunpack.c.l.b16 %v1047
    %v1064 = vunpack.c.l.b16 %v1048
    %v1065 = vunpack.c.l.b16 %v1049
    %v1066 = vunpack.c.l.b16 %v1050
    %v1067 = vunpack.c.l.b16 %v1051
    %v1068 = vpack.c.b16 %v1061, %v1060
    %v1069 = vpack.c.b16 %v1063, %v1062
    %v1070 = vpack.c.b16 %v1065, %v1064
    %v1071 = vpack.c.b16 %v1067, %v1066
    %1076 = vmatpush.bf16.msra.mxu0 0
    %1077 = vmatpush.bf16.msra.mxu0 0
    %1078 = vmatpush.bf16.msra.mxu0 0
    %1079 = vmatpush.bf16.msra.mxu0 0
    %1080 = vmatpush.bf16.msra.mxu0 %v1071
    %1081 = vmatpush.bf16.msra.mxu0 %v1070
    %1082 = vmatpush.bf16.msra.mxu0 %v1069
    %1083 = vmatpush.bf16.msra.mxu0 %v1068
    %1084 = vmatmul.bf16.gmra.mxu0 %v1028
    %v1085 = vpop.f32.mrf.mxu0
    %v1086 = vadd.f32 0.0, %v1085
    %v1087 = vpop.f32.mrf.mxu0
    %v1088 = vadd.f32 0.0, %v1087
    %1089 = vdwg.mxu0
    %v1090 = vxor.u32 %v1040, 2147483648
    %v1091 = vxor.u32 %v1042, 2147483648
    %v1092 = vmul.f32 %v1090, 1.442695
    %v1093 = vpow.pop %v1092
    %v1094 = vmul.f32 %v1091, 1.442695
    %v1095 = vpow.pop %v1094
    %v1096 = vadd.f32 %v1093, 1.0
    %v1097 = vadd.f32 %v1095, 1.0
    %v1098 = vrcp.pop %v1096
    %v1099 = vmul.f32 %v1096, %v1098
    %v1100 = vsub.f32 1.0, %v1099
    %v1101 = vmul.f32 %v1098, %v1100
    %v1102 = vadd.f32 %v1098, %v1101
    %vm1103 = vweird.f32 %v1096
    %vm1104 = vweird.f32 %v1098
    %vm1105 = vmor %vm1103, %vm1104
    %v1106 = vsel %vm1105, %v1098, %v1102
    %v1107 = vand.u32 2147483647, %v1096
    %vm1108 = vcmp.eq.f32.partialorder %v1107, 8.507059e+37
    %v1109 = vand.u32 %v1096, 2147483648
    %v1110 = vor.u32 1.1754944e-38, %v1109
    %v1111 = vsel %vm1108, %v1110, %v1106
    %v1112 = vmul.f32 1.0, %v1111
    %v1113 = vrcp.pop %v1097
    %v1114 = vmul.f32 %v1097, %v1113
    %v1115 = vsub.f32 1.0, %v1114
    %v1116 = vmul.f32 %v1113, %v1115
    %v1117 = vadd.f32 %v1113, %v1116
    %vm1118 = vweird.f32 %v1097
    %vm1119 = vweird.f32 %v1113
    %vm1120 = vmor %vm1118, %vm1119
    %v1121 = vsel %vm1120, %v1113, %v1117
    %v1122 = vand.u32 2147483647, %v1097
    %vm1123 = vcmp.eq.f32.partialorder %v1122, 8.507059e+37
    %v1124 = vand.u32 %v1097, 2147483648
    %v1125 = vor.u32 1.1754944e-38, %v1124
    %v1126 = vsel %vm1123, %v1125, %v1121
    %v1127 = vmul.f32 1.0, %v1126
    %v1128 = vmul.f32 %v1040, %v1112
    %v1129 = vmul.f32 %v1042, %v1127
    %v1130 = vmul.f32 %v1128, %v1086
    %v1131 = vmul.f32 %v1129, %v1088
    %v1132 = vpack.c.bf16 %v1131, %v1130
    %v1133 = vld [vmem:[%s12] sm:$0xf]
    %v1134 = vld [vmem:[%s12 + $0x4] sm:$0xf]
    %v1135 = vld [vmem:[%s12 + $0x8] sm:$0xf]
    %v1136 = vld [vmem:[%s12 + $0xc] sm:$0xf]
    %v1137 = vld [vmem:[%s12 + $0x10] sm:$0xf]
    %v1138 = vld [vmem:[%s12 + $0x14] sm:$0xf]
    %v1139 = vld [vmem:[%s12 + $0x18] sm:$0xf]
    %v1140 = vld [vmem:[%s12 + $0x1c] sm:$0xf]
    %v1141 = vld [vmem:[%s12 + $0x20] sm:$0xf]
    %v1142 = vld [vmem:[%s12 + $0x24] sm:$0xf]
    %v1143 = vld [vmem:[%s12 + $0x28] sm:$0xf]
    %v1144 = vld [vmem:[%s12 + $0x2c] sm:$0xf]
    %v1145 = vld [vmem:[%s12 + $0x30] sm:$0xf]
    %v1146 = vld [vmem:[%s12 + $0x34] sm:$0xf]
    %v1147 = vld [vmem:[%s12 + $0x38] sm:$0xf]
    %v1148 = vld [vmem:[%s12 + $0x3c] sm:$0xf]
    %v1165 = vunpack.c.l.b16 %v1133
    %v1166 = vunpack.c.l.b16 %v1134
    %v1167 = vunpack.c.l.b16 %v1135
    %v1168 = vunpack.c.l.b16 %v1136
    %v1169 = vunpack.c.l.b16 %v1137
    %v1170 = vunpack.c.l.b16 %v1138
    %v1171 = vunpack.c.l.b16 %v1139
    %v1172 = vunpack.c.l.b16 %v1140
    %v1173 = vunpack.c.l.b16 %v1141
    %v1174 = vunpack.c.l.b16 %v1142
    %v1175 = vunpack.c.l.b16 %v1143
    %v1176 = vunpack.c.l.b16 %v1144
    %v1177 = vunpack.c.l.b16 %v1145
    %v1178 = vunpack.c.l.b16 %v1146
    %v1179 = vunpack.c.l.b16 %v1147
    %v1180 = vunpack.c.l.b16 %v1148
    %v1181 = vpack.c.b16 %v1166, %v1165
    %v1182 = vpack.c.b16 %v1168, %v1167
    %v1183 = vpack.c.b16 %v1170, %v1169
    %v1184 = vpack.c.b16 %v1172, %v1171
    %v1185 = vpack.c.b16 %v1174, %v1173
    %v1186 = vpack.c.b16 %v1176, %v1175
    %v1187 = vpack.c.b16 %v1178, %v1177
    %v1188 = vpack.c.b16 %v1180, %v1179
    %1197 = vmatpush.bf16.msra.mxu0 %v1188
    %1198 = vmatpush.bf16.msra.mxu0 %v1187
    %1199 = vmatpush.bf16.msra.mxu0 %v1186
    %1200 = vmatpush.bf16.msra.mxu0 %v1185
    %1201 = vmatpush.bf16.msra.mxu0 %v1184
    %1202 = vmatpush.bf16.msra.mxu0 %v1183
    %1203 = vmatpush.bf16.msra.mxu0 %v1182
    %1204 = vmatpush.bf16.msra.mxu0 %v1181
    %1205 = vmatmul.bf16.gmra.mxu0 %v1132
    %v1206 = vpop.f32.mrf.mxu0
    %v1207 = vadd.f32 0.0, %v1206
    %v1208 = vpop.f32.mrf.mxu0
    %v1209 = vadd.f32 0.0, %v1208
    %1210 = vdwg.mxu0
    %v1211 = vadd.f32 %v952, %v1207
    %v1212 = vadd.f32 %v953, %v1209
    %v1213 = vld [vmem:[%s13] sm:$0x1]
    %v1214 = vmul.f32 %v1211, %v1211
    %v1215 = vmul.f32 %v1212, %v1212
    %v1216 = vsel %vm58, %v1214, 0.0
    %1217 = vadd.xlane.f32.xlu0 %v1216
    %v1218 = vpop.xlane.xlu0 %1217
    %v1219 = vsel %vm58, %v1215, 0.0
    %1220 = vadd.xlane.f32.xlu0 %v1219
    %v1221 = vpop.xlane.xlu0 %1220
    %v1222 = vmul.f32 %v1218, %v71
    %v1223 = vmul.f32 %v1221, %v71
    %v1224 = vadd.f32 %v1222, 1e-05
    %v1225 = vadd.f32 %v1223, 1e-05
    %v1226 = vrsqrt.pop %v1224
    %v1227 = vmul.f32 %v1226, %v1224
    %v1228 = vmul.f32 %v1227, %v1226
    %v1229 = vmul.f32 0.5, %v1228
    %v1230 = vsub.f32 1.5, %v1229
    %v1231 = vmul.f32 %v1226, %v1230
    %vm1232 = vweird.f32 %v1224
    %vm1233 = vweird.f32 %v1226
    %vm1234 = vmor %vm1232, %vm1233
    %v1235 = vsel %vm1234, %v1226, %v1231
    %v1236 = vrsqrt.pop %v1225
    %v1237 = vmul.f32 %v1236, %v1225
    %v1238 = vmul.f32 %v1237, %v1236
    %v1239 = vmul.f32 0.5, %v1238
    %v1240 = vsub.f32 1.5, %v1239
    %v1241 = vmul.f32 %v1236, %v1240
    %vm1242 = vweird.f32 %v1225
    %vm1243 = vweird.f32 %v1236
    %vm1244 = vmor %vm1242, %vm1243
    %v1245 = vsel %vm1244, %v1236, %v1241
    %v1246 = vmul.f32 %v1211, %v1235
    %v1247 = vmul.f32 %v1212, %v1245
    %v1249 = vperm.slane %v1213, 0
    %v1251 = vmul.f32 %v1246, %v1249
    %v1252 = vmul.f32 %v1247, %v1249
    %1253 = vst.msk [vmem:[#allocation2] sm:$0xff] %vm58, %v1251
    %1254 = vst.msk [vmem:[#allocation2 + $0x8] sm:$0xff] %vm58, %v1252
    // Predicated region
    $region58: #{vlm_forward.11} parent=1 // pred_check
      _
    $region59: #{vlm_forward.11} parent=1 // pred_check_branch
      %1256 = sbr.rel (0) target = $region61
    $region60: #{vlm_forward.11} parent=1 // pred_region
      %1258 = vsyncadd [#allocation3], 0
      %s1259 = sshll.u32 [#allocation2], 4
      %s1260 = int_to_ptr.vmem [resolvable:$true] %s1259
      %s1261 = sshll.u32 %s14, 4
      %s1262 = int_to_ptr.hbm [resolvable:$true] %s1261
      %1267 = dma.vmem_to_hbm [thread:$0]  %s1260, 256, %s1262, [#allocation3], 128, 128, 8
    $region61: #{vlm_forward.11} parent=1 // pred_fallthru
      _
    // Predicated region
    $region62: #{vlm_forward.11} parent=1 // pred_check
      _
    $region63: #{vlm_forward.11} parent=1 // pred_check_branch
      %1269 = sbr.rel (0) target = $region65
    $region64: #{vlm_forward.11} parent=1 // pred_region
      %1271 = dma.done [#allocation3], 256
    $region65: #{vlm_forward.11} parent=1 // pred_fallthru
      _
    %1272 = vsyncpa [#allocation3], 1

</llo_original>
